<compile_context>
chip_gen: v6e
topology: v6e:2x2x1
jax: 0.10.0
libtpu: 0.0.40
codegen_flags: <defaults>
</compile_context>

<pallas_src>
import functools

import jax
import jax.numpy as jnp
from jax.experimental import pallas as pl
from jax.experimental.pallas import tpu as pltpu


# ------------------------------ fused kernel ------------------------------
def _gat_lstm_fused_kernel(emb_ref, watt_ref, a1_ref, a2t_ref, x_ref,
                           wih_ref, whh_ref, b_ref, wfct_ref, bfc_ref,
                           out_ref, gin_ref, *, alpha, hd, nsteps):
    f32 = jnp.float32
    bf16 = jnp.bfloat16
    n_nodes = out_ref.shape[0]

    # ---------------- attention prologue (depends only on embedding; computed once) ----------------
    h_att = jnp.dot(emb_ref[...], watt_ref[...], preferred_element_type=f32)   # (N, nhid)
    f1 = jnp.dot(h_att, a1_ref[...], preferred_element_type=f32)               # (N, 1)
    # f2 as a ROW without any skinny transpose: (1,nhid) contracted with (N,nhid) -> (1, N)
    f2 = jax.lax.dot_general(a2t_ref[...], h_att,
                             (((1,), (1,)), ((), ())),
                             preferred_element_type=f32)                        # (1, N)
    e = f1 + f2                                                                 # (N,N), e[i,j]=f1[i]+f2[j]
    e = jnp.where(e > 0, e, alpha * e)                                          # LeakyReLU(alpha)

    # Separable row-max (LeakyReLU is monotone increasing):
    #   max_j lrelu(f1[i]+f2[j]) == lrelu(f1[i] + max_j f2[j])
    # -> avoids a full (N,N) lane-reduction; only a (1,N) reduce + (N,1) arithmetic.
    f2max = jnp.max(f2, axis=1, keepdims=True)                                  # (1, 1)
    mx = f1 + f2max
    mx = jnp.where(mx > 0, mx, alpha * mx)                                      # (N, 1) == rowmax(e)

    p = jnp.exp(e - mx)                                                         # (N, N)
    inv = pl.reciprocal(jnp.sum(p, axis=1, keepdims=True), approx=True)         # (N, 1)
    att = (p * inv).astype(bf16)                                                # softmax over dim=1, bf16

    # Fold attention into the LSTM input projection (exact reassociation):
    #   (x_t @ A^T) @ W_ih^T == x_t @ (W_ih @ A)^T   ->   Wmix = W_ih @ A   (4H, M)
    # bf16 MXU operands, f32 accumulation (result is truncated to bf16 anyway).
    wmix = jnp.dot(wih_ref[...].astype(bf16), att,
                   preferred_element_type=f32).astype(bf16)                     # (4H, M) bf16

    # ---------------- hoisted input projections: gin[t] = Wmix @ x_t + b ----------------
    # 8 carry-independent MXU matmuls streamed back-to-back, staged in VMEM scratch so we
    # never hold 8 live (4H,N) f32 values in vregs. Bias folded in once here (single
    # hoisted broadcast), keeping the serial recurrence path minimal.
    bias = jnp.broadcast_to(b_ref[...], (4 * hd, n_nodes))                      # (4H, N)
    for t in range(nsteps):
        gin_ref[t] = jnp.dot(wmix, x_ref[t], preferred_element_type=f32) + bias

    whh = whh_ref[...]                                                          # (4H, H) f32

    # ---------------- unrolled LSTM recurrence, transposed (H, N) state ----------------
    h = None
    c = None
    for t in range(nsteps):
        gates = gin_ref[t]                                                      # (4H, N) from scratch
        if t > 0:
            gates = gates + jnp.dot(whh, h, preferred_element_type=f32)         # tiny K=H matmul
        if_g = jax.nn.sigmoid(gates[:2 * hd, :])                                # i,f in one EUP call
        g_g = jnp.tanh(gates[2 * hd:3 * hd, :])
        o_g = jax.nn.sigmoid(gates[3 * hd:, :])
        i_g = if_g[:hd, :]
        f_g = if_g[hd:, :]
        c = i_g * g_g if t == 0 else f_g * c + i_g * g_g                        # zero-init folded
        h = o_g * jnp.tanh(c)

    # ---------------- fc epilogue: out[n, o] = sum_h h[h, n] * W_fc^T[h, o] + b_fc ----------------
    out_ref[...] = jax.lax.dot_general(h, wfct_ref[...],
                                       (((0,), (0,)), ((), ())),
                                       preferred_element_type=f32) + bfc_ref[...]


# ------------------------------ wrapper ------------------------------
def gat_lstm_forward(embedding, x, adj, params, alpha):
    del adj  # the reference forward never uses adj (dense attention over all node pairs)
    N, T, M = x.shape
    nhid = params["W_att"].shape[1]
    Hd = params["W_hh"].shape[1]
    out_dim = params["W_fc"].shape[0]

    a1 = params["a_att"][:nhid, :]                                   # (nhid, 1)
    a2t = params["a_att"][nhid:, :].T                                # (1, nhid)
    b = (params["b_ih"] + params["b_hh"]).reshape(4 * Hd, 1)         # (4H, 1)
    wfc_t = params["W_fc"].T                                         # (Hd, out_dim)
    bfc = params["b_fc"].reshape(1, out_dim)                         # (1, out_dim)
    # Single layout fix for x, fused under jit (transpose + bf16 cast in one XLA op).
    # Ideally the upstream producer emits x already as (T, M, N) bf16 so this HBM
    # round trip disappears entirely.
    x_tmn = jnp.transpose(x, (1, 2, 0)).astype(jnp.bfloat16)         # (T, M, N)

    kernel = functools.partial(_gat_lstm_fused_kernel,
                               alpha=float(alpha), hd=int(Hd), nsteps=int(T))
    return pl.pallas_call(
        kernel,
        out_shape=jax.ShapeDtypeStruct((N, out_dim), jnp.float32),
        scratch_shapes=[pltpu.VMEM((T, 4 * Hd, N), jnp.float32)],    # staged gin_t slabs
    )(embedding, params["W_att"], a1, a2t, x_tmn,
      params["W_ih"], params["W_hh"], b, wfc_t, bfc)


# ------------------------------ pure-JAX reference ------------------------------
def reference_forward(embedding, x, params, alpha):
    W, a = params["W_att"], params["a_att"]
    H = W.shape[1]
    h = embedding @ W
    f1 = h @ a[:H, :]
    f2 = h @ a[H:, :]
    e = f1 + f2.T
    e = jnp.where(e > 0, e, alpha * e)
    att = jax.nn.softmax(e, axis=1)
    # y[n, t, k] = sum_m x[n, t, m] * att[k, m]   (== (att @ x_t^T)^T per t)
    y = jnp.einsum("ntm,km->ntk", x, att)

    Hd = params["W_hh"].shape[1]
    N = x.shape[0]

    def step(carry, y_t):
        h_prev, c_prev = carry
        gates = (y_t @ params["W_ih"].T + h_prev @ params["W_hh"].T
                 + params["b_ih"] + params["b_hh"])
        i_g = jax.nn.sigmoid(gates[:, :Hd])
        f_g = jax.nn.sigmoid(gates[:, Hd:2 * Hd])
        g_g = jnp.tanh(gates[:, 2 * Hd:3 * Hd])
        o_g = jax.nn.sigmoid(gates[:, 3 * Hd:])
        c = f_g * c_prev + i_g * g_g
        h_new = o_g * jnp.tanh(c)
        return (h_new, c), None

    init = (jnp.zeros((N, Hd), jnp.float32), jnp.zeros((N, Hd), jnp.float32))
    (h_last, _), _ = jax.lax.scan(step, init, jnp.transpose(y, (1, 0, 2)))
    return h_last @ params["W_fc"].T + params["b_fc"]


# ------------------------------ main ------------------------------
if __name__ == "__main__":
    # Module-implied sizes: M == N == 156 (LSTM input_size=156 and torch.mm constraint),
    # LSTM hidden = 8, fc: 8 -> 156.  Small free choices: T=8, nfeat=16, nhid=8, alpha=0.2.
    N = M = 156
    T = 8
    nfeat = 16
    nhid = 8
    lstm_hidden = 8
    alpha = 0.2

    key = jax.random.PRNGKey(0)
    ks = jax.random.split(key, 12)

    def xavier(k, shape, gain=1.414):
        bound = gain * (6.0 / (shape[0] + shape[1])) ** 0.5
        return jax.random.uniform(k, shape, jnp.float32, -bound, bound)

    s = 1.0 / (lstm_hidden ** 0.5)
    params = {
        "W_att": xavier(ks[0], (nfeat, nhid)),
        "a_att": xavier(ks[1], (2 * nhid, 1)),
        "W_ih": jax.random.uniform(ks[2], (4 * lstm_hidden, M), jnp.float32, -s, s),
        "W_hh": jax.random.uniform(ks[3], (4 * lstm_hidden, lstm_hidden), jnp.float32, -s, s),
        "b_ih": jax.random.uniform(ks[4], (4 * lstm_hidden,), jnp.float32, -s, s),
        "b_hh": jax.random.uniform(ks[5], (4 * lstm_hidden,), jnp.float32, -s, s),
        "W_fc": jax.random.uniform(ks[6], (156, lstm_hidden), jnp.float32, -s, s),
        "b_fc": jax.random.uniform(ks[7], (156,), jnp.float32, -s, s),
    }

    embedding = 0.1 * jax.random.normal(ks[8], (N, nfeat), jnp.float32)
    x = jax.random.normal(ks[9], (N, T, M), jnp.float32)
    adj = (jax.random.uniform(ks[10], (N, N)) > 0.5).astype(jnp.float32)  # unused by forward

    fwd = jax.jit(gat_lstm_forward, static_argnames=("alpha",))
    out = jax.block_until_ready(fwd(embedding, x, adj, params, alpha=alpha))

    ref = jax.block_until_ready(reference_forward(embedding, x, params, alpha))
    assert out.shape == (N, 156) and out.dtype == jnp.float32
    max_err = float(jnp.max(jnp.abs(out - ref)))
    # bf16 MXU inputs + approx reciprocal => slightly looser tolerance than pure f32
    assert jnp.allclose(out, ref, rtol=2e-2, atol=2e-2), max_err

    print("KERNEL_OK")
</pallas_src>

<mosaic_0001>
module attributes {stable_mosaic.version = 11 : i64} {
  func.func @_gat_lstm_fused_kernel(%arg0: memref<156x16xf32, #tpu.memory_space<vmem>>, %arg1: memref<16x8xf32, #tpu.memory_space<vmem>>, %arg2: memref<8x1xf32, #tpu.memory_space<vmem>>, %arg3: memref<1x8xf32, #tpu.memory_space<vmem>>, %arg4: memref<8x156x156xbf16, #tpu.memory_space<vmem>>, %arg5: memref<32x156xf32, #tpu.memory_space<vmem>>, %arg6: memref<32x8xf32, #tpu.memory_space<vmem>>, %arg7: memref<32x1xf32, #tpu.memory_space<vmem>>, %arg8: memref<8x156xf32, #tpu.memory_space<vmem>>, %arg9: memref<1x156xf32, #tpu.memory_space<vmem>>, %arg10: memref<156x156xf32, #tpu.memory_space<vmem>>, %arg11: memref<8x32x156xf32, #tpu.memory_space<vmem>>) attributes {dimension_semantics = [], scalar_prefetch = 0 : i64, scratch_operands = 1 : i64, tpu.core_type = #tpu.core_type<tc>} {
    %c0 = arith.constant 0 : index
    %c0_0 = arith.constant 0 : index
    %0 = vector.load %arg0[%c0, %c0_0] : memref<156x16xf32, #tpu.memory_space<vmem>>, vector<156x16xf32>
    %c0_1 = arith.constant 0 : index
    %c0_2 = arith.constant 0 : index
    %1 = vector.load %arg1[%c0_1, %c0_2] : memref<16x8xf32, #tpu.memory_space<vmem>>, vector<16x8xf32>
    %cst = arith.constant dense<0.000000e+00> : vector<156x8xf32>
    %2 = tpu.matmul %0, %1, %cst {dimension_numbers = #tpu.dot_dimension_numbers<[1], [0], [0], [1], [0, 0, 1, 1], [], []>} : vector<156x16xf32>, vector<16x8xf32>, vector<156x8xf32> -> vector<156x8xf32>
    %c0_3 = arith.constant 0 : index
    %c0_4 = arith.constant 0 : index
    %3 = vector.load %arg2[%c0_3, %c0_4] : memref<8x1xf32, #tpu.memory_space<vmem>>, vector<8x1xf32>
    %cst_5 = arith.constant dense<0.000000e+00> : vector<156x1xf32>
    %4 = tpu.matmul %2, %3, %cst_5 {dimension_numbers = #tpu.dot_dimension_numbers<[1], [0], [0], [1], [0, 0, 1, 1], [], []>} : vector<156x8xf32>, vector<8x1xf32>, vector<156x1xf32> -> vector<156x1xf32>
    %c0_6 = arith.constant 0 : index
    %c0_7 = arith.constant 0 : index
    %5 = vector.load %arg3[%c0_6, %c0_7] : memref<1x8xf32, #tpu.memory_space<vmem>>, vector<1x8xf32>
    %cst_8 = arith.constant dense<0.000000e+00> : vector<1x156xf32>
    %6 = tpu.matmul %5, %2, %cst_8 {dimension_numbers = #tpu.dot_dimension_numbers<[1], [1], [0], [0], [0, 0, 1, 0], [], []>} : vector<1x8xf32>, vector<156x8xf32>, vector<1x156xf32> -> vector<1x156xf32>
    %7 = vector.broadcast %4 : vector<156x1xf32> to vector<156x156xf32>
    %8 = vector.broadcast %6 : vector<1x156xf32> to vector<156x156xf32>
    %9 = arith.addf %7, %8 : vector<156x156xf32>
    %cst_9 = arith.constant 0.000000e+00 : f32
    %10 = vector.broadcast %cst_9 : f32 to vector<156x156xf32>
    %11 = arith.cmpf ogt, %9, %10 : vector<156x156xf32>
    %cst_10 = arith.constant 2.000000e-01 : f32
    %12 = vector.broadcast %cst_10 : f32 to vector<156x156xf32>
    %13 = arith.mulf %12, %9 : vector<156x156xf32>
    %14 = arith.select %11, %9, %13 : vector<156x156xi1>, vector<156x156xf32>
    %cst_11 = arith.constant dense<0xFF800000> : vector<1xf32>
    %15 = vector.multi_reduction <maximumf>, %6, %cst_11 [1] : vector<1x156xf32> to vector<1xf32>
    %16 = vector.shape_cast %15 : vector<1xf32> to vector<1x1xf32>
    %17 = vector.broadcast %16 : vector<1x1xf32> to vector<156x1xf32>
    %18 = arith.addf %4, %17 : vector<156x1xf32>
    %cst_12 = arith.constant 0.000000e+00 : f32
    %19 = vector.broadcast %cst_12 : f32 to vector<156x1xf32>
    %20 = arith.cmpf ogt, %18, %19 : vector<156x1xf32>
    %cst_13 = arith.constant 2.000000e-01 : f32
    %21 = vector.broadcast %cst_13 : f32 to vector<156x1xf32>
    %22 = arith.mulf %21, %18 : vector<156x1xf32>
    %23 = arith.select %20, %18, %22 : vector<156x1xi1>, vector<156x1xf32>
    %24 = vector.broadcast %23 : vector<156x1xf32> to vector<156x156xf32>
    %25 = arith.subf %14, %24 : vector<156x156xf32>
    %26 = math.exp %25 : vector<156x156xf32>
    %cst_14 = arith.constant dense<0.000000e+00> : vector<156xf32>
    %27 = vector.multi_reduction <add>, %26, %cst_14 [1] : vector<156x156xf32> to vector<156xf32>
    %28 = vector.shape_cast %27 : vector<156xf32> to vector<156x1xf32>
    %29 = tpu.reciprocal %28 {approx = true} : vector<156x1xf32> -> vector<156x1xf32>
    %30 = vector.broadcast %29 : vector<156x1xf32> to vector<156x156xf32>
    %31 = arith.mulf %26, %30 : vector<156x156xf32>
    %32 = arith.truncf %31 : vector<156x156xf32> to vector<156x156xbf16>
    %c0_15 = arith.constant 0 : index
    %c0_16 = arith.constant 0 : index
    %33 = vector.load %arg5[%c0_15, %c0_16] : memref<32x156xf32, #tpu.memory_space<vmem>>, vector<32x156xf32>
    %34 = arith.truncf %33 : vector<32x156xf32> to vector<32x156xbf16>
    %cst_17 = arith.constant dense<0.000000e+00> : vector<32x156xf32>
    %35 = tpu.matmul %34, %32, %cst_17 {dimension_numbers = #tpu.dot_dimension_numbers<[1], [0], [0], [1], [0, 0, 1, 1], [], []>} : vector<32x156xbf16>, vector<156x156xbf16>, vector<32x156xf32> -> vector<32x156xf32>
    %36 = arith.truncf %35 : vector<32x156xf32> to vector<32x156xbf16>
    %c0_18 = arith.constant 0 : index
    %c0_19 = arith.constant 0 : index
    %37 = vector.load %arg7[%c0_18, %c0_19] : memref<32x1xf32, #tpu.memory_space<vmem>>, vector<32x1xf32>
    %38 = vector.shape_cast %37 : vector<32x1xf32> to vector<32x1xf32>
    %39 = vector.broadcast %38 : vector<32x1xf32> to vector<32x156xf32>
    %c0_20 = arith.constant 0 : index
    %c0_21 = arith.constant 0 : index
    %c0_22 = arith.constant 0 : index
    %40 = vector.load %arg4[%c0_20, %c0_21, %c0_22] : memref<8x156x156xbf16, #tpu.memory_space<vmem>>, vector<1x156x156xbf16>
    %41 = vector.shape_cast %40 : vector<1x156x156xbf16> to vector<156x156xbf16>
    %cst_23 = arith.constant dense<0.000000e+00> : vector<32x156xf32>
    %42 = tpu.matmul %36, %41, %cst_23 {dimension_numbers = #tpu.dot_dimension_numbers<[1], [0], [0], [1], [0, 0, 1, 1], [], []>} : vector<32x156xbf16>, vector<156x156xbf16>, vector<32x156xf32> -> vector<32x156xf32>
    %43 = arith.addf %42, %39 : vector<32x156xf32>
    %c0_24 = arith.constant 0 : index
    %c0_25 = arith.constant 0 : index
    %c0_26 = arith.constant 0 : index
    %44 = vector.load %arg11[%c0_24, %c0_25, %c0_26] : memref<8x32x156xf32, #tpu.memory_space<vmem>>, vector<1x32x156xf32>
    %45 = vector.shape_cast %44 : vector<1x32x156xf32> to vector<32x156xf32>
    %46 = vector.shape_cast %43 : vector<32x156xf32> to vector<1x32x156xf32>
    tpu.vector_store %arg11[%c0_24, %c0_25, %c0_26], %46 {strides = array<i32>} : memref<8x32x156xf32, #tpu.memory_space<vmem>>, vector<1x32x156xf32>,
    %c1 = arith.constant 1 : index
    %c0_27 = arith.constant 0 : index
    %c0_28 = arith.constant 0 : index
    %47 = vector.load %arg4[%c1, %c0_27, %c0_28] : memref<8x156x156xbf16, #tpu.memory_space<vmem>>, vector<1x156x156xbf16>
    %48 = vector.shape_cast %47 : vector<1x156x156xbf16> to vector<156x156xbf16>
    %cst_29 = arith.constant dense<0.000000e+00> : vector<32x156xf32>
    %49 = tpu.matmul %36, %48, %cst_29 {dimension_numbers = #tpu.dot_dimension_numbers<[1], [0], [0], [1], [0, 0, 1, 1], [], []>} : vector<32x156xbf16>, vector<156x156xbf16>, vector<32x156xf32> -> vector<32x156xf32>
    %50 = arith.addf %49, %39 : vector<32x156xf32>
    %c1_30 = arith.constant 1 : index
    %c0_31 = arith.constant 0 : index
    %c0_32 = arith.constant 0 : index
    %51 = vector.load %arg11[%c1_30, %c0_31, %c0_32] : memref<8x32x156xf32, #tpu.memory_space<vmem>>, vector<1x32x156xf32>
    %52 = vector.shape_cast %51 : vector<1x32x156xf32> to vector<32x156xf32>
    %53 = vector.shape_cast %50 : vector<32x156xf32> to vector<1x32x156xf32>
    tpu.vector_store %arg11[%c1_30, %c0_31, %c0_32], %53 {strides = array<i32>} : memref<8x32x156xf32, #tpu.memory_space<vmem>>, vector<1x32x156xf32>,
    %c2 = arith.constant 2 : index
    %c0_33 = arith.constant 0 : index
    %c0_34 = arith.constant 0 : index
    %54 = vector.load %arg4[%c2, %c0_33, %c0_34] : memref<8x156x156xbf16, #tpu.memory_space<vmem>>, vector<1x156x156xbf16>
    %55 = vector.shape_cast %54 : vector<1x156x156xbf16> to vector<156x156xbf16>
    %cst_35 = arith.constant dense<0.000000e+00> : vector<32x156xf32>
    %56 = tpu.matmul %36, %55, %cst_35 {dimension_numbers = #tpu.dot_dimension_numbers<[1], [0], [0], [1], [0, 0, 1, 1], [], []>} : vector<32x156xbf16>, vector<156x156xbf16>, vector<32x156xf32> -> vector<32x156xf32>
    %57 = arith.addf %56, %39 : vector<32x156xf32>
    %c2_36 = arith.constant 2 : index
    %c0_37 = arith.constant 0 : index
    %c0_38 = arith.constant 0 : index
    %58 = vector.load %arg11[%c2_36, %c0_37, %c0_38] : memref<8x32x156xf32, #tpu.memory_space<vmem>>, vector<1x32x156xf32>
    %59 = vector.shape_cast %58 : vector<1x32x156xf32> to vector<32x156xf32>
    %60 = vector.shape_cast %57 : vector<32x156xf32> to vector<1x32x156xf32>
    tpu.vector_store %arg11[%c2_36, %c0_37, %c0_38], %60 {strides = array<i32>} : memref<8x32x156xf32, #tpu.memory_space<vmem>>, vector<1x32x156xf32>,
    %c3 = arith.constant 3 : index
    %c0_39 = arith.constant 0 : index
    %c0_40 = arith.constant 0 : index
    %61 = vector.load %arg4[%c3, %c0_39, %c0_40] : memref<8x156x156xbf16, #tpu.memory_space<vmem>>, vector<1x156x156xbf16>
    %62 = vector.shape_cast %61 : vector<1x156x156xbf16> to vector<156x156xbf16>
    %cst_41 = arith.constant dense<0.000000e+00> : vector<32x156xf32>
    %63 = tpu.matmul %36, %62, %cst_41 {dimension_numbers = #tpu.dot_dimension_numbers<[1], [0], [0], [1], [0, 0, 1, 1], [], []>} : vector<32x156xbf16>, vector<156x156xbf16>, vector<32x156xf32> -> vector<32x156xf32>
    %64 = arith.addf %63, %39 : vector<32x156xf32>
    %c3_42 = arith.constant 3 : index
    %c0_43 = arith.constant 0 : index
    %c0_44 = arith.constant 0 : index
    %65 = vector.load %arg11[%c3_42, %c0_43, %c0_44] : memref<8x32x156xf32, #tpu.memory_space<vmem>>, vector<1x32x156xf32>
    %66 = vector.shape_cast %65 : vector<1x32x156xf32> to vector<32x156xf32>
    %67 = vector.shape_cast %64 : vector<32x156xf32> to vector<1x32x156xf32>
    tpu.vector_store %arg11[%c3_42, %c0_43, %c0_44], %67 {strides = array<i32>} : memref<8x32x156xf32, #tpu.memory_space<vmem>>, vector<1x32x156xf32>,
    %c4 = arith.constant 4 : index
    %c0_45 = arith.constant 0 : index
    %c0_46 = arith.constant 0 : index
    %68 = vector.load %arg4[%c4, %c0_45, %c0_46] : memref<8x156x156xbf16, #tpu.memory_space<vmem>>, vector<1x156x156xbf16>
    %69 = vector.shape_cast %68 : vector<1x156x156xbf16> to vector<156x156xbf16>
    %cst_47 = arith.constant dense<0.000000e+00> : vector<32x156xf32>
    %70 = tpu.matmul %36, %69, %cst_47 {dimension_numbers = #tpu.dot_dimension_numbers<[1], [0], [0], [1], [0, 0, 1, 1], [], []>} : vector<32x156xbf16>, vector<156x156xbf16>, vector<32x156xf32> -> vector<32x156xf32>
    %71 = arith.addf %70, %39 : vector<32x156xf32>
    %c4_48 = arith.constant 4 : index
    %c0_49 = arith.constant 0 : index
    %c0_50 = arith.constant 0 : index
    %72 = vector.load %arg11[%c4_48, %c0_49, %c0_50] : memref<8x32x156xf32, #tpu.memory_space<vmem>>, vector<1x32x156xf32>
    %73 = vector.shape_cast %72 : vector<1x32x156xf32> to vector<32x156xf32>
    %74 = vector.shape_cast %71 : vector<32x156xf32> to vector<1x32x156xf32>
    tpu.vector_store %arg11[%c4_48, %c0_49, %c0_50], %74 {strides = array<i32>} : memref<8x32x156xf32, #tpu.memory_space<vmem>>, vector<1x32x156xf32>,
    %c5 = arith.constant 5 : index
    %c0_51 = arith.constant 0 : index
    %c0_52 = arith.constant 0 : index
    %75 = vector.load %arg4[%c5, %c0_51, %c0_52] : memref<8x156x156xbf16, #tpu.memory_space<vmem>>, vector<1x156x156xbf16>
    %76 = vector.shape_cast %75 : vector<1x156x156xbf16> to vector<156x156xbf16>
    %cst_53 = arith.constant dense<0.000000e+00> : vector<32x156xf32>
    %77 = tpu.matmul %36, %76, %cst_53 {dimension_numbers = #tpu.dot_dimension_numbers<[1], [0], [0], [1], [0, 0, 1, 1], [], []>} : vector<32x156xbf16>, vector<156x156xbf16>, vector<32x156xf32> -> vector<32x156xf32>
    %78 = arith.addf %77, %39 : vector<32x156xf32>
    %c5_54 = arith.constant 5 : index
    %c0_55 = arith.constant 0 : index
    %c0_56 = arith.constant 0 : index
    %79 = vector.load %arg11[%c5_54, %c0_55, %c0_56] : memref<8x32x156xf32, #tpu.memory_space<vmem>>, vector<1x32x156xf32>
    %80 = vector.shape_cast %79 : vector<1x32x156xf32> to vector<32x156xf32>
    %81 = vector.shape_cast %78 : vector<32x156xf32> to vector<1x32x156xf32>
    tpu.vector_store %arg11[%c5_54, %c0_55, %c0_56], %81 {strides = array<i32>} : memref<8x32x156xf32, #tpu.memory_space<vmem>>, vector<1x32x156xf32>,
    %c6 = arith.constant 6 : index
    %c0_57 = arith.constant 0 : index
    %c0_58 = arith.constant 0 : index
    %82 = vector.load %arg4[%c6, %c0_57, %c0_58] : memref<8x156x156xbf16, #tpu.memory_space<vmem>>, vector<1x156x156xbf16>
    %83 = vector.shape_cast %82 : vector<1x156x156xbf16> to vector<156x156xbf16>
    %cst_59 = arith.constant dense<0.000000e+00> : vector<32x156xf32>
    %84 = tpu.matmul %36, %83, %cst_59 {dimension_numbers = #tpu.dot_dimension_numbers<[1], [0], [0], [1], [0, 0, 1, 1], [], []>} : vector<32x156xbf16>, vector<156x156xbf16>, vector<32x156xf32> -> vector<32x156xf32>
    %85 = arith.addf %84, %39 : vector<32x156xf32>
    %c6_60 = arith.constant 6 : index
    %c0_61 = arith.constant 0 : index
    %c0_62 = arith.constant 0 : index
    %86 = vector.load %arg11[%c6_60, %c0_61, %c0_62] : memref<8x32x156xf32, #tpu.memory_space<vmem>>, vector<1x32x156xf32>
    %87 = vector.shape_cast %86 : vector<1x32x156xf32> to vector<32x156xf32>
    %88 = vector.shape_cast %85 : vector<32x156xf32> to vector<1x32x156xf32>
    tpu.vector_store %arg11[%c6_60, %c0_61, %c0_62], %88 {strides = array<i32>} : memref<8x32x156xf32, #tpu.memory_space<vmem>>, vector<1x32x156xf32>,
    %c7 = arith.constant 7 : index
    %c0_63 = arith.constant 0 : index
    %c0_64 = arith.constant 0 : index
    %89 = vector.load %arg4[%c7, %c0_63, %c0_64] : memref<8x156x156xbf16, #tpu.memory_space<vmem>>, vector<1x156x156xbf16>
    %90 = vector.shape_cast %89 : vector<1x156x156xbf16> to vector<156x156xbf16>
    %cst_65 = arith.constant dense<0.000000e+00> : vector<32x156xf32>
    %91 = tpu.matmul %36, %90, %cst_65 {dimension_numbers = #tpu.dot_dimension_numbers<[1], [0], [0], [1], [0, 0, 1, 1], [], []>} : vector<32x156xbf16>, vector<156x156xbf16>, vector<32x156xf32> -> vector<32x156xf32>
    %92 = arith.addf %91, %39 : vector<32x156xf32>
    %c7_66 = arith.constant 7 : index
    %c0_67 = arith.constant 0 : index
    %c0_68 = arith.constant 0 : index
    %93 = vector.load %arg11[%c7_66, %c0_67, %c0_68] : memref<8x32x156xf32, #tpu.memory_space<vmem>>, vector<1x32x156xf32>
    %94 = vector.shape_cast %93 : vector<1x32x156xf32> to vector<32x156xf32>
    %95 = vector.shape_cast %92 : vector<32x156xf32> to vector<1x32x156xf32>
    tpu.vector_store %arg11[%c7_66, %c0_67, %c0_68], %95 {strides = array<i32>} : memref<8x32x156xf32, #tpu.memory_space<vmem>>, vector<1x32x156xf32>,
    %c0_69 = arith.constant 0 : index
    %c0_70 = arith.constant 0 : index
    %96 = vector.load %arg6[%c0_69, %c0_70] : memref<32x8xf32, #tpu.memory_space<vmem>>, vector<32x8xf32>
    %c0_71 = arith.constant 0 : index
    %c0_72 = arith.constant 0 : index
    %c0_73 = arith.constant 0 : index
    %97 = vector.load %arg11[%c0_71, %c0_72, %c0_73] : memref<8x32x156xf32, #tpu.memory_space<vmem>>, vector<1x32x156xf32>
    %98 = vector.shape_cast %97 : vector<1x32x156xf32> to vector<32x156xf32>
    %99 = vector.extract_strided_slice %98 {offsets = [0, 0], sizes = [16, 156], strides = [1, 1]} : vector<32x156xf32> to vector<16x156xf32>
    %100 = arith.negf %99 : vector<16x156xf32>
    %101 = math.exp %100 : vector<16x156xf32>
    %cst_74 = arith.constant 1.000000e+00 : f32
    %102 = vector.broadcast %cst_74 : f32 to vector<16x156xf32>
    %103 = arith.addf %102, %101 : vector<16x156xf32>
    %104 = arith.divf %102, %103 : vector<16x156xf32>
    %105 = vector.extract_strided_slice %98 {offsets = [16, 0], sizes = [8, 156], strides = [1, 1]} : vector<32x156xf32> to vector<8x156xf32>
    %106 = math.tanh %105 : vector<8x156xf32>
    %107 = vector.extract_strided_slice %98 {offsets = [24, 0], sizes = [8, 156], strides = [1, 1]} : vector<32x156xf32> to vector<8x156xf32>
    %108 = arith.negf %107 : vector<8x156xf32>
    %109 = math.exp %108 : vector<8x156xf32>
    %cst_75 = arith.constant 1.000000e+00 : f32
    %110 = vector.broadcast %cst_75 : f32 to vector<8x156xf32>
    %111 = arith.addf %110, %109 : vector<8x156xf32>
    %112 = arith.divf %110, %111 : vector<8x156xf32>
    %113 = vector.extract_strided_slice %104 {offsets = [0, 0], sizes = [8, 156], strides = [1, 1]} : vector<16x156xf32> to vector<8x156xf32>
    %114 = arith.mulf %113, %106 : vector<8x156xf32>
    %115 = math.tanh %114 : vector<8x156xf32>
    %116 = arith.mulf %112, %115 : vector<8x156xf32>
    %c1_76 = arith.constant 1 : index
    %c0_77 = arith.constant 0 : index
    %c0_78 = arith.constant 0 : index
    %117 = vector.load %arg11[%c1_76, %c0_77, %c0_78] : memref<8x32x156xf32, #tpu.memory_space<vmem>>, vector<1x32x156xf32>
    %118 = vector.shape_cast %117 : vector<1x32x156xf32> to vector<32x156xf32>
    %cst_79 = arith.constant dense<0.000000e+00> : vector<32x156xf32>
    %119 = tpu.matmul %96, %116, %cst_79 {dimension_numbers = #tpu.dot_dimension_numbers<[1], [0], [0], [1], [0, 0, 1, 1], [], []>} : vector<32x8xf32>, vector<8x156xf32>, vector<32x156xf32> -> vector<32x156xf32>
    %120 = arith.addf %118, %119 : vector<32x156xf32>
    %121 = vector.extract_strided_slice %120 {offsets = [0, 0], sizes = [16, 156], strides = [1, 1]} : vector<32x156xf32> to vector<16x156xf32>
    %122 = arith.negf %121 : vector<16x156xf32>
    %123 = math.exp %122 : vector<16x156xf32>
    %cst_80 = arith.constant 1.000000e+00 : f32
    %124 = vector.broadcast %cst_80 : f32 to vector<16x156xf32>
    %125 = arith.addf %124, %123 : vector<16x156xf32>
    %126 = arith.divf %124, %125 : vector<16x156xf32>
    %127 = vector.extract_strided_slice %120 {offsets = [16, 0], sizes = [8, 156], strides = [1, 1]} : vector<32x156xf32> to vector<8x156xf32>
    %128 = math.tanh %127 : vector<8x156xf32>
    %129 = vector.extract_strided_slice %120 {offsets = [24, 0], sizes = [8, 156], strides = [1, 1]} : vector<32x156xf32> to vector<8x156xf32>
    %130 = arith.negf %129 : vector<8x156xf32>
    %131 = math.exp %130 : vector<8x156xf32>
    %cst_81 = arith.constant 1.000000e+00 : f32
    %132 = vector.broadcast %cst_81 : f32 to vector<8x156xf32>
    %133 = arith.addf %132, %131 : vector<8x156xf32>
    %134 = arith.divf %132, %133 : vector<8x156xf32>
    %135 = vector.extract_strided_slice %126 {offsets = [0, 0], sizes = [8, 156], strides = [1, 1]} : vector<16x156xf32> to vector<8x156xf32>
    %136 = vector.extract_strided_slice %126 {offsets = [8, 0], sizes = [8, 156], strides = [1, 1]} : vector<16x156xf32> to vector<8x156xf32>
    %137 = arith.mulf %136, %114 : vector<8x156xf32>
    %138 = arith.mulf %135, %128 : vector<8x156xf32>
    %139 = arith.addf %137, %138 : vector<8x156xf32>
    %140 = math.tanh %139 : vector<8x156xf32>
    %141 = arith.mulf %134, %140 : vector<8x156xf32>
    %c2_82 = arith.constant 2 : index
    %c0_83 = arith.constant 0 : index
    %c0_84 = arith.constant 0 : index
    %142 = vector.load %arg11[%c2_82, %c0_83, %c0_84] : memref<8x32x156xf32, #tpu.memory_space<vmem>>, vector<1x32x156xf32>
    %143 = vector.shape_cast %142 : vector<1x32x156xf32> to vector<32x156xf32>
    %cst_85 = arith.constant dense<0.000000e+00> : vector<32x156xf32>
    %144 = tpu.matmul %96, %141, %cst_85 {dimension_numbers = #tpu.dot_dimension_numbers<[1], [0], [0], [1], [0, 0, 1, 1], [], []>} : vector<32x8xf32>, vector<8x156xf32>, vector<32x156xf32> -> vector<32x156xf32>
    %145 = arith.addf %143, %144 : vector<32x156xf32>
    %146 = vector.extract_strided_slice %145 {offsets = [0, 0], sizes = [16, 156], strides = [1, 1]} : vector<32x156xf32> to vector<16x156xf32>
    %147 = arith.negf %146 : vector<16x156xf32>
    %148 = math.exp %147 : vector<16x156xf32>
    %cst_86 = arith.constant 1.000000e+00 : f32
    %149 = vector.broadcast %cst_86 : f32 to vector<16x156xf32>
    %150 = arith.addf %149, %148 : vector<16x156xf32>
    %151 = arith.divf %149, %150 : vector<16x156xf32>
    %152 = vector.extract_strided_slice %145 {offsets = [16, 0], sizes = [8, 156], strides = [1, 1]} : vector<32x156xf32> to vector<8x156xf32>
    %153 = math.tanh %152 : vector<8x156xf32>
    %154 = vector.extract_strided_slice %145 {offsets = [24, 0], sizes = [8, 156], strides = [1, 1]} : vector<32x156xf32> to vector<8x156xf32>
    %155 = arith.negf %154 : vector<8x156xf32>
    %156 = math.exp %155 : vector<8x156xf32>
    %cst_87 = arith.constant 1.000000e+00 : f32
    %157 = vector.broadcast %cst_87 : f32 to vector<8x156xf32>
    %158 = arith.addf %157, %156 : vector<8x156xf32>
    %159 = arith.divf %157, %158 : vector<8x156xf32>
    %160 = vector.extract_strided_slice %151 {offsets = [0, 0], sizes = [8, 156], strides = [1, 1]} : vector<16x156xf32> to vector<8x156xf32>
    %161 = vector.extract_strided_slice %151 {offsets = [8, 0], sizes = [8, 156], strides = [1, 1]} : vector<16x156xf32> to vector<8x156xf32>
    %162 = arith.mulf %161, %139 : vector<8x156xf32>
    %163 = arith.mulf %160, %153 : vector<8x156xf32>
    %164 = arith.addf %162, %163 : vector<8x156xf32>
    %165 = math.tanh %164 : vector<8x156xf32>
    %166 = arith.mulf %159, %165 : vector<8x156xf32>
    %c3_88 = arith.constant 3 : index
    %c0_89 = arith.constant 0 : index
    %c0_90 = arith.constant 0 : index
    %167 = vector.load %arg11[%c3_88, %c0_89, %c0_90] : memref<8x32x156xf32, #tpu.memory_space<vmem>>, vector<1x32x156xf32>
    %168 = vector.shape_cast %167 : vector<1x32x156xf32> to vector<32x156xf32>
    %cst_91 = arith.constant dense<0.000000e+00> : vector<32x156xf32>
    %169 = tpu.matmul %96, %166, %cst_91 {dimension_numbers = #tpu.dot_dimension_numbers<[1], [0], [0], [1], [0, 0, 1, 1], [], []>} : vector<32x8xf32>, vector<8x156xf32>, vector<32x156xf32> -> vector<32x156xf32>
    %170 = arith.addf %168, %169 : vector<32x156xf32>
    %171 = vector.extract_strided_slice %170 {offsets = [0, 0], sizes = [16, 156], strides = [1, 1]} : vector<32x156xf32> to vector<16x156xf32>
    %172 = arith.negf %171 : vector<16x156xf32>
    %173 = math.exp %172 : vector<16x156xf32>
    %cst_92 = arith.constant 1.000000e+00 : f32
    %174 = vector.broadcast %cst_92 : f32 to vector<16x156xf32>
    %175 = arith.addf %174, %173 : vector<16x156xf32>
    %176 = arith.divf %174, %175 : vector<16x156xf32>
    %177 = vector.extract_strided_slice %170 {offsets = [16, 0], sizes = [8, 156], strides = [1, 1]} : vector<32x156xf32> to vector<8x156xf32>
    %178 = math.tanh %177 : vector<8x156xf32>
    %179 = vector.extract_strided_slice %170 {offsets = [24, 0], sizes = [8, 156], strides = [1, 1]} : vector<32x156xf32> to vector<8x156xf32>
    %180 = arith.negf %179 : vector<8x156xf32>
    %181 = math.exp %180 : vector<8x156xf32>
    %cst_93 = arith.constant 1.000000e+00 : f32
    %182 = vector.broadcast %cst_93 : f32 to vector<8x156xf32>
    %183 = arith.addf %182, %181 : vector<8x156xf32>
    %184 = arith.divf %182, %183 : vector<8x156xf32>
    %185 = vector.extract_strided_slice %176 {offsets = [0, 0], sizes = [8, 156], strides = [1, 1]} : vector<16x156xf32> to vector<8x156xf32>
    %186 = vector.extract_strided_slice %176 {offsets = [8, 0], sizes = [8, 156], strides = [1, 1]} : vector<16x156xf32> to vector<8x156xf32>
    %187 = arith.mulf %186, %164 : vector<8x156xf32>
    %188 = arith.mulf %185, %178 : vector<8x156xf32>
    %189 = arith.addf %187, %188 : vector<8x156xf32>
    %190 = math.tanh %189 : vector<8x156xf32>
    %191 = arith.mulf %184, %190 : vector<8x156xf32>
    %c4_94 = arith.constant 4 : index
    %c0_95 = arith.constant 0 : index
    %c0_96 = arith.constant 0 : index
    %192 = vector.load %arg11[%c4_94, %c0_95, %c0_96] : memref<8x32x156xf32, #tpu.memory_space<vmem>>, vector<1x32x156xf32>
    %193 = vector.shape_cast %192 : vector<1x32x156xf32> to vector<32x156xf32>
    %cst_97 = arith.constant dense<0.000000e+00> : vector<32x156xf32>
    %194 = tpu.matmul %96, %191, %cst_97 {dimension_numbers = #tpu.dot_dimension_numbers<[1], [0], [0], [1], [0, 0, 1, 1], [], []>} : vector<32x8xf32>, vector<8x156xf32>, vector<32x156xf32> -> vector<32x156xf32>
    %195 = arith.addf %193, %194 : vector<32x156xf32>
    %196 = vector.extract_strided_slice %195 {offsets = [0, 0], sizes = [16, 156], strides = [1, 1]} : vector<32x156xf32> to vector<16x156xf32>
    %197 = arith.negf %196 : vector<16x156xf32>
    %198 = math.exp %197 : vector<16x156xf32>
    %cst_98 = arith.constant 1.000000e+00 : f32
    %199 = vector.broadcast %cst_98 : f32 to vector<16x156xf32>
    %200 = arith.addf %199, %198 : vector<16x156xf32>
    %201 = arith.divf %199, %200 : vector<16x156xf32>
    %202 = vector.extract_strided_slice %195 {offsets = [16, 0], sizes = [8, 156], strides = [1, 1]} : vector<32x156xf32> to vector<8x156xf32>
    %203 = math.tanh %202 : vector<8x156xf32>
    %204 = vector.extract_strided_slice %195 {offsets = [24, 0], sizes = [8, 156], strides = [1, 1]} : vector<32x156xf32> to vector<8x156xf32>
    %205 = arith.negf %204 : vector<8x156xf32>
    %206 = math.exp %205 : vector<8x156xf32>
    %cst_99 = arith.constant 1.000000e+00 : f32
    %207 = vector.broadcast %cst_99 : f32 to vector<8x156xf32>
    %208 = arith.addf %207, %206 : vector<8x156xf32>
    %209 = arith.divf %207, %208 : vector<8x156xf32>
    %210 = vector.extract_strided_slice %201 {offsets = [0, 0], sizes = [8, 156], strides = [1, 1]} : vector<16x156xf32> to vector<8x156xf32>
    %211 = vector.extract_strided_slice %201 {offsets = [8, 0], sizes = [8, 156], strides = [1, 1]} : vector<16x156xf32> to vector<8x156xf32>
    %212 = arith.mulf %211, %189 : vector<8x156xf32>
    %213 = arith.mulf %210, %203 : vector<8x156xf32>
    %214 = arith.addf %212, %213 : vector<8x156xf32>
    %215 = math.tanh %214 : vector<8x156xf32>
    %216 = arith.mulf %209, %215 : vector<8x156xf32>
    %c5_100 = arith.constant 5 : index
    %c0_101 = arith.constant 0 : index
    %c0_102 = arith.constant 0 : index
    %217 = vector.load %arg11[%c5_100, %c0_101, %c0_102] : memref<8x32x156xf32, #tpu.memory_space<vmem>>, vector<1x32x156xf32>
    %218 = vector.shape_cast %217 : vector<1x32x156xf32> to vector<32x156xf32>
    %cst_103 = arith.constant dense<0.000000e+00> : vector<32x156xf32>
    %219 = tpu.matmul %96, %216, %cst_103 {dimension_numbers = #tpu.dot_dimension_numbers<[1], [0], [0], [1], [0, 0, 1, 1], [], []>} : vector<32x8xf32>, vector<8x156xf32>, vector<32x156xf32> -> vector<32x156xf32>
    %220 = arith.addf %218, %219 : vector<32x156xf32>
    %221 = vector.extract_strided_slice %220 {offsets = [0, 0], sizes = [16, 156], strides = [1, 1]} : vector<32x156xf32> to vector<16x156xf32>
    %222 = arith.negf %221 : vector<16x156xf32>
    %223 = math.exp %222 : vector<16x156xf32>
    %cst_104 = arith.constant 1.000000e+00 : f32
    %224 = vector.broadcast %cst_104 : f32 to vector<16x156xf32>
    %225 = arith.addf %224, %223 : vector<16x156xf32>
    %226 = arith.divf %224, %225 : vector<16x156xf32>
    %227 = vector.extract_strided_slice %220 {offsets = [16, 0], sizes = [8, 156], strides = [1, 1]} : vector<32x156xf32> to vector<8x156xf32>
    %228 = math.tanh %227 : vector<8x156xf32>
    %229 = vector.extract_strided_slice %220 {offsets = [24, 0], sizes = [8, 156], strides = [1, 1]} : vector<32x156xf32> to vector<8x156xf32>
    %230 = arith.negf %229 : vector<8x156xf32>
    %231 = math.exp %230 : vector<8x156xf32>
    %cst_105 = arith.constant 1.000000e+00 : f32
    %232 = vector.broadcast %cst_105 : f32 to vector<8x156xf32>
    %233 = arith.addf %232, %231 : vector<8x156xf32>
    %234 = arith.divf %232, %233 : vector<8x156xf32>
    %235 = vector.extract_strided_slice %226 {offsets = [0, 0], sizes = [8, 156], strides = [1, 1]} : vector<16x156xf32> to vector<8x156xf32>
    %236 = vector.extract_strided_slice %226 {offsets = [8, 0], sizes = [8, 156], strides = [1, 1]} : vector<16x156xf32> to vector<8x156xf32>
    %237 = arith.mulf %236, %214 : vector<8x156xf32>
    %238 = arith.mulf %235, %228 : vector<8x156xf32>
    %239 = arith.addf %237, %238 : vector<8x156xf32>
    %240 = math.tanh %239 : vector<8x156xf32>
    %241 = arith.mulf %234, %240 : vector<8x156xf32>
    %c6_106 = arith.constant 6 : index
    %c0_107 = arith.constant 0 : index
    %c0_108 = arith.constant 0 : index
    %242 = vector.load %arg11[%c6_106, %c0_107, %c0_108] : memref<8x32x156xf32, #tpu.memory_space<vmem>>, vector<1x32x156xf32>
    %243 = vector.shape_cast %242 : vector<1x32x156xf32> to vector<32x156xf32>
    %cst_109 = arith.constant dense<0.000000e+00> : vector<32x156xf32>
    %244 = tpu.matmul %96, %241, %cst_109 {dimension_numbers = #tpu.dot_dimension_numbers<[1], [0], [0], [1], [0, 0, 1, 1], [], []>} : vector<32x8xf32>, vector<8x156xf32>, vector<32x156xf32> -> vector<32x156xf32>
    %245 = arith.addf %243, %244 : vector<32x156xf32>
    %246 = vector.extract_strided_slice %245 {offsets = [0, 0], sizes = [16, 156], strides = [1, 1]} : vector<32x156xf32> to vector<16x156xf32>
    %247 = arith.negf %246 : vector<16x156xf32>
    %248 = math.exp %247 : vector<16x156xf32>
    %cst_110 = arith.constant 1.000000e+00 : f32
    %249 = vector.broadcast %cst_110 : f32 to vector<16x156xf32>
    %250 = arith.addf %249, %248 : vector<16x156xf32>
    %251 = arith.divf %249, %250 : vector<16x156xf32>
    %252 = vector.extract_strided_slice %245 {offsets = [16, 0], sizes = [8, 156], strides = [1, 1]} : vector<32x156xf32> to vector<8x156xf32>
    %253 = math.tanh %252 : vector<8x156xf32>
    %254 = vector.extract_strided_slice %245 {offsets = [24, 0], sizes = [8, 156], strides = [1, 1]} : vector<32x156xf32> to vector<8x156xf32>
    %255 = arith.negf %254 : vector<8x156xf32>
    %256 = math.exp %255 : vector<8x156xf32>
    %cst_111 = arith.constant 1.000000e+00 : f32
    %257 = vector.broadcast %cst_111 : f32 to vector<8x156xf32>
    %258 = arith.addf %257, %256 : vector<8x156xf32>
    %259 = arith.divf %257, %258 : vector<8x156xf32>
    %260 = vector.extract_strided_slice %251 {offsets = [0, 0], sizes = [8, 156], strides = [1, 1]} : vector<16x156xf32> to vector<8x156xf32>
    %261 = vector.extract_strided_slice %251 {offsets = [8, 0], sizes = [8, 156], strides = [1, 1]} : vector<16x156xf32> to vector<8x156xf32>
    %262 = arith.mulf %261, %239 : vector<8x156xf32>
    %263 = arith.mulf %260, %253 : vector<8x156xf32>
    %264 = arith.addf %262, %263 : vector<8x156xf32>
    %265 = math.tanh %264 : vector<8x156xf32>
    %266 = arith.mulf %259, %265 : vector<8x156xf32>
    %c7_112 = arith.constant 7 : index
    %c0_113 = arith.constant 0 : index
    %c0_114 = arith.constant 0 : index
    %267 = vector.load %arg11[%c7_112, %c0_113, %c0_114] : memref<8x32x156xf32, #tpu.memory_space<vmem>>, vector<1x32x156xf32>
    %268 = vector.shape_cast %267 : vector<1x32x156xf32> to vector<32x156xf32>
    %cst_115 = arith.constant dense<0.000000e+00> : vector<32x156xf32>
    %269 = tpu.matmul %96, %266, %cst_115 {dimension_numbers = #tpu.dot_dimension_numbers<[1], [0], [0], [1], [0, 0, 1, 1], [], []>} : vector<32x8xf32>, vector<8x156xf32>, vector<32x156xf32> -> vector<32x156xf32>
    %270 = arith.addf %268, %269 : vector<32x156xf32>
    %271 = vector.extract_strided_slice %270 {offsets = [0, 0], sizes = [16, 156], strides = [1, 1]} : vector<32x156xf32> to vector<16x156xf32>
    %272 = arith.negf %271 : vector<16x156xf32>
    %273 = math.exp %272 : vector<16x156xf32>
    %cst_116 = arith.constant 1.000000e+00 : f32
    %274 = vector.broadcast %cst_116 : f32 to vector<16x156xf32>
    %275 = arith.addf %274, %273 : vector<16x156xf32>
    %276 = arith.divf %274, %275 : vector<16x156xf32>
    %277 = vector.extract_strided_slice %270 {offsets = [16, 0], sizes = [8, 156], strides = [1, 1]} : vector<32x156xf32> to vector<8x156xf32>
    %278 = math.tanh %277 : vector<8x156xf32>
    %279 = vector.extract_strided_slice %270 {offsets = [24, 0], sizes = [8, 156], strides = [1, 1]} : vector<32x156xf32> to vector<8x156xf32>
    %280 = arith.negf %279 : vector<8x156xf32>
    %281 = math.exp %280 : vector<8x156xf32>
    %cst_117 = arith.constant 1.000000e+00 : f32
    %282 = vector.broadcast %cst_117 : f32 to vector<8x156xf32>
    %283 = arith.addf %282, %281 : vector<8x156xf32>
    %284 = arith.divf %282, %283 : vector<8x156xf32>
    %285 = vector.extract_strided_slice %276 {offsets = [0, 0], sizes = [8, 156], strides = [1, 1]} : vector<16x156xf32> to vector<8x156xf32>
    %286 = vector.extract_strided_slice %276 {offsets = [8, 0], sizes = [8, 156], strides = [1, 1]} : vector<16x156xf32> to vector<8x156xf32>
    %287 = arith.mulf %286, %264 : vector<8x156xf32>
    %288 = arith.mulf %285, %278 : vector<8x156xf32>
    %289 = arith.addf %287, %288 : vector<8x156xf32>
    %290 = math.tanh %289 : vector<8x156xf32>
    %291 = arith.mulf %284, %290 : vector<8x156xf32>
    %c0_118 = arith.constant 0 : index
    %c0_119 = arith.constant 0 : index
    %292 = vector.load %arg8[%c0_118, %c0_119] : memref<8x156xf32, #tpu.memory_space<vmem>>, vector<8x156xf32>
    %cst_120 = arith.constant dense<0.000000e+00> : vector<156x156xf32>
    %293 = tpu.matmul %291, %292, %cst_120 {dimension_numbers = #tpu.dot_dimension_numbers<[0], [0], [1], [1], [0, 1, 1, 1], [], []>} : vector<8x156xf32>, vector<8x156xf32>, vector<156x156xf32> -> vector<156x156xf32>
    %c0_121 = arith.constant 0 : index
    %c0_122 = arith.constant 0 : index
    %294 = vector.load %arg9[%c0_121, %c0_122] : memref<1x156xf32, #tpu.memory_space<vmem>>, vector<1x156xf32>
    %295 = vector.broadcast %294 : vector<1x156xf32> to vector<156x156xf32>
    %296 = arith.addf %293, %295 : vector<156x156xf32>
    %c0_123 = arith.constant 0 : index
    %c0_124 = arith.constant 0 : index
    %297 = vector.load %arg10[%c0_123, %c0_124] : memref<156x156xf32, #tpu.memory_space<vmem>>, vector<156x156xf32>
    tpu.vector_store %arg10[%c0_123, %c0_124], %296 {strides = array<i32>} : memref<156x156xf32, #tpu.memory_space<vmem>>, vector<156x156xf32>,
    return
  }
}

</mosaic_0001>

<llo_original>
// kernel: gat_lstm_forward.1
$region0: #{gat_lstm_forward.1}
  #allocation0 [shape = 'u32[]', space=smem, size = 0x4, offset = 0x4, fixed_abs, tag = 'smem constant byte address 0x4 - core index']
  #allocation1 [shape = 'u32[144,128]{1,0:T(1,128)}', space=vmem, size = 0x12000, scoped, tag = 'internal scratch']
  #allocation2 [shape = 'f32[8,32,156]{2,1,0:T(8,128)}', space=vmem, size = 0x40000, scoped, tag = 'scratch operand']
  %s0 = inlined_call_operand.vmem [shape: f32[156,16], index: 0, kind: input, shape index: {}]
  %s1 = inlined_call_operand.vmem [shape: f32[16,8], index: 1, kind: input, shape index: {}]
  %s2 = inlined_call_operand.vmem [shape: f32[8,1], index: 2, kind: input, shape index: {}]
  %s3 = inlined_call_operand.vmem [shape: f32[1,8], index: 3, kind: input, shape index: {}]
  %s4 = inlined_call_operand.vmem [shape: bf16[8,156,156], index: 4, kind: input, shape index: {}]
  %s5 = inlined_call_operand.vmem [shape: f32[32,156], index: 5, kind: input, shape index: {}]
  %s6 = inlined_call_operand.vmem [shape: f32[32,8], index: 6, kind: input, shape index: {}]
  %s7 = inlined_call_operand.vmem [shape: f32[32,1], index: 7, kind: input, shape index: {}]
  %s8 = inlined_call_operand.vmem [shape: f32[8,156], index: 8, kind: input, shape index: {}]
  %s9 = inlined_call_operand.vmem [shape: f32[1,156], index: 9, kind: input, shape index: {}]
  %s10 = inlined_call_operand.hbm [shape: f32[156,156], index: 10, kind: output, shape index: {}]
  %s11 = sld [smem:[#allocation0]]
  $region50: #{gat_lstm_forward.1} parent=0
    _
  %s13 = ssub.s32 1, %s11
  %s14 = scalar_select 0, %s13, %s11
  $region1: #{gat_lstm_forward.1} parent=0
    #allocation3 [shape = 'u8[163840]{0}', space=vmem, size = 0x28000, scoped, tag = 'output window, operand 0, single buffered']
    #allocation4 [shape = 's32[1]{0}', space=sflag, size = 0x4, scoped, tag = 'scoped memory for gat_lstm_forward.1']
    %15 = vsyncpa [#allocation4], 0
    // Predicated region
    $region2: #{gat_lstm_forward.1} parent=1 // pred_check
      _
    $region3: #{gat_lstm_forward.1} parent=1 // pred_check_branch
      %17 = sbr.rel (0) target = $region5
    $region4: #{gat_lstm_forward.1} parent=1 // pred_region
      _
    $region5: #{gat_lstm_forward.1} parent=1 // pred_fallthru
      _
    // Predicated region
    $region6: #{gat_lstm_forward.1} parent=1 // pred_check
      _
    $region7: #{gat_lstm_forward.1} parent=1 // pred_check_branch
      %19 = sbr.rel (0) target = $region9
    $region8: #{gat_lstm_forward.1} parent=1 // pred_region
      _
    $region9: #{gat_lstm_forward.1} parent=1 // pred_fallthru
      _
    // Predicated region
    $region10: #{gat_lstm_forward.1} parent=1 // pred_check
      _
    $region11: #{gat_lstm_forward.1} parent=1 // pred_check_branch
      %21 = sbr.rel (0) target = $region13
    $region12: #{gat_lstm_forward.1} parent=1 // pred_region
      _
    $region13: #{gat_lstm_forward.1} parent=1 // pred_fallthru
      _
    // Predicated region
    $region14: #{gat_lstm_forward.1} parent=1 // pred_check
      _
    $region15: #{gat_lstm_forward.1} parent=1 // pred_check_branch
      %23 = sbr.rel (0) target = $region17
    $region16: #{gat_lstm_forward.1} parent=1 // pred_region
      _
    $region17: #{gat_lstm_forward.1} parent=1 // pred_fallthru
      _
    // Predicated region
    $region18: #{gat_lstm_forward.1} parent=1 // pred_check
      _
    $region19: #{gat_lstm_forward.1} parent=1 // pred_check_branch
      %25 = sbr.rel (0) target = $region21
    $region20: #{gat_lstm_forward.1} parent=1 // pred_region
      _
    $region21: #{gat_lstm_forward.1} parent=1 // pred_fallthru
      _
    // Predicated region
    $region22: #{gat_lstm_forward.1} parent=1 // pred_check
      _
    $region23: #{gat_lstm_forward.1} parent=1 // pred_check_branch
      %27 = sbr.rel (0) target = $region25
    $region24: #{gat_lstm_forward.1} parent=1 // pred_region
      _
    $region25: #{gat_lstm_forward.1} parent=1 // pred_fallthru
      _
    // Predicated region
    $region26: #{gat_lstm_forward.1} parent=1 // pred_check
      _
    $region27: #{gat_lstm_forward.1} parent=1 // pred_check_branch
      %29 = sbr.rel (0) target = $region29
    $region28: #{gat_lstm_forward.1} parent=1 // pred_region
      _
    $region29: #{gat_lstm_forward.1} parent=1 // pred_fallthru
      _
    // Predicated region
    $region30: #{gat_lstm_forward.1} parent=1 // pred_check
      _
    $region31: #{gat_lstm_forward.1} parent=1 // pred_check_branch
      %31 = sbr.rel (0) target = $region33
    $region32: #{gat_lstm_forward.1} parent=1 // pred_region
      _
    $region33: #{gat_lstm_forward.1} parent=1 // pred_fallthru
      _
    // Predicated region
    $region34: #{gat_lstm_forward.1} parent=1 // pred_check
      _
    $region35: #{gat_lstm_forward.1} parent=1 // pred_check_branch
      %33 = sbr.rel (0) target = $region37
    $region36: #{gat_lstm_forward.1} parent=1 // pred_region
      _
    $region37: #{gat_lstm_forward.1} parent=1 // pred_fallthru
      _
    // Predicated region
    $region38: #{gat_lstm_forward.1} parent=1 // pred_check
      _
    $region39: #{gat_lstm_forward.1} parent=1 // pred_check_branch
      %35 = sbr.rel (0) target = $region41
    $region40: #{gat_lstm_forward.1} parent=1 // pred_region
      _
    $region41: #{gat_lstm_forward.1} parent=1 // pred_fallthru
      _
    %v37 = vld [vmem:[%s0] sm:$0xff]
    %v38 = vld [vmem:[%s0 + $0x8] sm:$0xff]
    %v39 = vld [vmem:[%s0 + $0x10] sm:$0xff]
    %v40 = vld [vmem:[%s0 + $0x18] sm:$0xff]
    %v41 = vld [vmem:[%s0 + $0x20] sm:$0xff]
    %v42 = vld [vmem:[%s0 + $0x28] sm:$0xff]
    %v43 = vld [vmem:[%s0 + $0x30] sm:$0xff]
    %v44 = vld [vmem:[%s0 + $0x38] sm:$0xff]
    %v45 = vld [vmem:[%s0 + $0x40] sm:$0xff]
    %v46 = vld [vmem:[%s0 + $0x48] sm:$0xff]
    %v47 = vld [vmem:[%s0 + $0x50] sm:$0xff]
    %v48 = vld [vmem:[%s0 + $0x58] sm:$0xff]
    %v49 = vld [vmem:[%s0 + $0x60] sm:$0xff]
    %v50 = vld [vmem:[%s0 + $0x68] sm:$0xff]
    %v51 = vld [vmem:[%s0 + $0x70] sm:$0xff]
    %v52 = vld [vmem:[%s0 + $0x78] sm:$0xff]
    %v53 = vld [vmem:[%s0 + $0x80] sm:$0xff]
    %v54 = vld [vmem:[%s0 + $0x88] sm:$0xff]
    %v55 = vld [vmem:[%s0 + $0x90] sm:$0xff]
    %v56 = vld [vmem:[%s0 + $0x98] sm:$0xf]
    %v57 = vld [vmem:[%s1] sm:$0xff]
    %v58 = vld [vmem:[%s1 + $0x8] sm:$0xff]
    %vm59 = vcmask 130048
    %v61 = vsel %vm59, %v37, 0
    %v64 = vsel %vm59, %v38, 0
    %v67 = vsel %vm59, %v39, 0
    %v70 = vsel %vm59, %v40, 0
    %v73 = vsel %vm59, %v41, 0
    %v76 = vsel %vm59, %v42, 0
    %v79 = vsel %vm59, %v43, 0
    %v82 = vsel %vm59, %v44, 0
    %v85 = vsel %vm59, %v45, 0
    %v88 = vsel %vm59, %v46, 0
    %v91 = vsel %vm59, %v47, 0
    %v94 = vsel %vm59, %v48, 0
    %v97 = vsel %vm59, %v49, 0
    %v100 = vsel %vm59, %v50, 0
    %v103 = vsel %vm59, %v51, 0
    %v106 = vsel %vm59, %v52, 0
    %v109 = vsel %vm59, %v53, 0
    %v112 = vsel %vm59, %v54, 0
    %v115 = vsel %vm59, %v55, 0
    %v118 = vsel %vm59, %v56, 0
    %120 = vmatprep.subr.mxu0 0.0
    %121 = vmatpush1.msra.mxu0 0.0
    %122 = vmatprep.subr.mxu0 0.0
    %123 = vmatpush1.msra.mxu0 0.0
    %124 = vmatprep.subr.mxu0 0.0
    %125 = vmatpush1.msra.mxu0 0.0
    %126 = vmatprep.subr.mxu0 0.0
    %127 = vmatpush1.msra.mxu0 0.0
    %128 = vmatprep.subr.mxu0 0.0
    %129 = vmatpush1.msra.mxu0 0.0
    %130 = vmatprep.subr.mxu0 0.0
    %131 = vmatpush1.msra.mxu0 0.0
    %132 = vmatprep.subr.mxu0 0.0
    %133 = vmatpush1.msra.mxu0 0.0
    %134 = vmatprep.subr.mxu0 0.0
    %135 = vmatpush1.msra.mxu0 0.0
    %136 = vmatprep.subr.mxu0 0.0
    %137 = vmatpush1.msra.mxu0 0.0
    %138 = vmatprep.subr.mxu0 0.0
    %139 = vmatpush1.msra.mxu0 0.0
    %140 = vmatprep.subr.mxu0 0.0
    %141 = vmatpush1.msra.mxu0 0.0
    %142 = vmatprep.subr.mxu0 0.0
    %143 = vmatpush1.msra.mxu0 0.0
    %144 = vmatprep.subr.mxu0 0.0
    %145 = vmatpush1.msra.mxu0 0.0
    %146 = vmatprep.subr.mxu0 0.0
    %147 = vmatpush1.msra.mxu0 0.0
    %148 = vmatprep.subr.mxu0 0.0
    %149 = vmatpush1.msra.mxu0 %v58
    %150 = vmatprep.subr.mxu0 0.0
    %151 = vmatpush1.msra.mxu0 %v57
    %152 = vmatprep.subr.mxu0 0.0
    %153 = vmatpush2.msra.mxu0 0.0
    %154 = vmatprep.subr.mxu0 0.0
    %155 = vmatpush2.msra.mxu0 0.0
    %156 = vmatprep.subr.mxu0 0.0
    %157 = vmatpush2.msra.mxu0 0.0
    %158 = vmatprep.subr.mxu0 0.0
    %159 = vmatpush2.msra.mxu0 0.0
    %160 = vmatprep.subr.mxu0 0.0
    %161 = vmatpush2.msra.mxu0 0.0
    %162 = vmatprep.subr.mxu0 0.0
    %163 = vmatpush2.msra.mxu0 0.0
    %164 = vmatprep.subr.mxu0 0.0
    %165 = vmatpush2.msra.mxu0 0.0
    %166 = vmatprep.subr.mxu0 0.0
    %167 = vmatpush2.msra.mxu0 0.0
    %168 = vmatprep.subr.mxu0 0.0
    %169 = vmatpush2.msra.mxu0 0.0
    %170 = vmatprep.subr.mxu0 0.0
    %171 = vmatpush2.msra.mxu0 0.0
    %172 = vmatprep.subr.mxu0 0.0
    %173 = vmatpush2.msra.mxu0 0.0
    %174 = vmatprep.subr.mxu0 0.0
    %175 = vmatpush2.msra.mxu0 0.0
    %176 = vmatprep.subr.mxu0 0.0
    %177 = vmatpush2.msra.mxu0 0.0
    %178 = vmatprep.subr.mxu0 0.0
    %179 = vmatpush2.msra.mxu0 0.0
    %180 = vmatprep.subr.mxu0 0.0
    %181 = vmatpush2.msra.mxu0 0.0
    %182 = vmatprep.subr.mxu0 0.0
    %183 = vmatpush2.msra.mxu0 0.0
    %184 = vmatprep.mubr.f32.mxu0 0.0
    %185 = vmatmul.mubr.f32.gmra.mxu0 %v61
    %v186 = vpop.f32.mrf.mxu0
    %v187 = vadd.f32 0.0, %v186
    %v188 = vpop.f32.mrf.mxu0
    %189 = vmatprep.mubr.f32.mxu0 0.0
    %190 = vmatmul.mubr.f32.gmra.mxu0 %v64
    %v191 = vpop.f32.mrf.mxu0
    %v192 = vadd.f32 0.0, %v191
    %v193 = vpop.f32.mrf.mxu0
    %194 = vmatprep.mubr.f32.mxu0 0.0
    %195 = vmatmul.mubr.f32.gmra.mxu0 %v67
    %v196 = vpop.f32.mrf.mxu0
    %v197 = vadd.f32 0.0, %v196
    %v198 = vpop.f32.mrf.mxu0
    %199 = vmatprep.mubr.f32.mxu0 0.0
    %200 = vmatmul.mubr.f32.gmra.mxu0 %v70
    %v201 = vpop.f32.mrf.mxu0
    %v202 = vadd.f32 0.0, %v201
    %v203 = vpop.f32.mrf.mxu0
    %204 = vmatprep.mubr.f32.mxu0 0.0
    %205 = vmatmul.mubr.f32.gmra.mxu0 %v73
    %v206 = vpop.f32.mrf.mxu0
    %v207 = vadd.f32 0.0, %v206
    %v208 = vpop.f32.mrf.mxu0
    %209 = vmatprep.mubr.f32.mxu0 0.0
    %210 = vmatmul.mubr.f32.gmra.mxu0 %v76
    %v211 = vpop.f32.mrf.mxu0
    %v212 = vadd.f32 0.0, %v211
    %v213 = vpop.f32.mrf.mxu0
    %214 = vmatprep.mubr.f32.mxu0 0.0
    %215 = vmatmul.mubr.f32.gmra.mxu0 %v79
    %v216 = vpop.f32.mrf.mxu0
    %v217 = vadd.f32 0.0, %v216
    %v218 = vpop.f32.mrf.mxu0
    %219 = vmatprep.mubr.f32.mxu0 0.0
    %220 = vmatmul.mubr.f32.gmra.mxu0 %v82
    %v221 = vpop.f32.mrf.mxu0
    %v222 = vadd.f32 0.0, %v221
    %v223 = vpop.f32.mrf.mxu0
    %224 = vmatprep.mubr.f32.mxu0 0.0
    %225 = vmatmul.mubr.f32.gmra.mxu0 %v85
    %v226 = vpop.f32.mrf.mxu0
    %v227 = vadd.f32 0.0, %v226
    %v228 = vpop.f32.mrf.mxu0
    %229 = vmatprep.mubr.f32.mxu0 0.0
    %230 = vmatmul.mubr.f32.gmra.mxu0 %v88
    %v231 = vpop.f32.mrf.mxu0
    %v232 = vadd.f32 0.0, %v231
    %v233 = vpop.f32.mrf.mxu0
    %234 = vmatprep.mubr.f32.mxu0 0.0
    %235 = vmatmul.mubr.f32.gmra.mxu0 %v91
    %v236 = vpop.f32.mrf.mxu0
    %v237 = vadd.f32 0.0, %v236
    %v238 = vpop.f32.mrf.mxu0
    %239 = vmatprep.mubr.f32.mxu0 0.0
    %240 = vmatmul.mubr.f32.gmra.mxu0 %v94
    %v241 = vpop.f32.mrf.mxu0
    %v242 = vadd.f32 0.0, %v241
    %v243 = vpop.f32.mrf.mxu0
    %244 = vmatprep.mubr.f32.mxu0 0.0
    %245 = vmatmul.mubr.f32.gmra.mxu0 %v97
    %v246 = vpop.f32.mrf.mxu0
    %v247 = vadd.f32 0.0, %v246
    %v248 = vpop.f32.mrf.mxu0
    %249 = vmatprep.mubr.f32.mxu0 0.0
    %250 = vmatmul.mubr.f32.gmra.mxu0 %v100
    %v251 = vpop.f32.mrf.mxu0
    %v252 = vadd.f32 0.0, %v251
    %v253 = vpop.f32.mrf.mxu0
    %254 = vmatprep.mubr.f32.mxu0 0.0
    %255 = vmatmul.mubr.f32.gmra.mxu0 %v103
    %v256 = vpop.f32.mrf.mxu0
    %v257 = vadd.f32 0.0, %v256
    %v258 = vpop.f32.mrf.mxu0
    %259 = vmatprep.mubr.f32.mxu0 0.0
    %260 = vmatmul.mubr.f32.gmra.mxu0 %v106
    %v261 = vpop.f32.mrf.mxu0
    %v262 = vadd.f32 0.0, %v261
    %v263 = vpop.f32.mrf.mxu0
    %264 = vmatprep.mubr.f32.mxu0 0.0
    %265 = vmatmul.mubr.f32.gmra.mxu0 %v109
    %v266 = vpop.f32.mrf.mxu0
    %v267 = vadd.f32 0.0, %v266
    %v268 = vpop.f32.mrf.mxu0
    %269 = vmatprep.mubr.f32.mxu0 0.0
    %270 = vmatmul.mubr.f32.gmra.mxu0 %v112
    %v271 = vpop.f32.mrf.mxu0
    %v272 = vadd.f32 0.0, %v271
    %v273 = vpop.f32.mrf.mxu0
    %274 = vmatprep.mubr.f32.mxu0 0.0
    %275 = vmatmul.mubr.f32.gmra.mxu0 %v115
    %v276 = vpop.f32.mrf.mxu0
    %v277 = vadd.f32 0.0, %v276
    %v278 = vpop.f32.mrf.mxu0
    %279 = vmatprep.mubr.f32.mxu0 0.0
    %280 = vmatmul.mubr.f32.gmra.mxu0 %v118
    %v281 = vpop.f32.mrf.mxu0
    %v282 = vadd.f32 0.0, %v281
    %v283 = vpop.f32.mrf.mxu0
    %284 = vdwg.mxu0
    %v285 = vld [vmem:[%s2] sm:$0xff]
    %vm286 = vcmask 64512
    %v288 = vsel %vm286, %v187, 0
    %v291 = vsel %vm286, %v192, 0
    %v294 = vsel %vm286, %v197, 0
    %v297 = vsel %vm286, %v202, 0
    %v300 = vsel %vm286, %v207, 0
    %v303 = vsel %vm286, %v212, 0
    %v306 = vsel %vm286, %v217, 0
    %v309 = vsel %vm286, %v222, 0
    %v312 = vsel %vm286, %v227, 0
    %v315 = vsel %vm286, %v232, 0
    %v318 = vsel %vm286, %v237, 0
    %v321 = vsel %vm286, %v242, 0
    %v324 = vsel %vm286, %v247, 0
    %v327 = vsel %vm286, %v252, 0
    %v330 = vsel %vm286, %v257, 0
    %v333 = vsel %vm286, %v262, 0
    %v336 = vsel %vm286, %v267, 0
    %v339 = vsel %vm286, %v272, 0
    %v342 = vsel %vm286, %v277, 0
    %v345 = vsel %vm286, %v282, 0
    %347 = vmatprep.subr.mxu0 0.0
    %348 = vmatpush1.msra.mxu0 0.0
    %349 = vmatprep.subr.mxu0 0.0
    %350 = vmatpush1.msra.mxu0 0.0
    %351 = vmatprep.subr.mxu0 0.0
    %352 = vmatpush1.msra.mxu0 0.0
    %353 = vmatprep.subr.mxu0 0.0
    %354 = vmatpush1.msra.mxu0 0.0
    %355 = vmatprep.subr.mxu0 0.0
    %356 = vmatpush1.msra.mxu0 0.0
    %357 = vmatprep.subr.mxu0 0.0
    %358 = vmatpush1.msra.mxu0 0.0
    %359 = vmatprep.subr.mxu0 0.0
    %360 = vmatpush1.msra.mxu0 0.0
    %361 = vmatprep.subr.mxu0 0.0
    %362 = vmatpush1.msra.mxu0 0.0
    %363 = vmatprep.subr.mxu0 0.0
    %364 = vmatpush1.msra.mxu0 0.0
    %365 = vmatprep.subr.mxu0 0.0
    %366 = vmatpush1.msra.mxu0 0.0
    %367 = vmatprep.subr.mxu0 0.0
    %368 = vmatpush1.msra.mxu0 0.0
    %369 = vmatprep.subr.mxu0 0.0
    %370 = vmatpush1.msra.mxu0 0.0
    %371 = vmatprep.subr.mxu0 0.0
    %372 = vmatpush1.msra.mxu0 0.0
    %373 = vmatprep.subr.mxu0 0.0
    %374 = vmatpush1.msra.mxu0 0.0
    %375 = vmatprep.subr.mxu0 0.0
    %376 = vmatpush1.msra.mxu0 0.0
    %377 = vmatprep.subr.mxu0 0.0
    %378 = vmatpush1.msra.mxu0 %v285
    %379 = vmatprep.subr.mxu0 0.0
    %380 = vmatpush2.msra.mxu0 0.0
    %381 = vmatprep.subr.mxu0 0.0
    %382 = vmatpush2.msra.mxu0 0.0
    %383 = vmatprep.subr.mxu0 0.0
    %384 = vmatpush2.msra.mxu0 0.0
    %385 = vmatprep.subr.mxu0 0.0
    %386 = vmatpush2.msra.mxu0 0.0
    %387 = vmatprep.subr.mxu0 0.0
    %388 = vmatpush2.msra.mxu0 0.0
    %389 = vmatprep.subr.mxu0 0.0
    %390 = vmatpush2.msra.mxu0 0.0
    %391 = vmatprep.subr.mxu0 0.0
    %392 = vmatpush2.msra.mxu0 0.0
    %393 = vmatprep.subr.mxu0 0.0
    %394 = vmatpush2.msra.mxu0 0.0
    %395 = vmatprep.subr.mxu0 0.0
    %396 = vmatpush2.msra.mxu0 0.0
    %397 = vmatprep.subr.mxu0 0.0
    %398 = vmatpush2.msra.mxu0 0.0
    %399 = vmatprep.subr.mxu0 0.0
    %400 = vmatpush2.msra.mxu0 0.0
    %401 = vmatprep.subr.mxu0 0.0
    %402 = vmatpush2.msra.mxu0 0.0
    %403 = vmatprep.subr.mxu0 0.0
    %404 = vmatpush2.msra.mxu0 0.0
    %405 = vmatprep.subr.mxu0 0.0
    %406 = vmatpush2.msra.mxu0 0.0
    %407 = vmatprep.subr.mxu0 0.0
    %408 = vmatpush2.msra.mxu0 0.0
    %409 = vmatprep.subr.mxu0 0.0
    %410 = vmatpush2.msra.mxu0 0.0
    %411 = vmatprep.mubr.f32.mxu0 0.0
    %412 = vmatmul.mubr.f32.gmra.mxu0 %v288
    %v413 = vpop.f32.mrf.mxu0
    %v414 = vadd.f32 0.0, %v413
    %v415 = vpop.f32.mrf.mxu0
    %416 = vmatprep.mubr.f32.mxu0 0.0
    %417 = vmatmul.mubr.f32.gmra.mxu0 %v291
    %v418 = vpop.f32.mrf.mxu0
    %v419 = vadd.f32 0.0, %v418
    %v420 = vpop.f32.mrf.mxu0
    %421 = vmatprep.mubr.f32.mxu0 0.0
    %422 = vmatmul.mubr.f32.gmra.mxu0 %v294
    %v423 = vpop.f32.mrf.mxu0
    %v424 = vadd.f32 0.0, %v423
    %v425 = vpop.f32.mrf.mxu0
    %426 = vmatprep.mubr.f32.mxu0 0.0
    %427 = vmatmul.mubr.f32.gmra.mxu0 %v297
    %v428 = vpop.f32.mrf.mxu0
    %v429 = vadd.f32 0.0, %v428
    %v430 = vpop.f32.mrf.mxu0
    %431 = vmatprep.mubr.f32.mxu0 0.0
    %432 = vmatmul.mubr.f32.gmra.mxu0 %v300
    %v433 = vpop.f32.mrf.mxu0
    %v434 = vadd.f32 0.0, %v433
    %v435 = vpop.f32.mrf.mxu0
    %436 = vmatprep.mubr.f32.mxu0 0.0
    %437 = vmatmul.mubr.f32.gmra.mxu0 %v303
    %v438 = vpop.f32.mrf.mxu0
    %v439 = vadd.f32 0.0, %v438
    %v440 = vpop.f32.mrf.mxu0
    %441 = vmatprep.mubr.f32.mxu0 0.0
    %442 = vmatmul.mubr.f32.gmra.mxu0 %v306
    %v443 = vpop.f32.mrf.mxu0
    %v444 = vadd.f32 0.0, %v443
    %v445 = vpop.f32.mrf.mxu0
    %446 = vmatprep.mubr.f32.mxu0 0.0
    %447 = vmatmul.mubr.f32.gmra.mxu0 %v309
    %v448 = vpop.f32.mrf.mxu0
    %v449 = vadd.f32 0.0, %v448
    %v450 = vpop.f32.mrf.mxu0
    %451 = vmatprep.mubr.f32.mxu0 0.0
    %452 = vmatmul.mubr.f32.gmra.mxu0 %v312
    %v453 = vpop.f32.mrf.mxu0
    %v454 = vadd.f32 0.0, %v453
    %v455 = vpop.f32.mrf.mxu0
    %456 = vmatprep.mubr.f32.mxu0 0.0
    %457 = vmatmul.mubr.f32.gmra.mxu0 %v315
    %v458 = vpop.f32.mrf.mxu0
    %v459 = vadd.f32 0.0, %v458
    %v460 = vpop.f32.mrf.mxu0
    %461 = vmatprep.mubr.f32.mxu0 0.0
    %462 = vmatmul.mubr.f32.gmra.mxu0 %v318
    %v463 = vpop.f32.mrf.mxu0
    %v464 = vadd.f32 0.0, %v463
    %v465 = vpop.f32.mrf.mxu0
    %466 = vmatprep.mubr.f32.mxu0 0.0
    %467 = vmatmul.mubr.f32.gmra.mxu0 %v321
    %v468 = vpop.f32.mrf.mxu0
    %v469 = vadd.f32 0.0, %v468
    %v470 = vpop.f32.mrf.mxu0
    %471 = vmatprep.mubr.f32.mxu0 0.0
    %472 = vmatmul.mubr.f32.gmra.mxu0 %v324
    %v473 = vpop.f32.mrf.mxu0
    %v474 = vadd.f32 0.0, %v473
    %v475 = vpop.f32.mrf.mxu0
    %476 = vmatprep.mubr.f32.mxu0 0.0
    %477 = vmatmul.mubr.f32.gmra.mxu0 %v327
    %v478 = vpop.f32.mrf.mxu0
    %v479 = vadd.f32 0.0, %v478
    %v480 = vpop.f32.mrf.mxu0
    %481 = vmatprep.mubr.f32.mxu0 0.0
    %482 = vmatmul.mubr.f32.gmra.mxu0 %v330
    %v483 = vpop.f32.mrf.mxu0
    %v484 = vadd.f32 0.0, %v483
    %v485 = vpop.f32.mrf.mxu0
    %486 = vmatprep.mubr.f32.mxu0 0.0
    %487 = vmatmul.mubr.f32.gmra.mxu0 %v333
    %v488 = vpop.f32.mrf.mxu0
    %v489 = vadd.f32 0.0, %v488
    %v490 = vpop.f32.mrf.mxu0
    %491 = vmatprep.mubr.f32.mxu0 0.0
    %492 = vmatmul.mubr.f32.gmra.mxu0 %v336
    %v493 = vpop.f32.mrf.mxu0
    %v494 = vadd.f32 0.0, %v493
    %v495 = vpop.f32.mrf.mxu0
    %496 = vmatprep.mubr.f32.mxu0 0.0
    %497 = vmatmul.mubr.f32.gmra.mxu0 %v339
    %v498 = vpop.f32.mrf.mxu0
    %v499 = vadd.f32 0.0, %v498
    %v500 = vpop.f32.mrf.mxu0
    %501 = vmatprep.mubr.f32.mxu0 0.0
    %502 = vmatmul.mubr.f32.gmra.mxu0 %v342
    %v503 = vpop.f32.mrf.mxu0
    %v504 = vadd.f32 0.0, %v503
    %v505 = vpop.f32.mrf.mxu0
    %506 = vmatprep.mubr.f32.mxu0 0.0
    %507 = vmatmul.mubr.f32.gmra.mxu0 %v345
    %v508 = vpop.f32.mrf.mxu0
    %v509 = vadd.f32 0.0, %v508
    %v510 = vpop.f32.mrf.mxu0
    %511 = vdwg.mxu0
    %v512 = vld [vmem:[%s3] sm:$0x1]
    %v514 = vsel %vm286, %v512, 0
    %516 = vmatprep.subr.mxu0 0.0
    %517 = vmatpush1.xpose.msra.mxu0 %v333
    %518 = vmatprep.subr.mxu0 0.0
    %519 = vmatpush1.xpose.msra.mxu0 %v330
    %520 = vmatprep.subr.mxu0 0.0
    %521 = vmatpush1.xpose.msra.mxu0 %v327
    %522 = vmatprep.subr.mxu0 0.0
    %523 = vmatpush1.xpose.msra.mxu0 %v324
    %524 = vmatprep.subr.mxu0 0.0
    %525 = vmatpush1.xpose.msra.mxu0 %v321
    %526 = vmatprep.subr.mxu0 0.0
    %527 = vmatpush1.xpose.msra.mxu0 %v318
    %528 = vmatprep.subr.mxu0 0.0
    %529 = vmatpush1.xpose.msra.mxu0 %v315
    %530 = vmatprep.subr.mxu0 0.0
    %531 = vmatpush1.xpose.msra.mxu0 %v312
    %532 = vmatprep.subr.mxu0 0.0
    %533 = vmatpush1.xpose.msra.mxu0 %v309
    %534 = vmatprep.subr.mxu0 0.0
    %535 = vmatpush1.xpose.msra.mxu0 %v306
    %536 = vmatprep.subr.mxu0 0.0
    %537 = vmatpush1.xpose.msra.mxu0 %v303
    %538 = vmatprep.subr.mxu0 0.0
    %539 = vmatpush1.xpose.msra.mxu0 %v300
    %540 = vmatprep.subr.mxu0 0.0
    %541 = vmatpush1.xpose.msra.mxu0 %v297
    %542 = vmatprep.subr.mxu0 0.0
    %543 = vmatpush1.xpose.msra.mxu0 %v294
    %544 = vmatprep.subr.mxu0 0.0
    %545 = vmatpush1.xpose.msra.mxu0 %v291
    %546 = vmatprep.subr.mxu0 0.0
    %547 = vmatpush1.xpose.msra.mxu0 %v288
    %548 = vmatprep.subr.mxu0 0.0
    %549 = vmatpush2.xpose.msra.mxu0 0.0
    %550 = vmatprep.subr.mxu0 0.0
    %551 = vmatpush2.xpose.msra.mxu0 0.0
    %552 = vmatprep.subr.mxu0 0.0
    %553 = vmatpush2.xpose.msra.mxu0 0.0
    %554 = vmatprep.subr.mxu0 0.0
    %555 = vmatpush2.xpose.msra.mxu0 0.0
    %556 = vmatprep.subr.mxu0 0.0
    %557 = vmatpush2.xpose.msra.mxu0 0.0
    %558 = vmatprep.subr.mxu0 0.0
    %559 = vmatpush2.xpose.msra.mxu0 0.0
    %560 = vmatprep.subr.mxu0 0.0
    %561 = vmatpush2.xpose.msra.mxu0 0.0
    %562 = vmatprep.subr.mxu0 0.0
    %563 = vmatpush2.xpose.msra.mxu0 0.0
    %564 = vmatprep.subr.mxu0 0.0
    %565 = vmatpush2.xpose.msra.mxu0 0.0
    %566 = vmatprep.subr.mxu0 0.0
    %567 = vmatpush2.xpose.msra.mxu0 0.0
    %568 = vmatprep.subr.mxu0 0.0
    %569 = vmatpush2.xpose.msra.mxu0 0.0
    %570 = vmatprep.subr.mxu0 0.0
    %571 = vmatpush2.xpose.msra.mxu0 0.0
    %572 = vmatprep.subr.mxu0 0.0
    %573 = vmatpush2.xpose.msra.mxu0 %v345
    %574 = vmatprep.subr.mxu0 0.0
    %575 = vmatpush2.xpose.msra.mxu0 %v342
    %576 = vmatprep.subr.mxu0 0.0
    %577 = vmatpush2.xpose.msra.mxu0 %v339
    %578 = vmatprep.subr.mxu0 0.0
    %579 = vmatpush2.xpose.msra.mxu0 %v336
    %580 = vmatprep.mubr.f32.mxu0 0.0
    %581 = vmatmul.mubr.f32.gmra.mxu0 %v514
    %v582 = vpop.f32.mrf.mxu0
    %v583 = vadd.f32 0.0, %v582
    %v584 = vpop.f32.mrf.mxu0
    %v585 = vadd.f32 0.0, %v584
    %586 = vdwg.mxu0
    %588 = vset.pattern.permute.xlu0 0
    %589 = vperm.xlu0 %588, %v414
    %v590 = vpop.permute.xlu0 %589
    %593 = vset.pattern.permute.xlu0 0
    %594 = vperm.xlu0 %593, %v419
    %v595 = vpop.permute.xlu0 %594
    %598 = vset.pattern.permute.xlu0 0
    %599 = vperm.xlu0 %598, %v424
    %v600 = vpop.permute.xlu0 %599
    %603 = vset.pattern.permute.xlu0 0
    %604 = vperm.xlu0 %603, %v429
    %v605 = vpop.permute.xlu0 %604
    %608 = vset.pattern.permute.xlu0 0
    %609 = vperm.xlu0 %608, %v434
    %v610 = vpop.permute.xlu0 %609
    %613 = vset.pattern.permute.xlu0 0
    %614 = vperm.xlu0 %613, %v439
    %v615 = vpop.permute.xlu0 %614
    %618 = vset.pattern.permute.xlu0 0
    %619 = vperm.xlu0 %618, %v444
    %v620 = vpop.permute.xlu0 %619
    %623 = vset.pattern.permute.xlu0 0
    %624 = vperm.xlu0 %623, %v449
    %v625 = vpop.permute.xlu0 %624
    %628 = vset.pattern.permute.xlu0 0
    %629 = vperm.xlu0 %628, %v454
    %v630 = vpop.permute.xlu0 %629
    %633 = vset.pattern.permute.xlu0 0
    %634 = vperm.xlu0 %633, %v459
    %v635 = vpop.permute.xlu0 %634
    %638 = vset.pattern.permute.xlu0 0
    %639 = vperm.xlu0 %638, %v464
    %v640 = vpop.permute.xlu0 %639
    %643 = vset.pattern.permute.xlu0 0
    %644 = vperm.xlu0 %643, %v469
    %v645 = vpop.permute.xlu0 %644
    %648 = vset.pattern.permute.xlu0 0
    %649 = vperm.xlu0 %648, %v474
    %v650 = vpop.permute.xlu0 %649
    %653 = vset.pattern.permute.xlu0 0
    %654 = vperm.xlu0 %653, %v479
    %v655 = vpop.permute.xlu0 %654
    %658 = vset.pattern.permute.xlu0 0
    %659 = vperm.xlu0 %658, %v484
    %v660 = vpop.permute.xlu0 %659
    %663 = vset.pattern.permute.xlu0 0
    %664 = vperm.xlu0 %663, %v489
    %v665 = vpop.permute.xlu0 %664
    %668 = vset.pattern.permute.xlu0 0
    %669 = vperm.xlu0 %668, %v494
    %v670 = vpop.permute.xlu0 %669
    %673 = vset.pattern.permute.xlu0 0
    %674 = vperm.xlu0 %673, %v499
    %v675 = vpop.permute.xlu0 %674
    %678 = vset.pattern.permute.xlu0 0
    %679 = vperm.xlu0 %678, %v504
    %v680 = vpop.permute.xlu0 %679
    %683 = vset.pattern.permute.xlu0 0
    %684 = vperm.xlu0 %683, %v509
    %v685 = vpop.permute.xlu0 %684
    %v687 = vlaneseq
    %v688 = vshrl.u32 %v687, 7
    %v689 = vsub.s32 0, %v688
    %v690 = vrot.slane %v583, %v689
    %v691 = vlaneseq
    %v692 = vshrl.u32 %v691, 7
    %v693 = vsub.s32 0, %v692
    %v694 = vrot.slane %v585, %v693
    %v695 = vadd.f32 %v590, %v690
    %v696 = vadd.f32 %v590, %v694
    %v697 = vadd.f32 %v595, %v690
    %v698 = vadd.f32 %v595, %v694
    %v699 = vadd.f32 %v600, %v690
    %v700 = vadd.f32 %v600, %v694
    %v701 = vadd.f32 %v605, %v690
    %v702 = vadd.f32 %v605, %v694
    %v703 = vadd.f32 %v610, %v690
    %v704 = vadd.f32 %v610, %v694
    %v705 = vadd.f32 %v615, %v690
    %v706 = vadd.f32 %v615, %v694
    %v707 = vadd.f32 %v620, %v690
    %v708 = vadd.f32 %v620, %v694
    %v709 = vadd.f32 %v625, %v690
    %v710 = vadd.f32 %v625, %v694
    %v711 = vadd.f32 %v630, %v690
    %v712 = vadd.f32 %v630, %v694
    %v713 = vadd.f32 %v635, %v690
    %v714 = vadd.f32 %v635, %v694
    %v715 = vadd.f32 %v640, %v690
    %v716 = vadd.f32 %v640, %v694
    %v717 = vadd.f32 %v645, %v690
    %v718 = vadd.f32 %v645, %v694
    %v719 = vadd.f32 %v650, %v690
    %v720 = vadd.f32 %v650, %v694
    %v721 = vadd.f32 %v655, %v690
    %v722 = vadd.f32 %v655, %v694
    %v723 = vadd.f32 %v660, %v690
    %v724 = vadd.f32 %v660, %v694
    %v725 = vadd.f32 %v665, %v690
    %v726 = vadd.f32 %v665, %v694
    %v727 = vadd.f32 %v670, %v690
    %v728 = vadd.f32 %v670, %v694
    %v729 = vadd.f32 %v675, %v690
    %v730 = vadd.f32 %v675, %v694
    %v731 = vadd.f32 %v680, %v690
    %v732 = vadd.f32 %v680, %v694
    %v733 = vadd.f32 %v685, %v690
    %v734 = vadd.f32 %v685, %v694
    %vm735 = vcmp.gt.f32.partialorder %v695, 0.0
    %vm736 = vcmp.gt.f32.partialorder %v696, 0.0
    %vm737 = vcmp.gt.f32.partialorder %v697, 0.0
    %vm738 = vcmp.gt.f32.partialorder %v698, 0.0
    %vm739 = vcmp.gt.f32.partialorder %v699, 0.0
    %vm740 = vcmp.gt.f32.partialorder %v700, 0.0
    %vm741 = vcmp.gt.f32.partialorder %v701, 0.0
    %vm742 = vcmp.gt.f32.partialorder %v702, 0.0
    %vm743 = vcmp.gt.f32.partialorder %v703, 0.0
    %vm744 = vcmp.gt.f32.partialorder %v704, 0.0
    %vm745 = vcmp.gt.f32.partialorder %v705, 0.0
    %vm746 = vcmp.gt.f32.partialorder %v706, 0.0
    %vm747 = vcmp.gt.f32.partialorder %v707, 0.0
    %vm748 = vcmp.gt.f32.partialorder %v708, 0.0
    %vm749 = vcmp.gt.f32.partialorder %v709, 0.0
    %vm750 = vcmp.gt.f32.partialorder %v710, 0.0
    %vm751 = vcmp.gt.f32.partialorder %v711, 0.0
    %vm752 = vcmp.gt.f32.partialorder %v712, 0.0
    %vm753 = vcmp.gt.f32.partialorder %v713, 0.0
    %vm754 = vcmp.gt.f32.partialorder %v714, 0.0
    %vm755 = vcmp.gt.f32.partialorder %v715, 0.0
    %vm756 = vcmp.gt.f32.partialorder %v716, 0.0
    %vm757 = vcmp.gt.f32.partialorder %v717, 0.0
    %vm758 = vcmp.gt.f32.partialorder %v718, 0.0
    %vm759 = vcmp.gt.f32.partialorder %v719, 0.0
    %vm760 = vcmp.gt.f32.partialorder %v720, 0.0
    %vm761 = vcmp.gt.f32.partialorder %v721, 0.0
    %vm762 = vcmp.gt.f32.partialorder %v722, 0.0
    %vm763 = vcmp.gt.f32.partialorder %v723, 0.0
    %vm764 = vcmp.gt.f32.partialorder %v724, 0.0
    %vm765 = vcmp.gt.f32.partialorder %v725, 0.0
    %vm766 = vcmp.gt.f32.partialorder %v726, 0.0
    %vm767 = vcmp.gt.f32.partialorder %v727, 0.0
    %vm768 = vcmp.gt.f32.partialorder %v728, 0.0
    %vm769 = vcmp.gt.f32.partialorder %v729, 0.0
    %vm770 = vcmp.gt.f32.partialorder %v730, 0.0
    %vm771 = vcmp.gt.f32.partialorder %v731, 0.0
    %vm772 = vcmp.gt.f32.partialorder %v732, 0.0
    %vm773 = vcmp.gt.f32.partialorder %v733, 0.0
    %vm774 = vcmp.gt.f32.partialorder %v734, 0.0
    %v775 = vmul.f32 %v695, 0.2
    %v776 = vmul.f32 %v696, 0.2
    %v777 = vmul.f32 %v697, 0.2
    %v778 = vmul.f32 %v698, 0.2
    %v779 = vmul.f32 %v699, 0.2
    %v780 = vmul.f32 %v700, 0.2
    %v781 = vmul.f32 %v701, 0.2
    %v782 = vmul.f32 %v702, 0.2
    %v783 = vmul.f32 %v703, 0.2
    %v784 = vmul.f32 %v704, 0.2
    %v785 = vmul.f32 %v705, 0.2
    %v786 = vmul.f32 %v706, 0.2
    %v787 = vmul.f32 %v707, 0.2
    %v788 = vmul.f32 %v708, 0.2
    %v789 = vmul.f32 %v709, 0.2
    %v790 = vmul.f32 %v710, 0.2
    %v791 = vmul.f32 %v711, 0.2
    %v792 = vmul.f32 %v712, 0.2
    %v793 = vmul.f32 %v713, 0.2
    %v794 = vmul.f32 %v714, 0.2
    %v795 = vmul.f32 %v715, 0.2
    %v796 = vmul.f32 %v716, 0.2
    %v797 = vmul.f32 %v717, 0.2
    %v798 = vmul.f32 %v718, 0.2
    %v799 = vmul.f32 %v719, 0.2
    %v800 = vmul.f32 %v720, 0.2
    %v801 = vmul.f32 %v721, 0.2
    %v802 = vmul.f32 %v722, 0.2
    %v803 = vmul.f32 %v723, 0.2
    %v804 = vmul.f32 %v724, 0.2
    %v805 = vmul.f32 %v725, 0.2
    %v806 = vmul.f32 %v726, 0.2
    %v807 = vmul.f32 %v727, 0.2
    %v808 = vmul.f32 %v728, 0.2
    %v809 = vmul.f32 %v729, 0.2
    %v810 = vmul.f32 %v730, 0.2
    %v811 = vmul.f32 %v731, 0.2
    %v812 = vmul.f32 %v732, 0.2
    %v813 = vmul.f32 %v733, 0.2
    %v814 = vmul.f32 %v734, 0.2
    %v815 = vsel %vm735, %v695, %v775
    %v816 = vsel %vm736, %v696, %v776
    %v817 = vsel %vm737, %v697, %v777
    %v818 = vsel %vm738, %v698, %v778
    %v819 = vsel %vm739, %v699, %v779
    %v820 = vsel %vm740, %v700, %v780
    %v821 = vsel %vm741, %v701, %v781
    %v822 = vsel %vm742, %v702, %v782
    %v823 = vsel %vm743, %v703, %v783
    %v824 = vsel %vm744, %v704, %v784
    %v825 = vsel %vm745, %v705, %v785
    %v826 = vsel %vm746, %v706, %v786
    %v827 = vsel %vm747, %v707, %v787
    %v828 = vsel %vm748, %v708, %v788
    %v829 = vsel %vm749, %v709, %v789
    %v830 = vsel %vm750, %v710, %v790
    %v831 = vsel %vm751, %v711, %v791
    %v832 = vsel %vm752, %v712, %v792
    %v833 = vsel %vm753, %v713, %v793
    %v834 = vsel %vm754, %v714, %v794
    %v835 = vsel %vm755, %v715, %v795
    %v836 = vsel %vm756, %v716, %v796
    %v837 = vsel %vm757, %v717, %v797
    %v838 = vsel %vm758, %v718, %v798
    %v839 = vsel %vm759, %v719, %v799
    %v840 = vsel %vm760, %v720, %v800
    %v841 = vsel %vm761, %v721, %v801
    %v842 = vsel %vm762, %v722, %v802
    %v843 = vsel %vm763, %v723, %v803
    %v844 = vsel %vm764, %v724, %v804
    %v845 = vsel %vm765, %v725, %v805
    %v846 = vsel %vm766, %v726, %v806
    %v847 = vsel %vm767, %v727, %v807
    %v848 = vsel %vm768, %v728, %v808
    %v849 = vsel %vm769, %v729, %v809
    %v850 = vsel %vm770, %v730, %v810
    %v851 = vsel %vm771, %v731, %v811
    %v852 = vsel %vm772, %v732, %v812
    %v853 = vsel %vm773, %v733, %v813
    %v854 = vsel %vm774, %v734, %v814
    %vm855 = vcmask 1040384
    %v856 = vsel %vm855, %v583, -inf
    %vm857 = vcmask 221184
    %v858 = vsel %vm857, %v585, -inf
    %v859 = vmax.f32 %v856, %v858
    %860 = vmax.xlane.f32.xlu0 %v859
    %v861 = vpop.xlane.xlu0 %860
    %v862 = vlaneseq
    %v863 = vshrl.u32 %v862, 7
    %v864 = vsub.s32 0, %v863
    %v865 = vrot.slane %v861, %v864
    %v866 = vadd.f32 %v414, %v865
    %v867 = vadd.f32 %v419, %v865
    %v868 = vadd.f32 %v424, %v865
    %v869 = vadd.f32 %v429, %v865
    %v870 = vadd.f32 %v434, %v865
    %v871 = vadd.f32 %v439, %v865
    %v872 = vadd.f32 %v444, %v865
    %v873 = vadd.f32 %v449, %v865
    %v874 = vadd.f32 %v454, %v865
    %v875 = vadd.f32 %v459, %v865
    %v876 = vadd.f32 %v464, %v865
    %v877 = vadd.f32 %v469, %v865
    %v878 = vadd.f32 %v474, %v865
    %v879 = vadd.f32 %v479, %v865
    %v880 = vadd.f32 %v484, %v865
    %v881 = vadd.f32 %v489, %v865
    %v882 = vadd.f32 %v494, %v865
    %v883 = vadd.f32 %v499, %v865
    %v884 = vadd.f32 %v504, %v865
    %v885 = vadd.f32 %v509, %v865
    %vm886 = vcmp.gt.f32.partialorder %v866, 0.0
    %vm887 = vcmp.gt.f32.partialorder %v867, 0.0
    %vm888 = vcmp.gt.f32.partialorder %v868, 0.0
    %vm889 = vcmp.gt.f32.partialorder %v869, 0.0
    %vm890 = vcmp.gt.f32.partialorder %v870, 0.0
    %vm891 = vcmp.gt.f32.partialorder %v871, 0.0
    %vm892 = vcmp.gt.f32.partialorder %v872, 0.0
    %vm893 = vcmp.gt.f32.partialorder %v873, 0.0
    %vm894 = vcmp.gt.f32.partialorder %v874, 0.0
    %vm895 = vcmp.gt.f32.partialorder %v875, 0.0
    %vm896 = vcmp.gt.f32.partialorder %v876, 0.0
    %vm897 = vcmp.gt.f32.partialorder %v877, 0.0
    %vm898 = vcmp.gt.f32.partialorder %v878, 0.0
    %vm899 = vcmp.gt.f32.partialorder %v879, 0.0
    %vm900 = vcmp.gt.f32.partialorder %v880, 0.0
    %vm901 = vcmp.gt.f32.partialorder %v881, 0.0
    %vm902 = vcmp.gt.f32.partialorder %v882, 0.0
    %vm903 = vcmp.gt.f32.partialorder %v883, 0.0
    %vm904 = vcmp.gt.f32.partialorder %v884, 0.0
    %vm905 = vcmp.gt.f32.partialorder %v885, 0.0
    %v906 = vmul.f32 %v866, 0.2
    %v907 = vmul.f32 %v867, 0.2
    %v908 = vmul.f32 %v868, 0.2
    %v909 = vmul.f32 %v869, 0.2
    %v910 = vmul.f32 %v870, 0.2
    %v911 = vmul.f32 %v871, 0.2
    %v912 = vmul.f32 %v872, 0.2
    %v913 = vmul.f32 %v873, 0.2
    %v914 = vmul.f32 %v874, 0.2
    %v915 = vmul.f32 %v875, 0.2
    %v916 = vmul.f32 %v876, 0.2
    %v917 = vmul.f32 %v877, 0.2
    %v918 = vmul.f32 %v878, 0.2
    %v919 = vmul.f32 %v879, 0.2
    %v920 = vmul.f32 %v880, 0.2
    %v921 = vmul.f32 %v881, 0.2
    %v922 = vmul.f32 %v882, 0.2
    %v923 = vmul.f32 %v883, 0.2
    %v924 = vmul.f32 %v884, 0.2
    %v925 = vmul.f32 %v885, 0.2
    %v926 = vsel %vm886, %v866, %v906
    %v927 = vsel %vm887, %v867, %v907
    %v928 = vsel %vm888, %v868, %v908
    %v929 = vsel %vm889, %v869, %v909
    %v930 = vsel %vm890, %v870, %v910
    %v931 = vsel %vm891, %v871, %v911
    %v932 = vsel %vm892, %v872, %v912
    %v933 = vsel %vm893, %v873, %v913
    %v934 = vsel %vm894, %v874, %v914
    %v935 = vsel %vm895, %v875, %v915
    %v936 = vsel %vm896, %v876, %v916
    %v937 = vsel %vm897, %v877, %v917
    %v938 = vsel %vm898, %v878, %v918
    %v939 = vsel %vm899, %v879, %v919
    %v940 = vsel %vm900, %v880, %v920
    %v941 = vsel %vm901, %v881, %v921
    %v942 = vsel %vm902, %v882, %v922
    %v943 = vsel %vm903, %v883, %v923
    %v944 = vsel %vm904, %v884, %v924
    %v945 = vsel %vm905, %v885, %v925
    %947 = vset.pattern.permute.xlu0 0
    %948 = vperm.xlu0 %947, %v926
    %v949 = vpop.permute.xlu0 %948
    %952 = vset.pattern.permute.xlu0 0
    %953 = vperm.xlu0 %952, %v927
    %v954 = vpop.permute.xlu0 %953
    %957 = vset.pattern.permute.xlu0 0
    %958 = vperm.xlu0 %957, %v928
    %v959 = vpop.permute.xlu0 %958
    %962 = vset.pattern.permute.xlu0 0
    %963 = vperm.xlu0 %962, %v929
    %v964 = vpop.permute.xlu0 %963
    %967 = vset.pattern.permute.xlu0 0
    %968 = vperm.xlu0 %967, %v930
    %v969 = vpop.permute.xlu0 %968
    %972 = vset.pattern.permute.xlu0 0
    %973 = vperm.xlu0 %972, %v931
    %v974 = vpop.permute.xlu0 %973
    %977 = vset.pattern.permute.xlu0 0
    %978 = vperm.xlu0 %977, %v932
    %v979 = vpop.permute.xlu0 %978
    %982 = vset.pattern.permute.xlu0 0
    %983 = vperm.xlu0 %982, %v933
    %v984 = vpop.permute.xlu0 %983
    %987 = vset.pattern.permute.xlu0 0
    %988 = vperm.xlu0 %987, %v934
    %v989 = vpop.permute.xlu0 %988
    %992 = vset.pattern.permute.xlu0 0
    %993 = vperm.xlu0 %992, %v935
    %v994 = vpop.permute.xlu0 %993
    %997 = vset.pattern.permute.xlu0 0
    %998 = vperm.xlu0 %997, %v936
    %v999 = vpop.permute.xlu0 %998
    %1002 = vset.pattern.permute.xlu0 0
    %1003 = vperm.xlu0 %1002, %v937
    %v1004 = vpop.permute.xlu0 %1003
    %1007 = vset.pattern.permute.xlu0 0
    %1008 = vperm.xlu0 %1007, %v938
    %v1009 = vpop.permute.xlu0 %1008
    %1012 = vset.pattern.permute.xlu0 0
    %1013 = vperm.xlu0 %1012, %v939
    %v1014 = vpop.permute.xlu0 %1013
    %1017 = vset.pattern.permute.xlu0 0
    %1018 = vperm.xlu0 %1017, %v940
    %v1019 = vpop.permute.xlu0 %1018
    %1022 = vset.pattern.permute.xlu0 0
    %1023 = vperm.xlu0 %1022, %v941
    %v1024 = vpop.permute.xlu0 %1023
    %1027 = vset.pattern.permute.xlu0 0
    %1028 = vperm.xlu0 %1027, %v942
    %v1029 = vpop.permute.xlu0 %1028
    %1032 = vset.pattern.permute.xlu0 0
    %1033 = vperm.xlu0 %1032, %v943
    %v1034 = vpop.permute.xlu0 %1033
    %1037 = vset.pattern.permute.xlu0 0
    %1038 = vperm.xlu0 %1037, %v944
    %v1039 = vpop.permute.xlu0 %1038
    %1042 = vset.pattern.permute.xlu0 0
    %1043 = vperm.xlu0 %1042, %v945
    %v1044 = vpop.permute.xlu0 %1043
    %v1046 = vsub.f32 %v815, %v949
    %v1047 = vsub.f32 %v816, %v949
    %v1048 = vsub.f32 %v817, %v954
    %v1049 = vsub.f32 %v818, %v954
    %v1050 = vsub.f32 %v819, %v959
    %v1051 = vsub.f32 %v820, %v959
    %v1052 = vsub.f32 %v821, %v964
    %v1053 = vsub.f32 %v822, %v964
    %v1054 = vsub.f32 %v823, %v969
    %v1055 = vsub.f32 %v824, %v969
    %v1056 = vsub.f32 %v825, %v974
    %v1057 = vsub.f32 %v826, %v974
    %v1058 = vsub.f32 %v827, %v979
    %v1059 = vsub.f32 %v828, %v979
    %v1060 = vsub.f32 %v829, %v984
    %v1061 = vsub.f32 %v830, %v984
    %v1062 = vsub.f32 %v831, %v989
    %v1063 = vsub.f32 %v832, %v989
    %v1064 = vsub.f32 %v833, %v994
    %v1065 = vsub.f32 %v834, %v994
    %v1066 = vsub.f32 %v835, %v999
    %v1067 = vsub.f32 %v836, %v999
    %v1068 = vsub.f32 %v837, %v1004
    %v1069 = vsub.f32 %v838, %v1004
    %v1070 = vsub.f32 %v839, %v1009
    %v1071 = vsub.f32 %v840, %v1009
    %v1072 = vsub.f32 %v841, %v1014
    %v1073 = vsub.f32 %v842, %v1014
    %v1074 = vsub.f32 %v843, %v1019
    %v1075 = vsub.f32 %v844, %v1019
    %v1076 = vsub.f32 %v845, %v1024
    %v1077 = vsub.f32 %v846, %v1024
    %v1078 = vsub.f32 %v847, %v1029
    %v1079 = vsub.f32 %v848, %v1029
    %v1080 = vsub.f32 %v849, %v1034
    %v1081 = vsub.f32 %v850, %v1034
    %v1082 = vsub.f32 %v851, %v1039
    %v1083 = vsub.f32 %v852, %v1039
    %v1084 = vsub.f32 %v853, %v1044
    %v1085 = vsub.f32 %v854, %v1044
    %v1086 = vmul.f32 %v1046, 1.442695
    %v1087 = vpow.pop %v1086
    %v1088 = vmul.f32 %v1047, 1.442695
    %v1089 = vpow.pop %v1088
    %v1090 = vmul.f32 %v1048, 1.442695
    %v1091 = vpow.pop %v1090
    %v1092 = vmul.f32 %v1049, 1.442695
    %v1093 = vpow.pop %v1092
    %v1094 = vmul.f32 %v1050, 1.442695
    %v1095 = vpow.pop %v1094
    %v1096 = vmul.f32 %v1051, 1.442695
    %v1097 = vpow.pop %v1096
    %v1098 = vmul.f32 %v1052, 1.442695
    %v1099 = vpow.pop %v1098
    %v1100 = vmul.f32 %v1053, 1.442695
    %v1101 = vpow.pop %v1100
    %v1102 = vmul.f32 %v1054, 1.442695
    %v1103 = vpow.pop %v1102
    %v1104 = vmul.f32 %v1055, 1.442695
    %v1105 = vpow.pop %v1104
    %v1106 = vmul.f32 %v1056, 1.442695
    %v1107 = vpow.pop %v1106
    %v1108 = vmul.f32 %v1057, 1.442695
    %v1109 = vpow.pop %v1108
    %v1110 = vmul.f32 %v1058, 1.442695
    %v1111 = vpow.pop %v1110
    %v1112 = vmul.f32 %v1059, 1.442695
    %v1113 = vpow.pop %v1112
    %v1114 = vmul.f32 %v1060, 1.442695
    %v1115 = vpow.pop %v1114
    %v1116 = vmul.f32 %v1061, 1.442695
    %v1117 = vpow.pop %v1116
    %v1118 = vmul.f32 %v1062, 1.442695
    %v1119 = vpow.pop %v1118
    %v1120 = vmul.f32 %v1063, 1.442695
    %v1121 = vpow.pop %v1120
    %v1122 = vmul.f32 %v1064, 1.442695
    %v1123 = vpow.pop %v1122
    %v1124 = vmul.f32 %v1065, 1.442695
    %v1125 = vpow.pop %v1124
    %v1126 = vmul.f32 %v1066, 1.442695
    %v1127 = vpow.pop %v1126
    %v1128 = vmul.f32 %v1067, 1.442695
    %v1129 = vpow.pop %v1128
    %v1130 = vmul.f32 %v1068, 1.442695
    %v1131 = vpow.pop %v1130
    %v1132 = vmul.f32 %v1069, 1.442695
    %v1133 = vpow.pop %v1132
    %v1134 = vmul.f32 %v1070, 1.442695
    %v1135 = vpow.pop %v1134
    %v1136 = vmul.f32 %v1071, 1.442695
    %v1137 = vpow.pop %v1136
    %v1138 = vmul.f32 %v1072, 1.442695
    %v1139 = vpow.pop %v1138
    %v1140 = vmul.f32 %v1073, 1.442695
    %v1141 = vpow.pop %v1140
    %v1142 = vmul.f32 %v1074, 1.442695
    %v1143 = vpow.pop %v1142
    %v1144 = vmul.f32 %v1075, 1.442695
    %v1145 = vpow.pop %v1144
    %v1146 = vmul.f32 %v1076, 1.442695
    %v1147 = vpow.pop %v1146
    %v1148 = vmul.f32 %v1077, 1.442695
    %v1149 = vpow.pop %v1148
    %v1150 = vmul.f32 %v1078, 1.442695
    %v1151 = vpow.pop %v1150
    %v1152 = vmul.f32 %v1079, 1.442695
    %v1153 = vpow.pop %v1152
    %v1154 = vmul.f32 %v1080, 1.442695
    %v1155 = vpow.pop %v1154
    %v1156 = vmul.f32 %v1081, 1.442695
    %v1157 = vpow.pop %v1156
    %v1158 = vmul.f32 %v1082, 1.442695
    %v1159 = vpow.pop %v1158
    %v1160 = vmul.f32 %v1083, 1.442695
    %v1161 = vpow.pop %v1160
    %v1162 = vmul.f32 %v1084, 1.442695
    %v1163 = vpow.pop %v1162
    %v1164 = vmul.f32 %v1085, 1.442695
    %v1165 = vpow.pop %v1164
    %vm1166 = vcmask 228352
    %v1167 = vsel %vm1166, %v1089, 0.0
    %v1168 = vadd.f32 %v1087, %v1167
    %1169 = vadd.xlane.f32.xlu0 %v1168
    %v1170 = vpop.xlane.xlu0 %1169
    %v1171 = vsel %vm1166, %v1093, 0.0
    %v1172 = vadd.f32 %v1091, %v1171
    %1173 = vadd.xlane.f32.xlu0 %v1172
    %v1174 = vpop.xlane.xlu0 %1173
    %v1175 = vsel %vm1166, %v1097, 0.0
    %v1176 = vadd.f32 %v1095, %v1175
    %1177 = vadd.xlane.f32.xlu0 %v1176
    %v1178 = vpop.xlane.xlu0 %1177
    %v1179 = vsel %vm1166, %v1101, 0.0
    %v1180 = vadd.f32 %v1099, %v1179
    %1181 = vadd.xlane.f32.xlu0 %v1180
    %v1182 = vpop.xlane.xlu0 %1181
    %v1183 = vsel %vm1166, %v1105, 0.0
    %v1184 = vadd.f32 %v1103, %v1183
    %1185 = vadd.xlane.f32.xlu0 %v1184
    %v1186 = vpop.xlane.xlu0 %1185
    %v1187 = vsel %vm1166, %v1109, 0.0
    %v1188 = vadd.f32 %v1107, %v1187
    %1189 = vadd.xlane.f32.xlu0 %v1188
    %v1190 = vpop.xlane.xlu0 %1189
    %v1191 = vsel %vm1166, %v1113, 0.0
    %v1192 = vadd.f32 %v1111, %v1191
    %1193 = vadd.xlane.f32.xlu0 %v1192
    %v1194 = vpop.xlane.xlu0 %1193
    %v1195 = vsel %vm1166, %v1117, 0.0
    %v1196 = vadd.f32 %v1115, %v1195
    %1197 = vadd.xlane.f32.xlu0 %v1196
    %v1198 = vpop.xlane.xlu0 %1197
    %v1199 = vsel %vm1166, %v1121, 0.0
    %v1200 = vadd.f32 %v1119, %v1199
    %1201 = vadd.xlane.f32.xlu0 %v1200
    %v1202 = vpop.xlane.xlu0 %1201
    %v1203 = vsel %vm1166, %v1125, 0.0
    %v1204 = vadd.f32 %v1123, %v1203
    %1205 = vadd.xlane.f32.xlu0 %v1204
    %v1206 = vpop.xlane.xlu0 %1205
    %v1207 = vsel %vm1166, %v1129, 0.0
    %v1208 = vadd.f32 %v1127, %v1207
    %1209 = vadd.xlane.f32.xlu0 %v1208
    %v1210 = vpop.xlane.xlu0 %1209
    %v1211 = vsel %vm1166, %v1133, 0.0
    %v1212 = vadd.f32 %v1131, %v1211
    %1213 = vadd.xlane.f32.xlu0 %v1212
    %v1214 = vpop.xlane.xlu0 %1213
    %v1215 = vsel %vm1166, %v1137, 0.0
    %v1216 = vadd.f32 %v1135, %v1215
    %1217 = vadd.xlane.f32.xlu0 %v1216
    %v1218 = vpop.xlane.xlu0 %1217
    %v1219 = vsel %vm1166, %v1141, 0.0
    %v1220 = vadd.f32 %v1139, %v1219
    %1221 = vadd.xlane.f32.xlu0 %v1220
    %v1222 = vpop.xlane.xlu0 %1221
    %v1223 = vsel %vm1166, %v1145, 0.0
    %v1224 = vadd.f32 %v1143, %v1223
    %1225 = vadd.xlane.f32.xlu0 %v1224
    %v1226 = vpop.xlane.xlu0 %1225
    %v1227 = vsel %vm1166, %v1149, 0.0
    %v1228 = vadd.f32 %v1147, %v1227
    %1229 = vadd.xlane.f32.xlu0 %v1228
    %v1230 = vpop.xlane.xlu0 %1229
    %v1231 = vsel %vm1166, %v1153, 0.0
    %v1232 = vadd.f32 %v1151, %v1231
    %1233 = vadd.xlane.f32.xlu0 %v1232
    %v1234 = vpop.xlane.xlu0 %1233
    %v1235 = vsel %vm1166, %v1157, 0.0
    %v1236 = vadd.f32 %v1155, %v1235
    %1237 = vadd.xlane.f32.xlu0 %v1236
    %v1238 = vpop.xlane.xlu0 %1237
    %v1239 = vsel %vm1166, %v1161, 0.0
    %v1240 = vadd.f32 %v1159, %v1239
    %1241 = vadd.xlane.f32.xlu0 %v1240
    %v1242 = vpop.xlane.xlu0 %1241
    %vm1243 = vcmask 1043456
    %v1244 = vsel %vm1243, %v1163, 0.0
    %vm1245 = vcmask 224256
    %v1246 = vsel %vm1245, %v1165, 0.0
    %v1247 = vadd.f32 %v1244, %v1246
    %1248 = vadd.xlane.f32.xlu0 %v1247
    %v1249 = vpop.xlane.xlu0 %1248
    %v1250 = vrcp.pop %v1170
    %v1251 = vrcp.pop %v1174
    %v1252 = vrcp.pop %v1178
    %v1253 = vrcp.pop %v1182
    %v1254 = vrcp.pop %v1186
    %v1255 = vrcp.pop %v1190
    %v1256 = vrcp.pop %v1194
    %v1257 = vrcp.pop %v1198
    %v1258 = vrcp.pop %v1202
    %v1259 = vrcp.pop %v1206
    %v1260 = vrcp.pop %v1210
    %v1261 = vrcp.pop %v1214
    %v1262 = vrcp.pop %v1218
    %v1263 = vrcp.pop %v1222
    %v1264 = vrcp.pop %v1226
    %v1265 = vrcp.pop %v1230
    %v1266 = vrcp.pop %v1234
    %v1267 = vrcp.pop %v1238
    %v1268 = vrcp.pop %v1242
    %v1269 = vrcp.pop %v1249
    %v1270 = vmul.f32 %v1087, %v1250
    %v1271 = vmul.f32 %v1089, %v1250
    %v1272 = vmul.f32 %v1091, %v1251
    %v1273 = vmul.f32 %v1093, %v1251
    %v1274 = vmul.f32 %v1095, %v1252
    %v1275 = vmul.f32 %v1097, %v1252
    %v1276 = vmul.f32 %v1099, %v1253
    %v1277 = vmul.f32 %v1101, %v1253
    %v1278 = vmul.f32 %v1103, %v1254
    %v1279 = vmul.f32 %v1105, %v1254
    %v1280 = vmul.f32 %v1107, %v1255
    %v1281 = vmul.f32 %v1109, %v1255
    %v1282 = vmul.f32 %v1111, %v1256
    %v1283 = vmul.f32 %v1113, %v1256
    %v1284 = vmul.f32 %v1115, %v1257
    %v1285 = vmul.f32 %v1117, %v1257
    %v1286 = vmul.f32 %v1119, %v1258
    %v1287 = vmul.f32 %v1121, %v1258
    %v1288 = vmul.f32 %v1123, %v1259
    %v1289 = vmul.f32 %v1125, %v1259
    %v1290 = vmul.f32 %v1127, %v1260
    %v1291 = vmul.f32 %v1129, %v1260
    %v1292 = vmul.f32 %v1131, %v1261
    %v1293 = vmul.f32 %v1133, %v1261
    %v1294 = vmul.f32 %v1135, %v1262
    %v1295 = vmul.f32 %v1137, %v1262
    %v1296 = vmul.f32 %v1139, %v1263
    %v1297 = vmul.f32 %v1141, %v1263
    %v1298 = vmul.f32 %v1143, %v1264
    %v1299 = vmul.f32 %v1145, %v1264
    %v1300 = vmul.f32 %v1147, %v1265
    %v1301 = vmul.f32 %v1149, %v1265
    %v1302 = vmul.f32 %v1151, %v1266
    %v1303 = vmul.f32 %v1153, %v1266
    %v1304 = vmul.f32 %v1155, %v1267
    %v1305 = vmul.f32 %v1157, %v1267
    %v1306 = vmul.f32 %v1159, %v1268
    %v1307 = vmul.f32 %v1161, %v1268
    %v1308 = vmul.f32 %v1163, %v1269
    %v1309 = vmul.f32 %v1165, %v1269
    %v1310 = vpack.c.bf16 %v1272, %v1270
    %v1311 = vpack.c.bf16 %v1273, %v1271
    %v1312 = vpack.c.bf16 %v1276, %v1274
    %v1313 = vpack.c.bf16 %v1277, %v1275
    %v1314 = vpack.c.bf16 %v1280, %v1278
    %v1315 = vpack.c.bf16 %v1281, %v1279
    %v1316 = vpack.c.bf16 %v1284, %v1282
    %v1317 = vpack.c.bf16 %v1285, %v1283
    %v1318 = vpack.c.bf16 %v1288, %v1286
    %v1319 = vpack.c.bf16 %v1289, %v1287
    %v1320 = vpack.c.bf16 %v1292, %v1290
    %v1321 = vpack.c.bf16 %v1293, %v1291
    %v1322 = vpack.c.bf16 %v1296, %v1294
    %v1323 = vpack.c.bf16 %v1297, %v1295
    %v1324 = vpack.c.bf16 %v1300, %v1298
    %v1325 = vpack.c.bf16 %v1301, %v1299
    %v1326 = vpack.c.bf16 %v1304, %v1302
    %v1327 = vpack.c.bf16 %v1305, %v1303
    %v1328 = vpack.c.bf16 %v1308, %v1306
    %v1329 = vpack.c.bf16 %v1309, %v1307
    %v1330 = vld [vmem:[%s5] sm:$0xff]
    %v1331 = vld [vmem:[%s5 + $0x8] sm:$0xff]
    %v1332 = vld [vmem:[%s5 + $0x10] sm:$0xff]
    %v1333 = vld [vmem:[%s5 + $0x18] sm:$0xff]
    %v1334 = vld [vmem:[%s5 + $0x20] sm:$0xff]
    %v1335 = vld [vmem:[%s5 + $0x28] sm:$0xff]
    %v1336 = vld [vmem:[%s5 + $0x30] sm:$0xff]
    %v1337 = vld [vmem:[%s5 + $0x38] sm:$0xff]
    %v1338 = vpack.c.bf16 %v1332, %v1330
    %v1339 = vpack.c.bf16 %v1333, %v1331
    %v1340 = vpack.c.bf16 %v1336, %v1334
    %v1341 = vpack.c.bf16 %v1337, %v1335
    %v1343 = vsel %vm1166, %v1339, 0
    %v1346 = vsel %vm1166, %v1341, 0
    %vm1348 = vcmask 1045504
    %v1350 = vsel %vm1348, %v1328, 0
    %v1353 = vsel %vm1348, %v1329, 0
    %1355 = vmatprep.subr.bf16.mxu0 %v1325
    %1356 = vmatpush1.bf16.msra.mxu0 %v1324
    %1357 = vmatprep.subr.bf16.mxu0 %v1323
    %1358 = vmatpush1.bf16.msra.mxu0 %v1322
    %1359 = vmatprep.subr.bf16.mxu0 %v1321
    %1360 = vmatpush1.bf16.msra.mxu0 %v1320
    %1361 = vmatprep.subr.bf16.mxu0 %v1319
    %1362 = vmatpush1.bf16.msra.mxu0 %v1318
    %1363 = vmatprep.subr.bf16.mxu0 %v1317
    %1364 = vmatpush1.bf16.msra.mxu0 %v1316
    %1365 = vmatprep.subr.bf16.mxu0 %v1315
    %1366 = vmatpush1.bf16.msra.mxu0 %v1314
    %1367 = vmatprep.subr.bf16.mxu0 %v1313
    %1368 = vmatpush1.bf16.msra.mxu0 %v1312
    %1369 = vmatprep.subr.bf16.mxu0 %v1311
    %1370 = vmatpush1.bf16.msra.mxu0 %v1310
    %1371 = vmatprep.subr.bf16.mxu0 0
    %1372 = vmatpush2.bf16.msra.mxu0 0
    %1373 = vmatprep.subr.bf16.mxu0 0
    %1374 = vmatpush2.bf16.msra.mxu0 0
    %1375 = vmatprep.subr.bf16.mxu0 0
    %1376 = vmatpush2.bf16.msra.mxu0 0
    %1377 = vmatprep.subr.bf16.mxu0 0
    %1378 = vmatpush2.bf16.msra.mxu0 0
    %1379 = vmatprep.subr.bf16.mxu0 0
    %1380 = vmatpush2.bf16.msra.mxu0 0
    %1381 = vmatprep.subr.bf16.mxu0 0
    %1382 = vmatpush2.bf16.msra.mxu0 0
    %1383 = vmatprep.subr.bf16.mxu0 %v1353
    %1384 = vmatpush2.bf16.msra.mxu0 %v1350
    %1385 = vmatprep.subr.bf16.mxu0 %v1327
    %1386 = vmatpush2.bf16.msra.mxu0 %v1326
    %1387 = vmatprep.mubr.bf16.mxu0 %v1343
    %1388 = vmatmul.mubr.bf16.gmra.mxu0 %v1338
    %v1389 = vpop.f32.mrf.mxu0
    %v1390 = vadd.f32 0.0, %v1389
    %v1391 = vpop.f32.mrf.mxu0
    %v1392 = vadd.f32 0.0, %v1391
    %v1393 = vpop.f32.mrf.mxu0
    %v1394 = vadd.f32 0.0, %v1393
    %v1395 = vpop.f32.mrf.mxu0
    %v1396 = vadd.f32 0.0, %v1395
    %1397 = vmatprep.mubr.bf16.mxu0 %v1346
    %1398 = vmatmul.mubr.bf16.gmra.mxu0 %v1340
    %v1399 = vpop.f32.mrf.mxu0
    %v1400 = vadd.f32 0.0, %v1399
    %v1401 = vpop.f32.mrf.mxu0
    %v1402 = vadd.f32 0.0, %v1401
    %v1403 = vpop.f32.mrf.mxu0
    %v1404 = vadd.f32 0.0, %v1403
    %v1405 = vpop.f32.mrf.mxu0
    %v1406 = vadd.f32 0.0, %v1405
    %1407 = vdwg.mxu0
    %v1408 = vpack.c.bf16 %v1394, %v1390
    %v1409 = vpack.c.bf16 %v1396, %v1392
    %v1410 = vpack.c.bf16 %v1404, %v1400
    %v1411 = vpack.c.bf16 %v1406, %v1402
    %v1412 = vld [vmem:[%s7] sm:$0xff]
    %v1413 = vld [vmem:[%s7 + $0x8] sm:$0xff]
    %v1414 = vld [vmem:[%s7 + $0x10] sm:$0xff]
    %v1415 = vld [vmem:[%s7 + $0x18] sm:$0xff]
    %1417 = vset.pattern.permute.xlu0 0
    %1418 = vperm.xlu0 %1417, %v1412
    %v1419 = vpop.permute.xlu0 %1418
    %1422 = vset.pattern.permute.xlu0 0
    %1423 = vperm.xlu0 %1422, %v1413
    %v1424 = vpop.permute.xlu0 %1423
    %1427 = vset.pattern.permute.xlu0 0
    %1428 = vperm.xlu0 %1427, %v1414
    %v1429 = vpop.permute.xlu0 %1428
    %1432 = vset.pattern.permute.xlu0 0
    %1433 = vperm.xlu0 %1432, %v1415
    %v1434 = vpop.permute.xlu0 %1433
    %v1436 = vld [vmem:[%s4] sm:$0xff]
    %v1437 = vld [vmem:[%s4 + $0x8] sm:$0xff]
    %v1438 = vld [vmem:[%s4 + $0x10] sm:$0xff]
    %v1439 = vld [vmem:[%s4 + $0x18] sm:$0xff]
    %v1440 = vld [vmem:[%s4 + $0x20] sm:$0xff]
    %v1441 = vld [vmem:[%s4 + $0x28] sm:$0xff]
    %v1442 = vld [vmem:[%s4 + $0x30] sm:$0xff]
    %v1443 = vld [vmem:[%s4 + $0x38] sm:$0xff]
    %v1444 = vld [vmem:[%s4 + $0x40] sm:$0xff]
    %v1445 = vld [vmem:[%s4 + $0x48] sm:$0xff]
    %v1446 = vld [vmem:[%s4 + $0x50] sm:$0xff]
    %v1447 = vld [vmem:[%s4 + $0x58] sm:$0xff]
    %v1448 = vld [vmem:[%s4 + $0x60] sm:$0xff]
    %v1449 = vld [vmem:[%s4 + $0x68] sm:$0xff]
    %v1450 = vld [vmem:[%s4 + $0x70] sm:$0xff]
    %v1451 = vld [vmem:[%s4 + $0x78] sm:$0xff]
    %v1452 = vld [vmem:[%s4 + $0x80] sm:$0xff]
    %v1453 = vld [vmem:[%s4 + $0x88] sm:$0xff]
    %v1454 = vld [vmem:[%s4 + $0x90] sm:$0xff]
    %v1455 = vld [vmem:[%s4 + $0x98] sm:$0x33]
    %v1476 = vunpack.c.l.b16 %v1436
    %v1477 = vunpack.c.h.b16 %v1436
    %v1478 = vunpack.c.l.b16 %v1437
    %v1479 = vunpack.c.h.b16 %v1437
    %v1480 = vunpack.c.l.b16 %v1438
    %v1481 = vunpack.c.h.b16 %v1438
    %v1482 = vunpack.c.l.b16 %v1439
    %v1483 = vunpack.c.h.b16 %v1439
    %v1484 = vunpack.c.l.b16 %v1440
    %v1485 = vunpack.c.h.b16 %v1440
    %v1486 = vunpack.c.l.b16 %v1441
    %v1487 = vunpack.c.h.b16 %v1441
    %v1488 = vunpack.c.l.b16 %v1442
    %v1489 = vunpack.c.h.b16 %v1442
    %v1490 = vunpack.c.l.b16 %v1443
    %v1491 = vunpack.c.h.b16 %v1443
    %v1492 = vunpack.c.l.b16 %v1444
    %v1493 = vunpack.c.h.b16 %v1444
    %v1494 = vunpack.c.l.b16 %v1445
    %v1495 = vunpack.c.h.b16 %v1445
    %v1496 = vunpack.c.l.b16 %v1446
    %v1497 = vunpack.c.h.b16 %v1446
    %v1498 = vunpack.c.l.b16 %v1447
    %v1499 = vunpack.c.h.b16 %v1447
    %v1500 = vunpack.c.l.b16 %v1448
    %v1501 = vunpack.c.h.b16 %v1448
    %v1502 = vunpack.c.l.b16 %v1449
    %v1503 = vunpack.c.h.b16 %v1449
    %v1504 = vunpack.c.l.b16 %v1450
    %v1505 = vunpack.c.h.b16 %v1450
    %v1506 = vunpack.c.l.b16 %v1451
    %v1507 = vunpack.c.h.b16 %v1451
    %v1508 = vunpack.c.l.b16 %v1452
    %v1509 = vunpack.c.h.b16 %v1452
    %v1510 = vunpack.c.l.b16 %v1453
    %v1511 = vunpack.c.h.b16 %v1453
    %v1512 = vunpack.c.l.b16 %v1454
    %v1513 = vunpack.c.h.b16 %v1454
    %v1514 = vunpack.c.l.b16 %v1455
    %v1515 = vunpack.c.h.b16 %v1455
    %v1516 = vpack.c.b16 %v1478, %v1476
    %v1517 = vpack.c.b16 %v1479, %v1477
    %v1518 = vpack.c.b16 %v1482, %v1480
    %v1519 = vpack.c.b16 %v1483, %v1481
    %v1520 = vpack.c.b16 %v1486, %v1484
    %v1521 = vpack.c.b16 %v1487, %v1485
    %v1522 = vpack.c.b16 %v1490, %v1488
    %v1523 = vpack.c.b16 %v1491, %v1489
    %v1524 = vpack.c.b16 %v1494, %v1492
    %v1525 = vpack.c.b16 %v1495, %v1493
    %v1526 = vpack.c.b16 %v1498, %v1496
    %v1527 = vpack.c.b16 %v1499, %v1497
    %v1528 = vpack.c.b16 %v1502, %v1500
    %v1529 = vpack.c.b16 %v1503, %v1501
    %v1530 = vpack.c.b16 %v1506, %v1504
    %v1531 = vpack.c.b16 %v1507, %v1505
    %v1532 = vpack.c.b16 %v1510, %v1508
    %v1533 = vpack.c.b16 %v1511, %v1509
    %v1534 = vpack.c.b16 %v1514, %v1512
    %v1535 = vpack.c.b16 %v1515, %v1513
    %v1555 = vsel %vm1166, %v1409, 0
    %v1558 = vsel %vm1166, %v1411, 0
    %v1561 = vsel %vm1348, %v1534, 0
    %v1564 = vsel %vm1348, %v1535, 0
    %1566 = vmatprep.subr.bf16.mxu0 %v1531
    %1567 = vmatpush1.bf16.msra.mxu0 %v1530
    %1568 = vmatprep.subr.bf16.mxu0 %v1529
    %1569 = vmatpush1.bf16.msra.mxu0 %v1528
    %1570 = vmatprep.subr.bf16.mxu0 %v1527
    %1571 = vmatpush1.bf16.msra.mxu0 %v1526
    %1572 = vmatprep.subr.bf16.mxu0 %v1525
    %1573 = vmatpush1.bf16.msra.mxu0 %v1524
    %1574 = vmatprep.subr.bf16.mxu0 %v1523
    %1575 = vmatpush1.bf16.msra.mxu0 %v1522
    %1576 = vmatprep.subr.bf16.mxu0 %v1521
    %1577 = vmatpush1.bf16.msra.mxu0 %v1520
    %1578 = vmatprep.subr.bf16.mxu0 %v1519
    %1579 = vmatpush1.bf16.msra.mxu0 %v1518
    %1580 = vmatprep.subr.bf16.mxu0 %v1517
    %1581 = vmatpush1.bf16.msra.mxu0 %v1516
    %1582 = vmatprep.subr.bf16.mxu0 0
    %1583 = vmatpush2.bf16.msra.mxu0 0
    %1584 = vmatprep.subr.bf16.mxu0 0
    %1585 = vmatpush2.bf16.msra.mxu0 0
    %1586 = vmatprep.subr.bf16.mxu0 0
    %1587 = vmatpush2.bf16.msra.mxu0 0
    %1588 = vmatprep.subr.bf16.mxu0 0
    %1589 = vmatpush2.bf16.msra.mxu0 0
    %1590 = vmatprep.subr.bf16.mxu0 0
    %1591 = vmatpush2.bf16.msra.mxu0 0
    %1592 = vmatprep.subr.bf16.mxu0 0
    %1593 = vmatpush2.bf16.msra.mxu0 0
    %1594 = vmatprep.subr.bf16.mxu0 %v1564
    %1595 = vmatpush2.bf16.msra.mxu0 %v1561
    %1596 = vmatprep.subr.bf16.mxu0 %v1533
    %1597 = vmatpush2.bf16.msra.mxu0 %v1532
    %1598 = vmatprep.mubr.bf16.mxu0 %v1555
    %1599 = vmatmul.mubr.bf16.gmra.mxu0 %v1408
    %v1600 = vpop.f32.mrf.mxu0
    %v1601 = vadd.f32 %v1419, %v1600
    %v1602 = vpop.f32.mrf.mxu0
    %v1603 = vadd.f32 %v1419, %v1602
    %v1604 = vpop.f32.mrf.mxu0
    %v1605 = vadd.f32 %v1424, %v1604
    %v1606 = vpop.f32.mrf.mxu0
    %v1607 = vadd.f32 %v1424, %v1606
    %1608 = vmatprep.mubr.bf16.mxu0 %v1558
    %1609 = vmatmul.mubr.bf16.gmra.mxu0 %v1410
    %v1610 = vpop.f32.mrf.mxu0
    %v1611 = vadd.f32 %v1429, %v1610
    %v1612 = vpop.f32.mrf.mxu0
    %v1613 = vadd.f32 %v1429, %v1612
    %v1614 = vpop.f32.mrf.mxu0
    %v1615 = vadd.f32 %v1434, %v1614
    %v1616 = vpop.f32.mrf.mxu0
    %v1617 = vadd.f32 %v1434, %v1616
    %1618 = vdwg.mxu0
    %1619 = vst [vmem:[#allocation2] sm:$0xff] %v1601
    %1620 = vst.msk [vmem:[#allocation2 + $0x8] sm:$0xff] %vm1166, %v1603
    %1621 = vst [vmem:[#allocation2 + $0x10] sm:$0xff] %v1605
    %1622 = vst.msk [vmem:[#allocation2 + $0x18] sm:$0xff] %vm1166, %v1607
    %1623 = vst [vmem:[#allocation2 + $0x20] sm:$0xff] %v1611
    %1624 = vst.msk [vmem:[#allocation2 + $0x28] sm:$0xff] %vm1166, %v1613
    %1625 = vst [vmem:[#allocation2 + $0x30] sm:$0xff] %v1615
    %1626 = vst.msk [vmem:[#allocation2 + $0x38] sm:$0xff] %vm1166, %v1617
    %s1627 = scalar_lea.vmem %s4, 160
    %v1628 = vld [vmem:[%s1627] sm:$0xff]
    %v1629 = vld [vmem:[%s1627 + $0x8] sm:$0xff]
    %v1630 = vld [vmem:[%s1627 + $0x10] sm:$0xff]
    %v1631 = vld [vmem:[%s1627 + $0x18] sm:$0xff]
    %v1632 = vld [vmem:[%s1627 + $0x20] sm:$0xff]
    %v1633 = vld [vmem:[%s1627 + $0x28] sm:$0xff]
    %v1634 = vld [vmem:[%s1627 + $0x30] sm:$0xff]
    %v1635 = vld [vmem:[%s1627 + $0x38] sm:$0xff]
    %v1636 = vld [vmem:[%s1627 + $0x40] sm:$0xff]
    %v1637 = vld [vmem:[%s1627 + $0x48] sm:$0xff]
    %v1638 = vld [vmem:[%s1627 + $0x50] sm:$0xff]
    %v1639 = vld [vmem:[%s1627 + $0x58] sm:$0xff]
    %v1640 = vld [vmem:[%s1627 + $0x60] sm:$0xff]
    %v1641 = vld [vmem:[%s1627 + $0x68] sm:$0xff]
    %v1642 = vld [vmem:[%s1627 + $0x70] sm:$0xff]
    %v1643 = vld [vmem:[%s1627 + $0x78] sm:$0xff]
    %v1644 = vld [vmem:[%s1627 + $0x80] sm:$0xff]
    %v1645 = vld [vmem:[%s1627 + $0x88] sm:$0xff]
    %v1646 = vld [vmem:[%s1627 + $0x90] sm:$0xff]
    %v1647 = vld [vmem:[%s1627 + $0x98] sm:$0x33]
    %v1668 = vunpack.c.l.b16 %v1628
    %v1669 = vunpack.c.h.b16 %v1628
    %v1670 = vunpack.c.l.b16 %v1629
    %v1671 = vunpack.c.h.b16 %v1629
    %v1672 = vunpack.c.l.b16 %v1630
    %v1673 = vunpack.c.h.b16 %v1630
    %v1674 = vunpack.c.l.b16 %v1631
    %v1675 = vunpack.c.h.b16 %v1631
    %v1676 = vunpack.c.l.b16 %v1632
    %v1677 = vunpack.c.h.b16 %v1632
    %v1678 = vunpack.c.l.b16 %v1633
    %v1679 = vunpack.c.h.b16 %v1633
    %v1680 = vunpack.c.l.b16 %v1634
    %v1681 = vunpack.c.h.b16 %v1634
    %v1682 = vunpack.c.l.b16 %v1635
    %v1683 = vunpack.c.h.b16 %v1635
    %v1684 = vunpack.c.l.b16 %v1636
    %v1685 = vunpack.c.h.b16 %v1636
    %v1686 = vunpack.c.l.b16 %v1637
    %v1687 = vunpack.c.h.b16 %v1637
    %v1688 = vunpack.c.l.b16 %v1638
    %v1689 = vunpack.c.h.b16 %v1638
    %v1690 = vunpack.c.l.b16 %v1639
    %v1691 = vunpack.c.h.b16 %v1639
    %v1692 = vunpack.c.l.b16 %v1640
    %v1693 = vunpack.c.h.b16 %v1640
    %v1694 = vunpack.c.l.b16 %v1641
    %v1695 = vunpack.c.h.b16 %v1641
    %v1696 = vunpack.c.l.b16 %v1642
    %v1697 = vunpack.c.h.b16 %v1642
    %v1698 = vunpack.c.l.b16 %v1643
    %v1699 = vunpack.c.h.b16 %v1643
    %v1700 = vunpack.c.l.b16 %v1644
    %v1701 = vunpack.c.h.b16 %v1644
    %v1702 = vunpack.c.l.b16 %v1645
    %v1703 = vunpack.c.h.b16 %v1645
    %v1704 = vunpack.c.l.b16 %v1646
    %v1705 = vunpack.c.h.b16 %v1646
    %v1706 = vunpack.c.l.b16 %v1647
    %v1707 = vunpack.c.h.b16 %v1647
    %v1708 = vpack.c.b16 %v1670, %v1668
    %v1709 = vpack.c.b16 %v1671, %v1669
    %v1710 = vpack.c.b16 %v1674, %v1672
    %v1711 = vpack.c.b16 %v1675, %v1673
    %v1712 = vpack.c.b16 %v1678, %v1676
    %v1713 = vpack.c.b16 %v1679, %v1677
    %v1714 = vpack.c.b16 %v1682, %v1680
    %v1715 = vpack.c.b16 %v1683, %v1681
    %v1716 = vpack.c.b16 %v1686, %v1684
    %v1717 = vpack.c.b16 %v1687, %v1685
    %v1718 = vpack.c.b16 %v1690, %v1688
    %v1719 = vpack.c.b16 %v1691, %v1689
    %v1720 = vpack.c.b16 %v1694, %v1692
    %v1721 = vpack.c.b16 %v1695, %v1693
    %v1722 = vpack.c.b16 %v1698, %v1696
    %v1723 = vpack.c.b16 %v1699, %v1697
    %v1724 = vpack.c.b16 %v1702, %v1700
    %v1725 = vpack.c.b16 %v1703, %v1701
    %v1726 = vpack.c.b16 %v1706, %v1704
    %v1727 = vpack.c.b16 %v1707, %v1705
    %v1747 = vsel %vm1348, %v1726, 0
    %v1750 = vsel %vm1348, %v1727, 0
    %1752 = vmatprep.subr.bf16.mxu0 %v1723
    %1753 = vmatpush1.bf16.msra.mxu0 %v1722
    %1754 = vmatprep.subr.bf16.mxu0 %v1721
    %1755 = vmatpush1.bf16.msra.mxu0 %v1720
    %1756 = vmatprep.subr.bf16.mxu0 %v1719
    %1757 = vmatpush1.bf16.msra.mxu0 %v1718
    %1758 = vmatprep.subr.bf16.mxu0 %v1717
    %1759 = vmatpush1.bf16.msra.mxu0 %v1716
    %1760 = vmatprep.subr.bf16.mxu0 %v1715
    %1761 = vmatpush1.bf16.msra.mxu0 %v1714
    %1762 = vmatprep.subr.bf16.mxu0 %v1713
    %1763 = vmatpush1.bf16.msra.mxu0 %v1712
    %1764 = vmatprep.subr.bf16.mxu0 %v1711
    %1765 = vmatpush1.bf16.msra.mxu0 %v1710
    %1766 = vmatprep.subr.bf16.mxu0 %v1709
    %1767 = vmatpush1.bf16.msra.mxu0 %v1708
    %1768 = vmatprep.subr.bf16.mxu0 0
    %1769 = vmatpush2.bf16.msra.mxu0 0
    %1770 = vmatprep.subr.bf16.mxu0 0
    %1771 = vmatpush2.bf16.msra.mxu0 0
    %1772 = vmatprep.subr.bf16.mxu0 0
    %1773 = vmatpush2.bf16.msra.mxu0 0
    %1774 = vmatprep.subr.bf16.mxu0 0
    %1775 = vmatpush2.bf16.msra.mxu0 0
    %1776 = vmatprep.subr.bf16.mxu0 0
    %1777 = vmatpush2.bf16.msra.mxu0 0
    %1778 = vmatprep.subr.bf16.mxu0 0
    %1779 = vmatpush2.bf16.msra.mxu0 0
    %1780 = vmatprep.subr.bf16.mxu0 %v1750
    %1781 = vmatpush2.bf16.msra.mxu0 %v1747
    %1782 = vmatprep.subr.bf16.mxu0 %v1725
    %1783 = vmatpush2.bf16.msra.mxu0 %v1724
    %1784 = vmatprep.mubr.bf16.mxu0 %v1555
    %1785 = vmatmul.mubr.bf16.gmra.mxu0 %v1408
    %v1786 = vpop.f32.mrf.mxu0
    %v1787 = vadd.f32 %v1419, %v1786
    %v1788 = vpop.f32.mrf.mxu0
    %v1789 = vadd.f32 %v1419, %v1788
    %v1790 = vpop.f32.mrf.mxu0
    %v1791 = vadd.f32 %v1424, %v1790
    %v1792 = vpop.f32.mrf.mxu0
    %v1793 = vadd.f32 %v1424, %v1792
    %1794 = vmatprep.mubr.bf16.mxu0 %v1558
    %1795 = vmatmul.mubr.bf16.gmra.mxu0 %v1410
    %v1796 = vpop.f32.mrf.mxu0
    %v1797 = vadd.f32 %v1429, %v1796
    %v1798 = vpop.f32.mrf.mxu0
    %v1799 = vadd.f32 %v1429, %v1798
    %v1800 = vpop.f32.mrf.mxu0
    %v1801 = vadd.f32 %v1434, %v1800
    %v1802 = vpop.f32.mrf.mxu0
    %v1803 = vadd.f32 %v1434, %v1802
    %1804 = vdwg.mxu0
    %s1805 = scalar_lea.vmem [#allocation2], 64
    %1806 = vst [vmem:[%s1805] sm:$0xff] %v1787
    %1807 = vst.msk [vmem:[%s1805 + $0x8] sm:$0xff] %vm1166, %v1789
    %1808 = vst [vmem:[%s1805 + $0x10] sm:$0xff] %v1791
    %1809 = vst.msk [vmem:[%s1805 + $0x18] sm:$0xff] %vm1166, %v1793
    %1810 = vst [vmem:[%s1805 + $0x20] sm:$0xff] %v1797
    %1811 = vst.msk [vmem:[%s1805 + $0x28] sm:$0xff] %vm1166, %v1799
    %1812 = vst [vmem:[%s1805 + $0x30] sm:$0xff] %v1801
    %1813 = vst.msk [vmem:[%s1805 + $0x38] sm:$0xff] %vm1166, %v1803
    %s1814 = scalar_lea.vmem %s4, 320
    %v1815 = vld [vmem:[%s1814] sm:$0xff]
    %v1816 = vld [vmem:[%s1814 + $0x8] sm:$0xff]
    %v1817 = vld [vmem:[%s1814 + $0x10] sm:$0xff]
    %v1818 = vld [vmem:[%s1814 + $0x18] sm:$0xff]
    %v1819 = vld [vmem:[%s1814 + $0x20] sm:$0xff]
    %v1820 = vld [vmem:[%s1814 + $0x28] sm:$0xff]
    %v1821 = vld [vmem:[%s1814 + $0x30] sm:$0xff]
    %v1822 = vld [vmem:[%s1814 + $0x38] sm:$0xff]
    %v1823 = vld [vmem:[%s1814 + $0x40] sm:$0xff]
    %v1824 = vld [vmem:[%s1814 + $0x48] sm:$0xff]
    %v1825 = vld [vmem:[%s1814 + $0x50] sm:$0xff]
    %v1826 = vld [vmem:[%s1814 + $0x58] sm:$0xff]
    %v1827 = vld [vmem:[%s1814 + $0x60] sm:$0xff]
    %v1828 = vld [vmem:[%s1814 + $0x68] sm:$0xff]
    %v1829 = vld [vmem:[%s1814 + $0x70] sm:$0xff]
    %v1830 = vld [vmem:[%s1814 + $0x78] sm:$0xff]
    %v1831 = vld [vmem:[%s1814 + $0x80] sm:$0xff]
    %v1832 = vld [vmem:[%s1814 + $0x88] sm:$0xff]
    %v1833 = vld [vmem:[%s1814 + $0x90] sm:$0xff]
    %v1834 = vld [vmem:[%s1814 + $0x98] sm:$0x33]
    %v1855 = vunpack.c.l.b16 %v1815
    %v1856 = vunpack.c.h.b16 %v1815
    %v1857 = vunpack.c.l.b16 %v1816
    %v1858 = vunpack.c.h.b16 %v1816
    %v1859 = vunpack.c.l.b16 %v1817
    %v1860 = vunpack.c.h.b16 %v1817
    %v1861 = vunpack.c.l.b16 %v1818
    %v1862 = vunpack.c.h.b16 %v1818
    %v1863 = vunpack.c.l.b16 %v1819
    %v1864 = vunpack.c.h.b16 %v1819
    %v1865 = vunpack.c.l.b16 %v1820
    %v1866 = vunpack.c.h.b16 %v1820
    %v1867 = vunpack.c.l.b16 %v1821
    %v1868 = vunpack.c.h.b16 %v1821
    %v1869 = vunpack.c.l.b16 %v1822
    %v1870 = vunpack.c.h.b16 %v1822
    %v1871 = vunpack.c.l.b16 %v1823
    %v1872 = vunpack.c.h.b16 %v1823
    %v1873 = vunpack.c.l.b16 %v1824
    %v1874 = vunpack.c.h.b16 %v1824
    %v1875 = vunpack.c.l.b16 %v1825
    %v1876 = vunpack.c.h.b16 %v1825
    %v1877 = vunpack.c.l.b16 %v1826
    %v1878 = vunpack.c.h.b16 %v1826
    %v1879 = vunpack.c.l.b16 %v1827
    %v1880 = vunpack.c.h.b16 %v1827
    %v1881 = vunpack.c.l.b16 %v1828
    %v1882 = vunpack.c.h.b16 %v1828
    %v1883 = vunpack.c.l.b16 %v1829
    %v1884 = vunpack.c.h.b16 %v1829
    %v1885 = vunpack.c.l.b16 %v1830
    %v1886 = vunpack.c.h.b16 %v1830
    %v1887 = vunpack.c.l.b16 %v1831
    %v1888 = vunpack.c.h.b16 %v1831
    %v1889 = vunpack.c.l.b16 %v1832
    %v1890 = vunpack.c.h.b16 %v1832
    %v1891 = vunpack.c.l.b16 %v1833
    %v1892 = vunpack.c.h.b16 %v1833
    %v1893 = vunpack.c.l.b16 %v1834
    %v1894 = vunpack.c.h.b16 %v1834
    %v1895 = vpack.c.b16 %v1857, %v1855
    %v1896 = vpack.c.b16 %v1858, %v1856
    %v1897 = vpack.c.b16 %v1861, %v1859
    %v1898 = vpack.c.b16 %v1862, %v1860
    %v1899 = vpack.c.b16 %v1865, %v1863
    %v1900 = vpack.c.b16 %v1866, %v1864
    %v1901 = vpack.c.b16 %v1869, %v1867
    %v1902 = vpack.c.b16 %v1870, %v1868
    %v1903 = vpack.c.b16 %v1873, %v1871
    %v1904 = vpack.c.b16 %v1874, %v1872
    %v1905 = vpack.c.b16 %v1877, %v1875
    %v1906 = vpack.c.b16 %v1878, %v1876
    %v1907 = vpack.c.b16 %v1881, %v1879
    %v1908 = vpack.c.b16 %v1882, %v1880
    %v1909 = vpack.c.b16 %v1885, %v1883
    %v1910 = vpack.c.b16 %v1886, %v1884
    %v1911 = vpack.c.b16 %v1889, %v1887
    %v1912 = vpack.c.b16 %v1890, %v1888
    %v1913 = vpack.c.b16 %v1893, %v1891
    %v1914 = vpack.c.b16 %v1894, %v1892
    %v1934 = vsel %vm1348, %v1913, 0
    %v1937 = vsel %vm1348, %v1914, 0
    %1939 = vmatprep.subr.bf16.mxu0 %v1910
    %1940 = vmatpush1.bf16.msra.mxu0 %v1909
    %1941 = vmatprep.subr.bf16.mxu0 %v1908
    %1942 = vmatpush1.bf16.msra.mxu0 %v1907
    %1943 = vmatprep.subr.bf16.mxu0 %v1906
    %1944 = vmatpush1.bf16.msra.mxu0 %v1905
    %1945 = vmatprep.subr.bf16.mxu0 %v1904
    %1946 = vmatpush1.bf16.msra.mxu0 %v1903
    %1947 = vmatprep.subr.bf16.mxu0 %v1902
    %1948 = vmatpush1.bf16.msra.mxu0 %v1901
    %1949 = vmatprep.subr.bf16.mxu0 %v1900
    %1950 = vmatpush1.bf16.msra.mxu0 %v1899
    %1951 = vmatprep.subr.bf16.mxu0 %v1898
    %1952 = vmatpush1.bf16.msra.mxu0 %v1897
    %1953 = vmatprep.subr.bf16.mxu0 %v1896
    %1954 = vmatpush1.bf16.msra.mxu0 %v1895
    %1955 = vmatprep.subr.bf16.mxu0 0
    %1956 = vmatpush2.bf16.msra.mxu0 0
    %1957 = vmatprep.subr.bf16.mxu0 0
    %1958 = vmatpush2.bf16.msra.mxu0 0
    %1959 = vmatprep.subr.bf16.mxu0 0
    %1960 = vmatpush2.bf16.msra.mxu0 0
    %1961 = vmatprep.subr.bf16.mxu0 0
    %1962 = vmatpush2.bf16.msra.mxu0 0
    %1963 = vmatprep.subr.bf16.mxu0 0
    %1964 = vmatpush2.bf16.msra.mxu0 0
    %1965 = vmatprep.subr.bf16.mxu0 0
    %1966 = vmatpush2.bf16.msra.mxu0 0
    %1967 = vmatprep.subr.bf16.mxu0 %v1937
    %1968 = vmatpush2.bf16.msra.mxu0 %v1934
    %1969 = vmatprep.subr.bf16.mxu0 %v1912
    %1970 = vmatpush2.bf16.msra.mxu0 %v1911
    %1971 = vmatprep.mubr.bf16.mxu0 %v1555
    %1972 = vmatmul.mubr.bf16.gmra.mxu0 %v1408
    %v1973 = vpop.f32.mrf.mxu0
    %v1974 = vadd.f32 %v1419, %v1973
    %v1975 = vpop.f32.mrf.mxu0
    %v1976 = vadd.f32 %v1419, %v1975
    %v1977 = vpop.f32.mrf.mxu0
    %v1978 = vadd.f32 %v1424, %v1977
    %v1979 = vpop.f32.mrf.mxu0
    %v1980 = vadd.f32 %v1424, %v1979
    %1981 = vmatprep.mubr.bf16.mxu0 %v1558
    %1982 = vmatmul.mubr.bf16.gmra.mxu0 %v1410
    %v1983 = vpop.f32.mrf.mxu0
    %v1984 = vadd.f32 %v1429, %v1983
    %v1985 = vpop.f32.mrf.mxu0
    %v1986 = vadd.f32 %v1429, %v1985
    %v1987 = vpop.f32.mrf.mxu0
    %v1988 = vadd.f32 %v1434, %v1987
    %v1989 = vpop.f32.mrf.mxu0
    %v1990 = vadd.f32 %v1434, %v1989
    %1991 = vdwg.mxu0
    %s1992 = scalar_lea.vmem [#allocation2], 128
    %1993 = vst [vmem:[%s1992] sm:$0xff] %v1974
    %1994 = vst.msk [vmem:[%s1992 + $0x8] sm:$0xff] %vm1166, %v1976
    %1995 = vst [vmem:[%s1992 + $0x10] sm:$0xff] %v1978
    %1996 = vst.msk [vmem:[%s1992 + $0x18] sm:$0xff] %vm1166, %v1980
    %1997 = vst [vmem:[%s1992 + $0x20] sm:$0xff] %v1984
    %1998 = vst.msk [vmem:[%s1992 + $0x28] sm:$0xff] %vm1166, %v1986
    %1999 = vst [vmem:[%s1992 + $0x30] sm:$0xff] %v1988
    %2000 = vst.msk [vmem:[%s1992 + $0x38] sm:$0xff] %vm1166, %v1990
    %s2001 = scalar_lea.vmem %s4, 480
    %v2002 = vld [vmem:[%s2001] sm:$0xff]
    %v2003 = vld [vmem:[%s2001 + $0x8] sm:$0xff]
    %v2004 = vld [vmem:[%s2001 + $0x10] sm:$0xff]
    %v2005 = vld [vmem:[%s2001 + $0x18] sm:$0xff]
    %v2006 = vld [vmem:[%s2001 + $0x20] sm:$0xff]
    %v2007 = vld [vmem:[%s2001 + $0x28] sm:$0xff]
    %v2008 = vld [vmem:[%s2001 + $0x30] sm:$0xff]
    %v2009 = vld [vmem:[%s2001 + $0x38] sm:$0xff]
    %v2010 = vld [vmem:[%s2001 + $0x40] sm:$0xff]
    %v2011 = vld [vmem:[%s2001 + $0x48] sm:$0xff]
    %v2012 = vld [vmem:[%s2001 + $0x50] sm:$0xff]
    %v2013 = vld [vmem:[%s2001 + $0x58] sm:$0xff]
    %v2014 = vld [vmem:[%s2001 + $0x60] sm:$0xff]
    %v2015 = vld [vmem:[%s2001 + $0x68] sm:$0xff]
    %v2016 = vld [vmem:[%s2001 + $0x70] sm:$0xff]
    %v2017 = vld [vmem:[%s2001 + $0x78] sm:$0xff]
    %v2018 = vld [vmem:[%s2001 + $0x80] sm:$0xff]
    %v2019 = vld [vmem:[%s2001 + $0x88] sm:$0xff]
    %v2020 = vld [vmem:[%s2001 + $0x90] sm:$0xff]
    %v2021 = vld [vmem:[%s2001 + $0x98] sm:$0x33]
    %v2042 = vunpack.c.l.b16 %v2002
    %v2043 = vunpack.c.h.b16 %v2002
    %v2044 = vunpack.c.l.b16 %v2003
    %v2045 = vunpack.c.h.b16 %v2003
    %v2046 = vunpack.c.l.b16 %v2004
    %v2047 = vunpack.c.h.b16 %v2004
    %v2048 = vunpack.c.l.b16 %v2005
    %v2049 = vunpack.c.h.b16 %v2005
    %v2050 = vunpack.c.l.b16 %v2006
    %v2051 = vunpack.c.h.b16 %v2006
    %v2052 = vunpack.c.l.b16 %v2007
    %v2053 = vunpack.c.h.b16 %v2007
    %v2054 = vunpack.c.l.b16 %v2008
    %v2055 = vunpack.c.h.b16 %v2008
    %v2056 = vunpack.c.l.b16 %v2009
    %v2057 = vunpack.c.h.b16 %v2009
    %v2058 = vunpack.c.l.b16 %v2010
    %v2059 = vunpack.c.h.b16 %v2010
    %v2060 = vunpack.c.l.b16 %v2011
    %v2061 = vunpack.c.h.b16 %v2011
    %v2062 = vunpack.c.l.b16 %v2012
    %v2063 = vunpack.c.h.b16 %v2012
    %v2064 = vunpack.c.l.b16 %v2013
    %v2065 = vunpack.c.h.b16 %v2013
    %v2066 = vunpack.c.l.b16 %v2014
    %v2067 = vunpack.c.h.b16 %v2014
    %v2068 = vunpack.c.l.b16 %v2015
    %v2069 = vunpack.c.h.b16 %v2015
    %v2070 = vunpack.c.l.b16 %v2016
    %v2071 = vunpack.c.h.b16 %v2016
    %v2072 = vunpack.c.l.b16 %v2017
    %v2073 = vunpack.c.h.b16 %v2017
    %v2074 = vunpack.c.l.b16 %v2018
    %v2075 = vunpack.c.h.b16 %v2018
    %v2076 = vunpack.c.l.b16 %v2019
    %v2077 = vunpack.c.h.b16 %v2019
    %v2078 = vunpack.c.l.b16 %v2020
    %v2079 = vunpack.c.h.b16 %v2020
    %v2080 = vunpack.c.l.b16 %v2021
    %v2081 = vunpack.c.h.b16 %v2021
    %v2082 = vpack.c.b16 %v2044, %v2042
    %v2083 = vpack.c.b16 %v2045, %v2043
    %v2084 = vpack.c.b16 %v2048, %v2046
    %v2085 = vpack.c.b16 %v2049, %v2047
    %v2086 = vpack.c.b16 %v2052, %v2050
    %v2087 = vpack.c.b16 %v2053, %v2051
    %v2088 = vpack.c.b16 %v2056, %v2054
    %v2089 = vpack.c.b16 %v2057, %v2055
    %v2090 = vpack.c.b16 %v2060, %v2058
    %v2091 = vpack.c.b16 %v2061, %v2059
    %v2092 = vpack.c.b16 %v2064, %v2062
    %v2093 = vpack.c.b16 %v2065, %v2063
    %v2094 = vpack.c.b16 %v2068, %v2066
    %v2095 = vpack.c.b16 %v2069, %v2067
    %v2096 = vpack.c.b16 %v2072, %v2070
    %v2097 = vpack.c.b16 %v2073, %v2071
    %v2098 = vpack.c.b16 %v2076, %v2074
    %v2099 = vpack.c.b16 %v2077, %v2075
    %v2100 = vpack.c.b16 %v2080, %v2078
    %v2101 = vpack.c.b16 %v2081, %v2079
    %v2121 = vsel %vm1348, %v2100, 0
    %v2124 = vsel %vm1348, %v2101, 0
    %2126 = vmatprep.subr.bf16.mxu0 %v2097
    %2127 = vmatpush1.bf16.msra.mxu0 %v2096
    %2128 = vmatprep.subr.bf16.mxu0 %v2095
    %2129 = vmatpush1.bf16.msra.mxu0 %v2094
    %2130 = vmatprep.subr.bf16.mxu0 %v2093
    %2131 = vmatpush1.bf16.msra.mxu0 %v2092
    %2132 = vmatprep.subr.bf16.mxu0 %v2091
    %2133 = vmatpush1.bf16.msra.mxu0 %v2090
    %2134 = vmatprep.subr.bf16.mxu0 %v2089
    %2135 = vmatpush1.bf16.msra.mxu0 %v2088
    %2136 = vmatprep.subr.bf16.mxu0 %v2087
    %2137 = vmatpush1.bf16.msra.mxu0 %v2086
    %2138 = vmatprep.subr.bf16.mxu0 %v2085
    %2139 = vmatpush1.bf16.msra.mxu0 %v2084
    %2140 = vmatprep.subr.bf16.mxu0 %v2083
    %2141 = vmatpush1.bf16.msra.mxu0 %v2082
    %2142 = vmatprep.subr.bf16.mxu0 0
    %2143 = vmatpush2.bf16.msra.mxu0 0
    %2144 = vmatprep.subr.bf16.mxu0 0
    %2145 = vmatpush2.bf16.msra.mxu0 0
    %2146 = vmatprep.subr.bf16.mxu0 0
    %2147 = vmatpush2.bf16.msra.mxu0 0
    %2148 = vmatprep.subr.bf16.mxu0 0
    %2149 = vmatpush2.bf16.msra.mxu0 0
    %2150 = vmatprep.subr.bf16.mxu0 0
    %2151 = vmatpush2.bf16.msra.mxu0 0
    %2152 = vmatprep.subr.bf16.mxu0 0
    %2153 = vmatpush2.bf16.msra.mxu0 0
    %2154 = vmatprep.subr.bf16.mxu0 %v2124
    %2155 = vmatpush2.bf16.msra.mxu0 %v2121
    %2156 = vmatprep.subr.bf16.mxu0 %v2099
    %2157 = vmatpush2.bf16.msra.mxu0 %v2098
    %2158 = vmatprep.mubr.bf16.mxu0 %v1555
    %2159 = vmatmul.mubr.bf16.gmra.mxu0 %v1408
    %v2160 = vpop.f32.mrf.mxu0
    %v2161 = vadd.f32 %v1419, %v2160
    %v2162 = vpop.f32.mrf.mxu0
    %v2163 = vadd.f32 %v1419, %v2162
    %v2164 = vpop.f32.mrf.mxu0
    %v2165 = vadd.f32 %v1424, %v2164
    %v2166 = vpop.f32.mrf.mxu0
    %v2167 = vadd.f32 %v1424, %v2166
    %2168 = vmatprep.mubr.bf16.mxu0 %v1558
    %2169 = vmatmul.mubr.bf16.gmra.mxu0 %v1410
    %v2170 = vpop.f32.mrf.mxu0
    %v2171 = vadd.f32 %v1429, %v2170
    %v2172 = vpop.f32.mrf.mxu0
    %v2173 = vadd.f32 %v1429, %v2172
    %v2174 = vpop.f32.mrf.mxu0
    %v2175 = vadd.f32 %v1434, %v2174
    %v2176 = vpop.f32.mrf.mxu0
    %v2177 = vadd.f32 %v1434, %v2176
    %2178 = vdwg.mxu0
    %s2179 = scalar_lea.vmem [#allocation2], 192
    %2180 = vst [vmem:[%s2179] sm:$0xff] %v2161
    %2181 = vst.msk [vmem:[%s2179 + $0x8] sm:$0xff] %vm1166, %v2163
    %2182 = vst [vmem:[%s2179 + $0x10] sm:$0xff] %v2165
    %2183 = vst.msk [vmem:[%s2179 + $0x18] sm:$0xff] %vm1166, %v2167
    %2184 = vst [vmem:[%s2179 + $0x20] sm:$0xff] %v2171
    %2185 = vst.msk [vmem:[%s2179 + $0x28] sm:$0xff] %vm1166, %v2173
    %2186 = vst [vmem:[%s2179 + $0x30] sm:$0xff] %v2175
    %2187 = vst.msk [vmem:[%s2179 + $0x38] sm:$0xff] %vm1166, %v2177
    %s2188 = scalar_lea.vmem %s4, 640
    %v2189 = vld [vmem:[%s2188] sm:$0xff]
    %v2190 = vld [vmem:[%s2188 + $0x8] sm:$0xff]
    %v2191 = vld [vmem:[%s2188 + $0x10] sm:$0xff]
    %v2192 = vld [vmem:[%s2188 + $0x18] sm:$0xff]
    %v2193 = vld [vmem:[%s2188 + $0x20] sm:$0xff]
    %v2194 = vld [vmem:[%s2188 + $0x28] sm:$0xff]
    %v2195 = vld [vmem:[%s2188 + $0x30] sm:$0xff]
    %v2196 = vld [vmem:[%s2188 + $0x38] sm:$0xff]
    %v2197 = vld [vmem:[%s2188 + $0x40] sm:$0xff]
    %v2198 = vld [vmem:[%s2188 + $0x48] sm:$0xff]
    %v2199 = vld [vmem:[%s2188 + $0x50] sm:$0xff]
    %v2200 = vld [vmem:[%s2188 + $0x58] sm:$0xff]
    %v2201 = vld [vmem:[%s2188 + $0x60] sm:$0xff]
    %v2202 = vld [vmem:[%s2188 + $0x68] sm:$0xff]
    %v2203 = vld [vmem:[%s2188 + $0x70] sm:$0xff]
    %v2204 = vld [vmem:[%s2188 + $0x78] sm:$0xff]
    %v2205 = vld [vmem:[%s2188 + $0x80] sm:$0xff]
    %v2206 = vld [vmem:[%s2188 + $0x88] sm:$0xff]
    %v2207 = vld [vmem:[%s2188 + $0x90] sm:$0xff]
    %v2208 = vld [vmem:[%s2188 + $0x98] sm:$0x33]
    %v2229 = vunpack.c.l.b16 %v2189
    %v2230 = vunpack.c.h.b16 %v2189
    %v2231 = vunpack.c.l.b16 %v2190
    %v2232 = vunpack.c.h.b16 %v2190
    %v2233 = vunpack.c.l.b16 %v2191
    %v2234 = vunpack.c.h.b16 %v2191
    %v2235 = vunpack.c.l.b16 %v2192
    %v2236 = vunpack.c.h.b16 %v2192
    %v2237 = vunpack.c.l.b16 %v2193
    %v2238 = vunpack.c.h.b16 %v2193
    %v2239 = vunpack.c.l.b16 %v2194
    %v2240 = vunpack.c.h.b16 %v2194
    %v2241 = vunpack.c.l.b16 %v2195
    %v2242 = vunpack.c.h.b16 %v2195
    %v2243 = vunpack.c.l.b16 %v2196
    %v2244 = vunpack.c.h.b16 %v2196
    %v2245 = vunpack.c.l.b16 %v2197
    %v2246 = vunpack.c.h.b16 %v2197
    %v2247 = vunpack.c.l.b16 %v2198
    %v2248 = vunpack.c.h.b16 %v2198
    %v2249 = vunpack.c.l.b16 %v2199
    %v2250 = vunpack.c.h.b16 %v2199
    %v2251 = vunpack.c.l.b16 %v2200
    %v2252 = vunpack.c.h.b16 %v2200
    %v2253 = vunpack.c.l.b16 %v2201
    %v2254 = vunpack.c.h.b16 %v2201
    %v2255 = vunpack.c.l.b16 %v2202
    %v2256 = vunpack.c.h.b16 %v2202
    %v2257 = vunpack.c.l.b16 %v2203
    %v2258 = vunpack.c.h.b16 %v2203
    %v2259 = vunpack.c.l.b16 %v2204
    %v2260 = vunpack.c.h.b16 %v2204
    %v2261 = vunpack.c.l.b16 %v2205
    %v2262 = vunpack.c.h.b16 %v2205
    %v2263 = vunpack.c.l.b16 %v2206
    %v2264 = vunpack.c.h.b16 %v2206
    %v2265 = vunpack.c.l.b16 %v2207
    %v2266 = vunpack.c.h.b16 %v2207
    %v2267 = vunpack.c.l.b16 %v2208
    %v2268 = vunpack.c.h.b16 %v2208
    %v2269 = vpack.c.b16 %v2231, %v2229
    %v2270 = vpack.c.b16 %v2232, %v2230
    %v2271 = vpack.c.b16 %v2235, %v2233
    %v2272 = vpack.c.b16 %v2236, %v2234
    %v2273 = vpack.c.b16 %v2239, %v2237
    %v2274 = vpack.c.b16 %v2240, %v2238
    %v2275 = vpack.c.b16 %v2243, %v2241
    %v2276 = vpack.c.b16 %v2244, %v2242
    %v2277 = vpack.c.b16 %v2247, %v2245
    %v2278 = vpack.c.b16 %v2248, %v2246
    %v2279 = vpack.c.b16 %v2251, %v2249
    %v2280 = vpack.c.b16 %v2252, %v2250
    %v2281 = vpack.c.b16 %v2255, %v2253
    %v2282 = vpack.c.b16 %v2256, %v2254
    %v2283 = vpack.c.b16 %v2259, %v2257
    %v2284 = vpack.c.b16 %v2260, %v2258
    %v2285 = vpack.c.b16 %v2263, %v2261
    %v2286 = vpack.c.b16 %v2264, %v2262
    %v2287 = vpack.c.b16 %v2267, %v2265
    %v2288 = vpack.c.b16 %v2268, %v2266
    %v2308 = vsel %vm1348, %v2287, 0
    %v2311 = vsel %vm1348, %v2288, 0
    %2313 = vmatprep.subr.bf16.mxu0 %v2284
    %2314 = vmatpush1.bf16.msra.mxu0 %v2283
    %2315 = vmatprep.subr.bf16.mxu0 %v2282
    %2316 = vmatpush1.bf16.msra.mxu0 %v2281
    %2317 = vmatprep.subr.bf16.mxu0 %v2280
    %2318 = vmatpush1.bf16.msra.mxu0 %v2279
    %2319 = vmatprep.subr.bf16.mxu0 %v2278
    %2320 = vmatpush1.bf16.msra.mxu0 %v2277
    %2321 = vmatprep.subr.bf16.mxu0 %v2276
    %2322 = vmatpush1.bf16.msra.mxu0 %v2275
    %2323 = vmatprep.subr.bf16.mxu0 %v2274
    %2324 = vmatpush1.bf16.msra.mxu0 %v2273
    %2325 = vmatprep.subr.bf16.mxu0 %v2272
    %2326 = vmatpush1.bf16.msra.mxu0 %v2271
    %2327 = vmatprep.subr.bf16.mxu0 %v2270
    %2328 = vmatpush1.bf16.msra.mxu0 %v2269
    %2329 = vmatprep.subr.bf16.mxu0 0
    %2330 = vmatpush2.bf16.msra.mxu0 0
    %2331 = vmatprep.subr.bf16.mxu0 0
    %2332 = vmatpush2.bf16.msra.mxu0 0
    %2333 = vmatprep.subr.bf16.mxu0 0
    %2334 = vmatpush2.bf16.msra.mxu0 0
    %2335 = vmatprep.subr.bf16.mxu0 0
    %2336 = vmatpush2.bf16.msra.mxu0 0
    %2337 = vmatprep.subr.bf16.mxu0 0
    %2338 = vmatpush2.bf16.msra.mxu0 0
    %2339 = vmatprep.subr.bf16.mxu0 0
    %2340 = vmatpush2.bf16.msra.mxu0 0
    %2341 = vmatprep.subr.bf16.mxu0 %v2311
    %2342 = vmatpush2.bf16.msra.mxu0 %v2308
    %2343 = vmatprep.subr.bf16.mxu0 %v2286
    %2344 = vmatpush2.bf16.msra.mxu0 %v2285
    %2345 = vmatprep.mubr.bf16.mxu0 %v1555
    %2346 = vmatmul.mubr.bf16.gmra.mxu0 %v1408
    %v2347 = vpop.f32.mrf.mxu0
    %v2348 = vadd.f32 %v1419, %v2347
    %v2349 = vpop.f32.mrf.mxu0
    %v2350 = vadd.f32 %v1419, %v2349
    %v2351 = vpop.f32.mrf.mxu0
    %v2352 = vadd.f32 %v1424, %v2351
    %v2353 = vpop.f32.mrf.mxu0
    %v2354 = vadd.f32 %v1424, %v2353
    %2355 = vmatprep.mubr.bf16.mxu0 %v1558
    %2356 = vmatmul.mubr.bf16.gmra.mxu0 %v1410
    %v2357 = vpop.f32.mrf.mxu0
    %v2358 = vadd.f32 %v1429, %v2357
    %v2359 = vpop.f32.mrf.mxu0
    %v2360 = vadd.f32 %v1429, %v2359
    %v2361 = vpop.f32.mrf.mxu0
    %v2362 = vadd.f32 %v1434, %v2361
    %v2363 = vpop.f32.mrf.mxu0
    %v2364 = vadd.f32 %v1434, %v2363
    %2365 = vdwg.mxu0
    %s2366 = scalar_lea.vmem [#allocation2], 256
    %2367 = vst [vmem:[%s2366] sm:$0xff] %v2348
    %2368 = vst.msk [vmem:[%s2366 + $0x8] sm:$0xff] %vm1166, %v2350
    %2369 = vst [vmem:[%s2366 + $0x10] sm:$0xff] %v2352
    %2370 = vst.msk [vmem:[%s2366 + $0x18] sm:$0xff] %vm1166, %v2354
    %2371 = vst [vmem:[%s2366 + $0x20] sm:$0xff] %v2358
    %2372 = vst.msk [vmem:[%s2366 + $0x28] sm:$0xff] %vm1166, %v2360
    %2373 = vst [vmem:[%s2366 + $0x30] sm:$0xff] %v2362
    %2374 = vst.msk [vmem:[%s2366 + $0x38] sm:$0xff] %vm1166, %v2364
    %s2375 = scalar_lea.vmem %s4, 800
    %v2376 = vld [vmem:[%s2375] sm:$0xff]
    %v2377 = vld [vmem:[%s2375 + $0x8] sm:$0xff]
    %v2378 = vld [vmem:[%s2375 + $0x10] sm:$0xff]
    %v2379 = vld [vmem:[%s2375 + $0x18] sm:$0xff]
    %v2380 = vld [vmem:[%s2375 + $0x20] sm:$0xff]
    %v2381 = vld [vmem:[%s2375 + $0x28] sm:$0xff]
    %v2382 = vld [vmem:[%s2375 + $0x30] sm:$0xff]
    %v2383 = vld [vmem:[%s2375 + $0x38] sm:$0xff]
    %v2384 = vld [vmem:[%s2375 + $0x40] sm:$0xff]
    %v2385 = vld [vmem:[%s2375 + $0x48] sm:$0xff]
    %v2386 = vld [vmem:[%s2375 + $0x50] sm:$0xff]
    %v2387 = vld [vmem:[%s2375 + $0x58] sm:$0xff]
    %v2388 = vld [vmem:[%s2375 + $0x60] sm:$0xff]
    %v2389 = vld [vmem:[%s2375 + $0x68] sm:$0xff]
    %v2390 = vld [vmem:[%s2375 + $0x70] sm:$0xff]
    %v2391 = vld [vmem:[%s2375 + $0x78] sm:$0xff]
    %v2392 = vld [vmem:[%s2375 + $0x80] sm:$0xff]
    %v2393 = vld [vmem:[%s2375 + $0x88] sm:$0xff]
    %v2394 = vld [vmem:[%s2375 + $0x90] sm:$0xff]
    %v2395 = vld [vmem:[%s2375 + $0x98] sm:$0x33]
    %v2416 = vunpack.c.l.b16 %v2376
    %v2417 = vunpack.c.h.b16 %v2376
    %v2418 = vunpack.c.l.b16 %v2377
    %v2419 = vunpack.c.h.b16 %v2377
    %v2420 = vunpack.c.l.b16 %v2378
    %v2421 = vunpack.c.h.b16 %v2378
    %v2422 = vunpack.c.l.b16 %v2379
    %v2423 = vunpack.c.h.b16 %v2379
    %v2424 = vunpack.c.l.b16 %v2380
    %v2425 = vunpack.c.h.b16 %v2380
    %v2426 = vunpack.c.l.b16 %v2381
    %v2427 = vunpack.c.h.b16 %v2381
    %v2428 = vunpack.c.l.b16 %v2382
    %v2429 = vunpack.c.h.b16 %v2382
    %v2430 = vunpack.c.l.b16 %v2383
    %v2431 = vunpack.c.h.b16 %v2383
    %v2432 = vunpack.c.l.b16 %v2384
    %v2433 = vunpack.c.h.b16 %v2384
    %v2434 = vunpack.c.l.b16 %v2385
    %v2435 = vunpack.c.h.b16 %v2385
    %v2436 = vunpack.c.l.b16 %v2386
    %v2437 = vunpack.c.h.b16 %v2386
    %v2438 = vunpack.c.l.b16 %v2387
    %v2439 = vunpack.c.h.b16 %v2387
    %v2440 = vunpack.c.l.b16 %v2388
    %v2441 = vunpack.c.h.b16 %v2388
    %v2442 = vunpack.c.l.b16 %v2389
    %v2443 = vunpack.c.h.b16 %v2389
    %v2444 = vunpack.c.l.b16 %v2390
    %v2445 = vunpack.c.h.b16 %v2390
    %v2446 = vunpack.c.l.b16 %v2391
    %v2447 = vunpack.c.h.b16 %v2391
    %v2448 = vunpack.c.l.b16 %v2392
    %v2449 = vunpack.c.h.b16 %v2392
    %v2450 = vunpack.c.l.b16 %v2393
    %v2451 = vunpack.c.h.b16 %v2393
    %v2452 = vunpack.c.l.b16 %v2394
    %v2453 = vunpack.c.h.b16 %v2394
    %v2454 = vunpack.c.l.b16 %v2395
    %v2455 = vunpack.c.h.b16 %v2395
    %v2456 = vpack.c.b16 %v2418, %v2416
    %v2457 = vpack.c.b16 %v2419, %v2417
    %v2458 = vpack.c.b16 %v2422, %v2420
    %v2459 = vpack.c.b16 %v2423, %v2421
    %v2460 = vpack.c.b16 %v2426, %v2424
    %v2461 = vpack.c.b16 %v2427, %v2425
    %v2462 = vpack.c.b16 %v2430, %v2428
    %v2463 = vpack.c.b16 %v2431, %v2429
    %v2464 = vpack.c.b16 %v2434, %v2432
    %v2465 = vpack.c.b16 %v2435, %v2433
    %v2466 = vpack.c.b16 %v2438, %v2436
    %v2467 = vpack.c.b16 %v2439, %v2437
    %v2468 = vpack.c.b16 %v2442, %v2440
    %v2469 = vpack.c.b16 %v2443, %v2441
    %v2470 = vpack.c.b16 %v2446, %v2444
    %v2471 = vpack.c.b16 %v2447, %v2445
    %v2472 = vpack.c.b16 %v2450, %v2448
    %v2473 = vpack.c.b16 %v2451, %v2449
    %v2474 = vpack.c.b16 %v2454, %v2452
    %v2475 = vpack.c.b16 %v2455, %v2453
    %v2495 = vsel %vm1348, %v2474, 0
    %v2498 = vsel %vm1348, %v2475, 0
    %2500 = vmatprep.subr.bf16.mxu0 %v2471
    %2501 = vmatpush1.bf16.msra.mxu0 %v2470
    %2502 = vmatprep.subr.bf16.mxu0 %v2469
    %2503 = vmatpush1.bf16.msra.mxu0 %v2468
    %2504 = vmatprep.subr.bf16.mxu0 %v2467
    %2505 = vmatpush1.bf16.msra.mxu0 %v2466
    %2506 = vmatprep.subr.bf16.mxu0 %v2465
    %2507 = vmatpush1.bf16.msra.mxu0 %v2464
    %2508 = vmatprep.subr.bf16.mxu0 %v2463
    %2509 = vmatpush1.bf16.msra.mxu0 %v2462
    %2510 = vmatprep.subr.bf16.mxu0 %v2461
    %2511 = vmatpush1.bf16.msra.mxu0 %v2460
    %2512 = vmatprep.subr.bf16.mxu0 %v2459
    %2513 = vmatpush1.bf16.msra.mxu0 %v2458
    %2514 = vmatprep.subr.bf16.mxu0 %v2457
    %2515 = vmatpush1.bf16.msra.mxu0 %v2456
    %2516 = vmatprep.subr.bf16.mxu0 0
    %2517 = vmatpush2.bf16.msra.mxu0 0
    %2518 = vmatprep.subr.bf16.mxu0 0
    %2519 = vmatpush2.bf16.msra.mxu0 0
    %2520 = vmatprep.subr.bf16.mxu0 0
    %2521 = vmatpush2.bf16.msra.mxu0 0
    %2522 = vmatprep.subr.bf16.mxu0 0
    %2523 = vmatpush2.bf16.msra.mxu0 0
    %2524 = vmatprep.subr.bf16.mxu0 0
    %2525 = vmatpush2.bf16.msra.mxu0 0
    %2526 = vmatprep.subr.bf16.mxu0 0
    %2527 = vmatpush2.bf16.msra.mxu0 0
    %2528 = vmatprep.subr.bf16.mxu0 %v2498
    %2529 = vmatpush2.bf16.msra.mxu0 %v2495
    %2530 = vmatprep.subr.bf16.mxu0 %v2473
    %2531 = vmatpush2.bf16.msra.mxu0 %v2472
    %2532 = vmatprep.mubr.bf16.mxu0 %v1555
    %2533 = vmatmul.mubr.bf16.gmra.mxu0 %v1408
    %v2534 = vpop.f32.mrf.mxu0
    %v2535 = vadd.f32 %v1419, %v2534
    %v2536 = vpop.f32.mrf.mxu0
    %v2537 = vadd.f32 %v1419, %v2536
    %v2538 = vpop.f32.mrf.mxu0
    %v2539 = vadd.f32 %v1424, %v2538
    %v2540 = vpop.f32.mrf.mxu0
    %v2541 = vadd.f32 %v1424, %v2540
    %2542 = vmatprep.mubr.bf16.mxu0 %v1558
    %2543 = vmatmul.mubr.bf16.gmra.mxu0 %v1410
    %v2544 = vpop.f32.mrf.mxu0
    %v2545 = vadd.f32 %v1429, %v2544
    %v2546 = vpop.f32.mrf.mxu0
    %v2547 = vadd.f32 %v1429, %v2546
    %v2548 = vpop.f32.mrf.mxu0
    %v2549 = vadd.f32 %v1434, %v2548
    %v2550 = vpop.f32.mrf.mxu0
    %v2551 = vadd.f32 %v1434, %v2550
    %2552 = vdwg.mxu0
    %s2553 = scalar_lea.vmem [#allocation2], 320
    %2554 = vst [vmem:[%s2553] sm:$0xff] %v2535
    %2555 = vst.msk [vmem:[%s2553 + $0x8] sm:$0xff] %vm1166, %v2537
    %2556 = vst [vmem:[%s2553 + $0x10] sm:$0xff] %v2539
    %2557 = vst.msk [vmem:[%s2553 + $0x18] sm:$0xff] %vm1166, %v2541
    %2558 = vst [vmem:[%s2553 + $0x20] sm:$0xff] %v2545
    %2559 = vst.msk [vmem:[%s2553 + $0x28] sm:$0xff] %vm1166, %v2547
    %2560 = vst [vmem:[%s2553 + $0x30] sm:$0xff] %v2549
    %2561 = vst.msk [vmem:[%s2553 + $0x38] sm:$0xff] %vm1166, %v2551
    %s2562 = scalar_lea.vmem %s4, 960
    %v2563 = vld [vmem:[%s2562] sm:$0xff]
    %v2564 = vld [vmem:[%s2562 + $0x8] sm:$0xff]
    %v2565 = vld [vmem:[%s2562 + $0x10] sm:$0xff]
    %v2566 = vld [vmem:[%s2562 + $0x18] sm:$0xff]
    %v2567 = vld [vmem:[%s2562 + $0x20] sm:$0xff]
    %v2568 = vld [vmem:[%s2562 + $0x28] sm:$0xff]
    %v2569 = vld [vmem:[%s2562 + $0x30] sm:$0xff]
    %v2570 = vld [vmem:[%s2562 + $0x38] sm:$0xff]
    %v2571 = vld [vmem:[%s2562 + $0x40] sm:$0xff]
    %v2572 = vld [vmem:[%s2562 + $0x48] sm:$0xff]
    %v2573 = vld [vmem:[%s2562 + $0x50] sm:$0xff]
    %v2574 = vld [vmem:[%s2562 + $0x58] sm:$0xff]
    %v2575 = vld [vmem:[%s2562 + $0x60] sm:$0xff]
    %v2576 = vld [vmem:[%s2562 + $0x68] sm:$0xff]
    %v2577 = vld [vmem:[%s2562 + $0x70] sm:$0xff]
    %v2578 = vld [vmem:[%s2562 + $0x78] sm:$0xff]
    %v2579 = vld [vmem:[%s2562 + $0x80] sm:$0xff]
    %v2580 = vld [vmem:[%s2562 + $0x88] sm:$0xff]
    %v2581 = vld [vmem:[%s2562 + $0x90] sm:$0xff]
    %v2582 = vld [vmem:[%s2562 + $0x98] sm:$0x33]
    %v2603 = vunpack.c.l.b16 %v2563
    %v2604 = vunpack.c.h.b16 %v2563
    %v2605 = vunpack.c.l.b16 %v2564
    %v2606 = vunpack.c.h.b16 %v2564
    %v2607 = vunpack.c.l.b16 %v2565
    %v2608 = vunpack.c.h.b16 %v2565
    %v2609 = vunpack.c.l.b16 %v2566
    %v2610 = vunpack.c.h.b16 %v2566
    %v2611 = vunpack.c.l.b16 %v2567
    %v2612 = vunpack.c.h.b16 %v2567
    %v2613 = vunpack.c.l.b16 %v2568
    %v2614 = vunpack.c.h.b16 %v2568
    %v2615 = vunpack.c.l.b16 %v2569
    %v2616 = vunpack.c.h.b16 %v2569
    %v2617 = vunpack.c.l.b16 %v2570
    %v2618 = vunpack.c.h.b16 %v2570
    %v2619 = vunpack.c.l.b16 %v2571
    %v2620 = vunpack.c.h.b16 %v2571
    %v2621 = vunpack.c.l.b16 %v2572
    %v2622 = vunpack.c.h.b16 %v2572
    %v2623 = vunpack.c.l.b16 %v2573
    %v2624 = vunpack.c.h.b16 %v2573
    %v2625 = vunpack.c.l.b16 %v2574
    %v2626 = vunpack.c.h.b16 %v2574
    %v2627 = vunpack.c.l.b16 %v2575
    %v2628 = vunpack.c.h.b16 %v2575
    %v2629 = vunpack.c.l.b16 %v2576
    %v2630 = vunpack.c.h.b16 %v2576
    %v2631 = vunpack.c.l.b16 %v2577
    %v2632 = vunpack.c.h.b16 %v2577
    %v2633 = vunpack.c.l.b16 %v2578
    %v2634 = vunpack.c.h.b16 %v2578
    %v2635 = vunpack.c.l.b16 %v2579
    %v2636 = vunpack.c.h.b16 %v2579
    %v2637 = vunpack.c.l.b16 %v2580
    %v2638 = vunpack.c.h.b16 %v2580
    %v2639 = vunpack.c.l.b16 %v2581
    %v2640 = vunpack.c.h.b16 %v2581
    %v2641 = vunpack.c.l.b16 %v2582
    %v2642 = vunpack.c.h.b16 %v2582
    %v2643 = vpack.c.b16 %v2605, %v2603
    %v2644 = vpack.c.b16 %v2606, %v2604
    %v2645 = vpack.c.b16 %v2609, %v2607
    %v2646 = vpack.c.b16 %v2610, %v2608
    %v2647 = vpack.c.b16 %v2613, %v2611
    %v2648 = vpack.c.b16 %v2614, %v2612
    %v2649 = vpack.c.b16 %v2617, %v2615
    %v2650 = vpack.c.b16 %v2618, %v2616
    %v2651 = vpack.c.b16 %v2621, %v2619
    %v2652 = vpack.c.b16 %v2622, %v2620
    %v2653 = vpack.c.b16 %v2625, %v2623
    %v2654 = vpack.c.b16 %v2626, %v2624
    %v2655 = vpack.c.b16 %v2629, %v2627
    %v2656 = vpack.c.b16 %v2630, %v2628
    %v2657 = vpack.c.b16 %v2633, %v2631
    %v2658 = vpack.c.b16 %v2634, %v2632
    %v2659 = vpack.c.b16 %v2637, %v2635
    %v2660 = vpack.c.b16 %v2638, %v2636
    %v2661 = vpack.c.b16 %v2641, %v2639
    %v2662 = vpack.c.b16 %v2642, %v2640
    %v2682 = vsel %vm1348, %v2661, 0
    %v2685 = vsel %vm1348, %v2662, 0
    %2687 = vmatprep.subr.bf16.mxu0 %v2658
    %2688 = vmatpush1.bf16.msra.mxu0 %v2657
    %2689 = vmatprep.subr.bf16.mxu0 %v2656
    %2690 = vmatpush1.bf16.msra.mxu0 %v2655
    %2691 = vmatprep.subr.bf16.mxu0 %v2654
    %2692 = vmatpush1.bf16.msra.mxu0 %v2653
    %2693 = vmatprep.subr.bf16.mxu0 %v2652
    %2694 = vmatpush1.bf16.msra.mxu0 %v2651
    %2695 = vmatprep.subr.bf16.mxu0 %v2650
    %2696 = vmatpush1.bf16.msra.mxu0 %v2649
    %2697 = vmatprep.subr.bf16.mxu0 %v2648
    %2698 = vmatpush1.bf16.msra.mxu0 %v2647
    %2699 = vmatprep.subr.bf16.mxu0 %v2646
    %2700 = vmatpush1.bf16.msra.mxu0 %v2645
    %2701 = vmatprep.subr.bf16.mxu0 %v2644
    %2702 = vmatpush1.bf16.msra.mxu0 %v2643
    %2703 = vmatprep.subr.bf16.mxu0 0
    %2704 = vmatpush2.bf16.msra.mxu0 0
    %2705 = vmatprep.subr.bf16.mxu0 0
    %2706 = vmatpush2.bf16.msra.mxu0 0
    %2707 = vmatprep.subr.bf16.mxu0 0
    %2708 = vmatpush2.bf16.msra.mxu0 0
    %2709 = vmatprep.subr.bf16.mxu0 0
    %2710 = vmatpush2.bf16.msra.mxu0 0
    %2711 = vmatprep.subr.bf16.mxu0 0
    %2712 = vmatpush2.bf16.msra.mxu0 0
    %2713 = vmatprep.subr.bf16.mxu0 0
    %2714 = vmatpush2.bf16.msra.mxu0 0
    %2715 = vmatprep.subr.bf16.mxu0 %v2685
    %2716 = vmatpush2.bf16.msra.mxu0 %v2682
    %2717 = vmatprep.subr.bf16.mxu0 %v2660
    %2718 = vmatpush2.bf16.msra.mxu0 %v2659
    %2719 = vmatprep.mubr.bf16.mxu0 %v1555
    %2720 = vmatmul.mubr.bf16.gmra.mxu0 %v1408
    %v2721 = vpop.f32.mrf.mxu0
    %v2722 = vadd.f32 %v1419, %v2721
    %v2723 = vpop.f32.mrf.mxu0
    %v2724 = vadd.f32 %v1419, %v2723
    %v2725 = vpop.f32.mrf.mxu0
    %v2726 = vadd.f32 %v1424, %v2725
    %v2727 = vpop.f32.mrf.mxu0
    %v2728 = vadd.f32 %v1424, %v2727
    %2729 = vmatprep.mubr.bf16.mxu0 %v1558
    %2730 = vmatmul.mubr.bf16.gmra.mxu0 %v1410
    %v2731 = vpop.f32.mrf.mxu0
    %v2732 = vadd.f32 %v1429, %v2731
    %v2733 = vpop.f32.mrf.mxu0
    %v2734 = vadd.f32 %v1429, %v2733
    %v2735 = vpop.f32.mrf.mxu0
    %v2736 = vadd.f32 %v1434, %v2735
    %v2737 = vpop.f32.mrf.mxu0
    %v2738 = vadd.f32 %v1434, %v2737
    %2739 = vdwg.mxu0
    %s2740 = scalar_lea.vmem [#allocation2], 384
    %2741 = vst [vmem:[%s2740] sm:$0xff] %v2722
    %2742 = vst.msk [vmem:[%s2740 + $0x8] sm:$0xff] %vm1166, %v2724
    %2743 = vst [vmem:[%s2740 + $0x10] sm:$0xff] %v2726
    %2744 = vst.msk [vmem:[%s2740 + $0x18] sm:$0xff] %vm1166, %v2728
    %2745 = vst [vmem:[%s2740 + $0x20] sm:$0xff] %v2732
    %2746 = vst.msk [vmem:[%s2740 + $0x28] sm:$0xff] %vm1166, %v2734
    %2747 = vst [vmem:[%s2740 + $0x30] sm:$0xff] %v2736
    %2748 = vst.msk [vmem:[%s2740 + $0x38] sm:$0xff] %vm1166, %v2738
    %s2749 = scalar_lea.vmem %s4, 1120
    %v2750 = vld [vmem:[%s2749] sm:$0xff]
    %v2751 = vld [vmem:[%s2749 + $0x8] sm:$0xff]
    %v2752 = vld [vmem:[%s2749 + $0x10] sm:$0xff]
    %v2753 = vld [vmem:[%s2749 + $0x18] sm:$0xff]
    %v2754 = vld [vmem:[%s2749 + $0x20] sm:$0xff]
    %v2755 = vld [vmem:[%s2749 + $0x28] sm:$0xff]
    %v2756 = vld [vmem:[%s2749 + $0x30] sm:$0xff]
    %v2757 = vld [vmem:[%s2749 + $0x38] sm:$0xff]
    %v2758 = vld [vmem:[%s2749 + $0x40] sm:$0xff]
    %v2759 = vld [vmem:[%s2749 + $0x48] sm:$0xff]
    %v2760 = vld [vmem:[%s2749 + $0x50] sm:$0xff]
    %v2761 = vld [vmem:[%s2749 + $0x58] sm:$0xff]
    %v2762 = vld [vmem:[%s2749 + $0x60] sm:$0xff]
    %v2763 = vld [vmem:[%s2749 + $0x68] sm:$0xff]
    %v2764 = vld [vmem:[%s2749 + $0x70] sm:$0xff]
    %v2765 = vld [vmem:[%s2749 + $0x78] sm:$0xff]
    %v2766 = vld [vmem:[%s2749 + $0x80] sm:$0xff]
    %v2767 = vld [vmem:[%s2749 + $0x88] sm:$0xff]
    %v2768 = vld [vmem:[%s2749 + $0x90] sm:$0xff]
    %v2769 = vld [vmem:[%s2749 + $0x98] sm:$0x33]
    %v2790 = vunpack.c.l.b16 %v2750
    %v2791 = vunpack.c.h.b16 %v2750
    %v2792 = vunpack.c.l.b16 %v2751
    %v2793 = vunpack.c.h.b16 %v2751
    %v2794 = vunpack.c.l.b16 %v2752
    %v2795 = vunpack.c.h.b16 %v2752
    %v2796 = vunpack.c.l.b16 %v2753
    %v2797 = vunpack.c.h.b16 %v2753
    %v2798 = vunpack.c.l.b16 %v2754
    %v2799 = vunpack.c.h.b16 %v2754
    %v2800 = vunpack.c.l.b16 %v2755
    %v2801 = vunpack.c.h.b16 %v2755
    %v2802 = vunpack.c.l.b16 %v2756
    %v2803 = vunpack.c.h.b16 %v2756
    %v2804 = vunpack.c.l.b16 %v2757
    %v2805 = vunpack.c.h.b16 %v2757
    %v2806 = vunpack.c.l.b16 %v2758
    %v2807 = vunpack.c.h.b16 %v2758
    %v2808 = vunpack.c.l.b16 %v2759
    %v2809 = vunpack.c.h.b16 %v2759
    %v2810 = vunpack.c.l.b16 %v2760
    %v2811 = vunpack.c.h.b16 %v2760
    %v2812 = vunpack.c.l.b16 %v2761
    %v2813 = vunpack.c.h.b16 %v2761
    %v2814 = vunpack.c.l.b16 %v2762
    %v2815 = vunpack.c.h.b16 %v2762
    %v2816 = vunpack.c.l.b16 %v2763
    %v2817 = vunpack.c.h.b16 %v2763
    %v2818 = vunpack.c.l.b16 %v2764
    %v2819 = vunpack.c.h.b16 %v2764
    %v2820 = vunpack.c.l.b16 %v2765
    %v2821 = vunpack.c.h.b16 %v2765
    %v2822 = vunpack.c.l.b16 %v2766
    %v2823 = vunpack.c.h.b16 %v2766
    %v2824 = vunpack.c.l.b16 %v2767
    %v2825 = vunpack.c.h.b16 %v2767
    %v2826 = vunpack.c.l.b16 %v2768
    %v2827 = vunpack.c.h.b16 %v2768
    %v2828 = vunpack.c.l.b16 %v2769
    %v2829 = vunpack.c.h.b16 %v2769
    %v2830 = vpack.c.b16 %v2792, %v2790
    %v2831 = vpack.c.b16 %v2793, %v2791
    %v2832 = vpack.c.b16 %v2796, %v2794
    %v2833 = vpack.c.b16 %v2797, %v2795
    %v2834 = vpack.c.b16 %v2800, %v2798
    %v2835 = vpack.c.b16 %v2801, %v2799
    %v2836 = vpack.c.b16 %v2804, %v2802
    %v2837 = vpack.c.b16 %v2805, %v2803
    %v2838 = vpack.c.b16 %v2808, %v2806
    %v2839 = vpack.c.b16 %v2809, %v2807
    %v2840 = vpack.c.b16 %v2812, %v2810
    %v2841 = vpack.c.b16 %v2813, %v2811
    %v2842 = vpack.c.b16 %v2816, %v2814
    %v2843 = vpack.c.b16 %v2817, %v2815
    %v2844 = vpack.c.b16 %v2820, %v2818
    %v2845 = vpack.c.b16 %v2821, %v2819
    %v2846 = vpack.c.b16 %v2824, %v2822
    %v2847 = vpack.c.b16 %v2825, %v2823
    %v2848 = vpack.c.b16 %v2828, %v2826
    %v2849 = vpack.c.b16 %v2829, %v2827
    %v2869 = vsel %vm1348, %v2848, 0
    %v2872 = vsel %vm1348, %v2849, 0
    %2874 = vmatprep.subr.bf16.mxu0 %v2845
    %2875 = vmatpush1.bf16.msra.mxu0 %v2844
    %2876 = vmatprep.subr.bf16.mxu0 %v2843
    %2877 = vmatpush1.bf16.msra.mxu0 %v2842
    %2878 = vmatprep.subr.bf16.mxu0 %v2841
    %2879 = vmatpush1.bf16.msra.mxu0 %v2840
    %2880 = vmatprep.subr.bf16.mxu0 %v2839
    %2881 = vmatpush1.bf16.msra.mxu0 %v2838
    %2882 = vmatprep.subr.bf16.mxu0 %v2837
    %2883 = vmatpush1.bf16.msra.mxu0 %v2836
    %2884 = vmatprep.subr.bf16.mxu0 %v2835
    %2885 = vmatpush1.bf16.msra.mxu0 %v2834
    %2886 = vmatprep.subr.bf16.mxu0 %v2833
    %2887 = vmatpush1.bf16.msra.mxu0 %v2832
    %2888 = vmatprep.subr.bf16.mxu0 %v2831
    %2889 = vmatpush1.bf16.msra.mxu0 %v2830
    %2890 = vmatprep.subr.bf16.mxu0 0
    %2891 = vmatpush2.bf16.msra.mxu0 0
    %2892 = vmatprep.subr.bf16.mxu0 0
    %2893 = vmatpush2.bf16.msra.mxu0 0
    %2894 = vmatprep.subr.bf16.mxu0 0
    %2895 = vmatpush2.bf16.msra.mxu0 0
    %2896 = vmatprep.subr.bf16.mxu0 0
    %2897 = vmatpush2.bf16.msra.mxu0 0
    %2898 = vmatprep.subr.bf16.mxu0 0
    %2899 = vmatpush2.bf16.msra.mxu0 0
    %2900 = vmatprep.subr.bf16.mxu0 0
    %2901 = vmatpush2.bf16.msra.mxu0 0
    %2902 = vmatprep.subr.bf16.mxu0 %v2872
    %2903 = vmatpush2.bf16.msra.mxu0 %v2869
    %2904 = vmatprep.subr.bf16.mxu0 %v2847
    %2905 = vmatpush2.bf16.msra.mxu0 %v2846
    %2906 = vmatprep.mubr.bf16.mxu0 %v1555
    %2907 = vmatmul.mubr.bf16.gmra.mxu0 %v1408
    %v2908 = vpop.f32.mrf.mxu0
    %v2909 = vadd.f32 %v1419, %v2908
    %v2910 = vpop.f32.mrf.mxu0
    %v2911 = vadd.f32 %v1419, %v2910
    %v2912 = vpop.f32.mrf.mxu0
    %v2913 = vadd.f32 %v1424, %v2912
    %v2914 = vpop.f32.mrf.mxu0
    %v2915 = vadd.f32 %v1424, %v2914
    %2916 = vmatprep.mubr.bf16.mxu0 %v1558
    %2917 = vmatmul.mubr.bf16.gmra.mxu0 %v1410
    %v2918 = vpop.f32.mrf.mxu0
    %v2919 = vadd.f32 %v1429, %v2918
    %v2920 = vpop.f32.mrf.mxu0
    %v2921 = vadd.f32 %v1429, %v2920
    %v2922 = vpop.f32.mrf.mxu0
    %v2923 = vadd.f32 %v1434, %v2922
    %v2924 = vpop.f32.mrf.mxu0
    %v2925 = vadd.f32 %v1434, %v2924
    %2926 = vdwg.mxu0
    %s2927 = scalar_lea.vmem [#allocation2], 448
    %2928 = vst [vmem:[%s2927] sm:$0xff] %v2909
    %2929 = vst.msk [vmem:[%s2927 + $0x8] sm:$0xff] %vm1166, %v2911
    %2930 = vst [vmem:[%s2927 + $0x10] sm:$0xff] %v2913
    %2931 = vst.msk [vmem:[%s2927 + $0x18] sm:$0xff] %vm1166, %v2915
    %2932 = vst [vmem:[%s2927 + $0x20] sm:$0xff] %v2919
    %2933 = vst.msk [vmem:[%s2927 + $0x28] sm:$0xff] %vm1166, %v2921
    %2934 = vst [vmem:[%s2927 + $0x30] sm:$0xff] %v2923
    %2935 = vst.msk [vmem:[%s2927 + $0x38] sm:$0xff] %vm1166, %v2925
    %v2936 = vld [vmem:[%s6] sm:$0xff]
    %v2937 = vld [vmem:[%s6 + $0x8] sm:$0xff]
    %v2938 = vld [vmem:[%s6 + $0x10] sm:$0xff]
    %v2939 = vld [vmem:[%s6 + $0x18] sm:$0xff]
    %v2940 = vld [vmem:[#allocation2] sm:$0xff]
    %v2941 = vld [vmem:[#allocation2 + $0x8] sm:$0xff]
    %v2942 = vld [vmem:[#allocation2 + $0x20] sm:$0xff]
    %v2943 = vld [vmem:[#allocation2 + $0x28] sm:$0xff]
    %v2944 = vld [vmem:[#allocation2 + $0x30] sm:$0xff]
    %v2945 = vld [vmem:[#allocation2 + $0x38] sm:$0xff]
    %v2946 = vxor.u32 %v2940, 2147483648
    %v2947 = vxor.u32 %v2941, 2147483648
    %v2948 = vmul.f32 %v2946, 1.442695
    %v2949 = vpow.pop %v2948
    %v2950 = vmul.f32 %v2947, 1.442695
    %v2951 = vpow.pop %v2950
    %v2952 = vadd.f32 %v2949, 1.0
    %v2953 = vadd.f32 %v2951, 1.0
    %v2954 = vrcp.pop %v2952
    %v2955 = vmul.f32 1.0, %v2954
    %v2956 = vrcp.pop %v2953
    %v2957 = vmul.f32 1.0, %v2956
    %v2958 = vtanh.pop %v2942
    %v2959 = vtanh.pop %v2943
    %v2960 = vxor.u32 %v2944, 2147483648
    %v2961 = vxor.u32 %v2945, 2147483648
    %v2962 = vmul.f32 %v2960, 1.442695
    %v2963 = vpow.pop %v2962
    %v2964 = vmul.f32 %v2961, 1.442695
    %v2965 = vpow.pop %v2964
    %v2966 = vadd.f32 %v2963, 1.0
    %v2967 = vadd.f32 %v2965, 1.0
    %v2968 = vrcp.pop %v2966
    %v2969 = vmul.f32 1.0, %v2968
    %v2970 = vrcp.pop %v2967
    %v2971 = vmul.f32 1.0, %v2970
    %v2972 = vmul.f32 %v2955, %v2958
    %v2973 = vmul.f32 %v2957, %v2959
    %v2974 = vtanh.pop %v2972
    %v2975 = vtanh.pop %v2973
    %v2976 = vmul.f32 %v2969, %v2974
    %v2977 = vmul.f32 %v2971, %v2975
    %v2978 = vld [vmem:[%s1805] sm:$0xff]
    %v2979 = vld [vmem:[%s1805 + $0x8] sm:$0xff]
    %v2980 = vld [vmem:[%s1805 + $0x10] sm:$0xff]
    %v2981 = vld [vmem:[%s1805 + $0x18] sm:$0xff]
    %v2982 = vld [vmem:[%s1805 + $0x20] sm:$0xff]
    %v2983 = vld [vmem:[%s1805 + $0x28] sm:$0xff]
    %v2984 = vld [vmem:[%s1805 + $0x30] sm:$0xff]
    %v2985 = vld [vmem:[%s1805 + $0x38] sm:$0xff]
    %v2987 = vsel %vm286, %v2936, 0
    %v2990 = vsel %vm286, %v2937, 0
    %v2993 = vsel %vm286, %v2938, 0
    %v2996 = vsel %vm286, %v2939, 0
    %2998 = vmatprep.subr.mxu0 0.0
    %2999 = vmatpush1.msra.mxu0 0.0
    %3000 = vmatprep.subr.mxu0 0.0
    %3001 = vmatpush1.msra.mxu0 0.0
    %3002 = vmatprep.subr.mxu0 0.0
    %3003 = vmatpush1.msra.mxu0 0.0
    %3004 = vmatprep.subr.mxu0 0.0
    %3005 = vmatpush1.msra.mxu0 0.0
    %3006 = vmatprep.subr.mxu0 0.0
    %3007 = vmatpush1.msra.mxu0 0.0
    %3008 = vmatprep.subr.mxu0 0.0
    %3009 = vmatpush1.msra.mxu0 0.0
    %3010 = vmatprep.subr.mxu0 0.0
    %3011 = vmatpush1.msra.mxu0 0.0
    %3012 = vmatprep.subr.mxu0 0.0
    %3013 = vmatpush1.msra.mxu0 0.0
    %3014 = vmatprep.subr.mxu0 0.0
    %3015 = vmatpush1.msra.mxu0 0.0
    %3016 = vmatprep.subr.mxu0 0.0
    %3017 = vmatpush1.msra.mxu0 0.0
    %3018 = vmatprep.subr.mxu0 0.0
    %3019 = vmatpush1.msra.mxu0 0.0
    %3020 = vmatprep.subr.mxu0 0.0
    %3021 = vmatpush1.msra.mxu0 0.0
    %3022 = vmatprep.subr.mxu0 0.0
    %3023 = vmatpush1.msra.mxu0 0.0
    %3024 = vmatprep.subr.mxu0 0.0
    %3025 = vmatpush1.msra.mxu0 0.0
    %3026 = vmatprep.subr.mxu0 0.0
    %3027 = vmatpush1.msra.mxu0 0.0
    %3028 = vmatprep.subr.mxu0 %v2977
    %3029 = vmatpush1.msra.mxu0 %v2976
    %3030 = vmatprep.subr.mxu0 0.0
    %3031 = vmatpush2.msra.mxu0 0.0
    %3032 = vmatprep.subr.mxu0 0.0
    %3033 = vmatpush2.msra.mxu0 0.0
    %3034 = vmatprep.subr.mxu0 0.0
    %3035 = vmatpush2.msra.mxu0 0.0
    %3036 = vmatprep.subr.mxu0 0.0
    %3037 = vmatpush2.msra.mxu0 0.0
    %3038 = vmatprep.subr.mxu0 0.0
    %3039 = vmatpush2.msra.mxu0 0.0
    %3040 = vmatprep.subr.mxu0 0.0
    %3041 = vmatpush2.msra.mxu0 0.0
    %3042 = vmatprep.subr.mxu0 0.0
    %3043 = vmatpush2.msra.mxu0 0.0
    %3044 = vmatprep.subr.mxu0 0.0
    %3045 = vmatpush2.msra.mxu0 0.0
    %3046 = vmatprep.subr.mxu0 0.0
    %3047 = vmatpush2.msra.mxu0 0.0
    %3048 = vmatprep.subr.mxu0 0.0
    %3049 = vmatpush2.msra.mxu0 0.0
    %3050 = vmatprep.subr.mxu0 0.0
    %3051 = vmatpush2.msra.mxu0 0.0
    %3052 = vmatprep.subr.mxu0 0.0
    %3053 = vmatpush2.msra.mxu0 0.0
    %3054 = vmatprep.subr.mxu0 0.0
    %3055 = vmatpush2.msra.mxu0 0.0
    %3056 = vmatprep.subr.mxu0 0.0
    %3057 = vmatpush2.msra.mxu0 0.0
    %3058 = vmatprep.subr.mxu0 0.0
    %3059 = vmatpush2.msra.mxu0 0.0
    %3060 = vmatprep.subr.mxu0 0.0
    %3061 = vmatpush2.msra.mxu0 0.0
    %3062 = vmatprep.mubr.f32.mxu0 0.0
    %3063 = vmatmul.mubr.f32.gmra.mxu0 %v2987
    %v3064 = vpop.f32.mrf.mxu0
    %v3065 = vadd.f32 0.0, %v3064
    %v3066 = vpop.f32.mrf.mxu0
    %v3067 = vadd.f32 0.0, %v3066
    %3068 = vmatprep.mubr.f32.mxu0 0.0
    %3069 = vmatmul.mubr.f32.gmra.mxu0 %v2990
    %v3070 = vpop.f32.mrf.mxu0
    %v3071 = vadd.f32 0.0, %v3070
    %v3072 = vpop.f32.mrf.mxu0
    %v3073 = vadd.f32 0.0, %v3072
    %3074 = vmatprep.mubr.f32.mxu0 0.0
    %3075 = vmatmul.mubr.f32.gmra.mxu0 %v2993
    %v3076 = vpop.f32.mrf.mxu0
    %v3077 = vadd.f32 0.0, %v3076
    %v3078 = vpop.f32.mrf.mxu0
    %v3079 = vadd.f32 0.0, %v3078
    %3080 = vmatprep.mubr.f32.mxu0 0.0
    %3081 = vmatmul.mubr.f32.gmra.mxu0 %v2996
    %v3082 = vpop.f32.mrf.mxu0
    %v3083 = vadd.f32 0.0, %v3082
    %v3084 = vpop.f32.mrf.mxu0
    %v3085 = vadd.f32 0.0, %v3084
    %3086 = vdwg.mxu0
    %v3087 = vadd.f32 %v2978, %v3065
    %v3088 = vadd.f32 %v2979, %v3067
    %v3089 = vadd.f32 %v2980, %v3071
    %v3090 = vadd.f32 %v2981, %v3073
    %v3091 = vadd.f32 %v2982, %v3077
    %v3092 = vadd.f32 %v2983, %v3079
    %v3093 = vadd.f32 %v2984, %v3083
    %v3094 = vadd.f32 %v2985, %v3085
    %v3095 = vxor.u32 %v3087, 2147483648
    %v3096 = vxor.u32 %v3088, 2147483648
    %v3097 = vxor.u32 %v3089, 2147483648
    %v3098 = vxor.u32 %v3090, 2147483648
    %v3099 = vmul.f32 %v3095, 1.442695
    %v3100 = vpow.pop %v3099
    %v3101 = vmul.f32 %v3096, 1.442695
    %v3102 = vpow.pop %v3101
    %v3103 = vmul.f32 %v3097, 1.442695
    %v3104 = vpow.pop %v3103
    %v3105 = vmul.f32 %v3098, 1.442695
    %v3106 = vpow.pop %v3105
    %v3107 = vadd.f32 %v3100, 1.0
    %v3108 = vadd.f32 %v3102, 1.0
    %v3109 = vadd.f32 %v3104, 1.0
    %v3110 = vadd.f32 %v3106, 1.0
    %v3111 = vrcp.pop %v3107
    %v3112 = vmul.f32 1.0, %v3111
    %v3113 = vrcp.pop %v3108
    %v3114 = vmul.f32 1.0, %v3113
    %v3115 = vrcp.pop %v3109
    %v3116 = vmul.f32 1.0, %v3115
    %v3117 = vrcp.pop %v3110
    %v3118 = vmul.f32 1.0, %v3117
    %v3119 = vtanh.pop %v3091
    %v3120 = vtanh.pop %v3092
    %v3121 = vxor.u32 %v3093, 2147483648
    %v3122 = vxor.u32 %v3094, 2147483648
    %v3123 = vmul.f32 %v3121, 1.442695
    %v3124 = vpow.pop %v3123
    %v3125 = vmul.f32 %v3122, 1.442695
    %v3126 = vpow.pop %v3125
    %v3127 = vadd.f32 %v3124, 1.0
    %v3128 = vadd.f32 %v3126, 1.0
    %v3129 = vrcp.pop %v3127
    %v3130 = vmul.f32 1.0, %v3129
    %v3131 = vrcp.pop %v3128
    %v3132 = vmul.f32 1.0, %v3131
    %v3133 = vmul.f32 %v3116, %v2972
    %v3134 = vmul.f32 %v3118, %v2973
    %v3135 = vmul.f32 %v3112, %v3119
    %v3136 = vmul.f32 %v3114, %v3120
    %v3137 = vadd.f32 %v3133, %v3135
    %v3138 = vadd.f32 %v3134, %v3136
    %v3139 = vtanh.pop %v3137
    %v3140 = vtanh.pop %v3138
    %v3141 = vmul.f32 %v3130, %v3139
    %v3142 = vmul.f32 %v3132, %v3140
    %v3143 = vld [vmem:[%s1992] sm:$0xff]
    %v3144 = vld [vmem:[%s1992 + $0x8] sm:$0xff]
    %v3145 = vld [vmem:[%s1992 + $0x10] sm:$0xff]
    %v3146 = vld [vmem:[%s1992 + $0x18] sm:$0xff]
    %v3147 = vld [vmem:[%s1992 + $0x20] sm:$0xff]
    %v3148 = vld [vmem:[%s1992 + $0x28] sm:$0xff]
    %v3149 = vld [vmem:[%s1992 + $0x30] sm:$0xff]
    %v3150 = vld [vmem:[%s1992 + $0x38] sm:$0xff]
    %3151 = vmatprep.subr.mxu0 0.0
    %3152 = vmatpush1.msra.mxu0 0.0
    %3153 = vmatprep.subr.mxu0 0.0
    %3154 = vmatpush1.msra.mxu0 0.0
    %3155 = vmatprep.subr.mxu0 0.0
    %3156 = vmatpush1.msra.mxu0 0.0
    %3157 = vmatprep.subr.mxu0 0.0
    %3158 = vmatpush1.msra.mxu0 0.0
    %3159 = vmatprep.subr.mxu0 0.0
    %3160 = vmatpush1.msra.mxu0 0.0
    %3161 = vmatprep.subr.mxu0 0.0
    %3162 = vmatpush1.msra.mxu0 0.0
    %3163 = vmatprep.subr.mxu0 0.0
    %3164 = vmatpush1.msra.mxu0 0.0
    %3165 = vmatprep.subr.mxu0 0.0
    %3166 = vmatpush1.msra.mxu0 0.0
    %3167 = vmatprep.subr.mxu0 0.0
    %3168 = vmatpush1.msra.mxu0 0.0
    %3169 = vmatprep.subr.mxu0 0.0
    %3170 = vmatpush1.msra.mxu0 0.0
    %3171 = vmatprep.subr.mxu0 0.0
    %3172 = vmatpush1.msra.mxu0 0.0
    %3173 = vmatprep.subr.mxu0 0.0
    %3174 = vmatpush1.msra.mxu0 0.0
    %3175 = vmatprep.subr.mxu0 0.0
    %3176 = vmatpush1.msra.mxu0 0.0
    %3177 = vmatprep.subr.mxu0 0.0
    %3178 = vmatpush1.msra.mxu0 0.0
    %3179 = vmatprep.subr.mxu0 0.0
    %3180 = vmatpush1.msra.mxu0 0.0
    %3181 = vmatprep.subr.mxu0 %v3142
    %3182 = vmatpush1.msra.mxu0 %v3141
    %3183 = vmatprep.subr.mxu0 0.0
    %3184 = vmatpush2.msra.mxu0 0.0
    %3185 = vmatprep.subr.mxu0 0.0
    %3186 = vmatpush2.msra.mxu0 0.0
    %3187 = vmatprep.subr.mxu0 0.0
    %3188 = vmatpush2.msra.mxu0 0.0
    %3189 = vmatprep.subr.mxu0 0.0
    %3190 = vmatpush2.msra.mxu0 0.0
    %3191 = vmatprep.subr.mxu0 0.0
    %3192 = vmatpush2.msra.mxu0 0.0
    %3193 = vmatprep.subr.mxu0 0.0
    %3194 = vmatpush2.msra.mxu0 0.0
    %3195 = vmatprep.subr.mxu0 0.0
    %3196 = vmatpush2.msra.mxu0 0.0
    %3197 = vmatprep.subr.mxu0 0.0
    %3198 = vmatpush2.msra.mxu0 0.0
    %3199 = vmatprep.subr.mxu0 0.0
    %3200 = vmatpush2.msra.mxu0 0.0
    %3201 = vmatprep.subr.mxu0 0.0
    %3202 = vmatpush2.msra.mxu0 0.0
    %3203 = vmatprep.subr.mxu0 0.0
    %3204 = vmatpush2.msra.mxu0 0.0
    %3205 = vmatprep.subr.mxu0 0.0
    %3206 = vmatpush2.msra.mxu0 0.0
    %3207 = vmatprep.subr.mxu0 0.0
    %3208 = vmatpush2.msra.mxu0 0.0
    %3209 = vmatprep.subr.mxu0 0.0
    %3210 = vmatpush2.msra.mxu0 0.0
    %3211 = vmatprep.subr.mxu0 0.0
    %3212 = vmatpush2.msra.mxu0 0.0
    %3213 = vmatprep.subr.mxu0 0.0
    %3214 = vmatpush2.msra.mxu0 0.0
    %3215 = vmatprep.mubr.f32.mxu0 0.0
    %3216 = vmatmul.mubr.f32.gmra.mxu0 %v2987
    %v3217 = vpop.f32.mrf.mxu0
    %v3218 = vadd.f32 0.0, %v3217
    %v3219 = vpop.f32.mrf.mxu0
    %v3220 = vadd.f32 0.0, %v3219
    %3221 = vmatprep.mubr.f32.mxu0 0.0
    %3222 = vmatmul.mubr.f32.gmra.mxu0 %v2990
    %v3223 = vpop.f32.mrf.mxu0
    %v3224 = vadd.f32 0.0, %v3223
    %v3225 = vpop.f32.mrf.mxu0
    %v3226 = vadd.f32 0.0, %v3225
    %3227 = vmatprep.mubr.f32.mxu0 0.0
    %3228 = vmatmul.mubr.f32.gmra.mxu0 %v2993
    %v3229 = vpop.f32.mrf.mxu0
    %v3230 = vadd.f32 0.0, %v3229
    %v3231 = vpop.f32.mrf.mxu0
    %v3232 = vadd.f32 0.0, %v3231
    %3233 = vmatprep.mubr.f32.mxu0 0.0
    %3234 = vmatmul.mubr.f32.gmra.mxu0 %v2996
    %v3235 = vpop.f32.mrf.mxu0
    %v3236 = vadd.f32 0.0, %v3235
    %v3237 = vpop.f32.mrf.mxu0
    %v3238 = vadd.f32 0.0, %v3237
    %3239 = vdwg.mxu0
    %v3240 = vadd.f32 %v3143, %v3218
    %v3241 = vadd.f32 %v3144, %v3220
    %v3242 = vadd.f32 %v3145, %v3224
    %v3243 = vadd.f32 %v3146, %v3226
    %v3244 = vadd.f32 %v3147, %v3230
    %v3245 = vadd.f32 %v3148, %v3232
    %v3246 = vadd.f32 %v3149, %v3236
    %v3247 = vadd.f32 %v3150, %v3238
    %v3248 = vxor.u32 %v3240, 2147483648
    %v3249 = vxor.u32 %v3241, 2147483648
    %v3250 = vxor.u32 %v3242, 2147483648
    %v3251 = vxor.u32 %v3243, 2147483648
    %v3252 = vmul.f32 %v3248, 1.442695
    %v3253 = vpow.pop %v3252
    %v3254 = vmul.f32 %v3249, 1.442695
    %v3255 = vpow.pop %v3254
    %v3256 = vmul.f32 %v3250, 1.442695
    %v3257 = vpow.pop %v3256
    %v3258 = vmul.f32 %v3251, 1.442695
    %v3259 = vpow.pop %v3258
    %v3260 = vadd.f32 %v3253, 1.0
    %v3261 = vadd.f32 %v3255, 1.0
    %v3262 = vadd.f32 %v3257, 1.0
    %v3263 = vadd.f32 %v3259, 1.0
    %v3264 = vrcp.pop %v3260
    %v3265 = vmul.f32 1.0, %v3264
    %v3266 = vrcp.pop %v3261
    %v3267 = vmul.f32 1.0, %v3266
    %v3268 = vrcp.pop %v3262
    %v3269 = vmul.f32 1.0, %v3268
    %v3270 = vrcp.pop %v3263
    %v3271 = vmul.f32 1.0, %v3270
    %v3272 = vtanh.pop %v3244
    %v3273 = vtanh.pop %v3245
    %v3274 = vxor.u32 %v3246, 2147483648
    %v3275 = vxor.u32 %v3247, 2147483648
    %v3276 = vmul.f32 %v3274, 1.442695
    %v3277 = vpow.pop %v3276
    %v3278 = vmul.f32 %v3275, 1.442695
    %v3279 = vpow.pop %v3278
    %v3280 = vadd.f32 %v3277, 1.0
    %v3281 = vadd.f32 %v3279, 1.0
    %v3282 = vrcp.pop %v3280
    %v3283 = vmul.f32 1.0, %v3282
    %v3284 = vrcp.pop %v3281
    %v3285 = vmul.f32 1.0, %v3284
    %v3286 = vmul.f32 %v3269, %v3137
    %v3287 = vmul.f32 %v3271, %v3138
    %v3288 = vmul.f32 %v3265, %v3272
    %v3289 = vmul.f32 %v3267, %v3273
    %v3290 = vadd.f32 %v3286, %v3288
    %v3291 = vadd.f32 %v3287, %v3289
    %v3292 = vtanh.pop %v3290
    %v3293 = vtanh.pop %v3291
    %v3294 = vmul.f32 %v3283, %v3292
    %v3295 = vmul.f32 %v3285, %v3293
    %v3296 = vld [vmem:[%s2179] sm:$0xff]
    %v3297 = vld [vmem:[%s2179 + $0x8] sm:$0xff]
    %v3298 = vld [vmem:[%s2179 + $0x10] sm:$0xff]
    %v3299 = vld [vmem:[%s2179 + $0x18] sm:$0xff]
    %v3300 = vld [vmem:[%s2179 + $0x20] sm:$0xff]
    %v3301 = vld [vmem:[%s2179 + $0x28] sm:$0xff]
    %v3302 = vld [vmem:[%s2179 + $0x30] sm:$0xff]
    %v3303 = vld [vmem:[%s2179 + $0x38] sm:$0xff]
    %3304 = vmatprep.subr.mxu0 0.0
    %3305 = vmatpush1.msra.mxu0 0.0
    %3306 = vmatprep.subr.mxu0 0.0
    %3307 = vmatpush1.msra.mxu0 0.0
    %3308 = vmatprep.subr.mxu0 0.0
    %3309 = vmatpush1.msra.mxu0 0.0
    %3310 = vmatprep.subr.mxu0 0.0
    %3311 = vmatpush1.msra.mxu0 0.0
    %3312 = vmatprep.subr.mxu0 0.0
    %3313 = vmatpush1.msra.mxu0 0.0
    %3314 = vmatprep.subr.mxu0 0.0
    %3315 = vmatpush1.msra.mxu0 0.0
    %3316 = vmatprep.subr.mxu0 0.0
    %3317 = vmatpush1.msra.mxu0 0.0
    %3318 = vmatprep.subr.mxu0 0.0
    %3319 = vmatpush1.msra.mxu0 0.0
    %3320 = vmatprep.subr.mxu0 0.0
    %3321 = vmatpush1.msra.mxu0 0.0
    %3322 = vmatprep.subr.mxu0 0.0
    %3323 = vmatpush1.msra.mxu0 0.0
    %3324 = vmatprep.subr.mxu0 0.0
    %3325 = vmatpush1.msra.mxu0 0.0
    %3326 = vmatprep.subr.mxu0 0.0
    %3327 = vmatpush1.msra.mxu0 0.0
    %3328 = vmatprep.subr.mxu0 0.0
    %3329 = vmatpush1.msra.mxu0 0.0
    %3330 = vmatprep.subr.mxu0 0.0
    %3331 = vmatpush1.msra.mxu0 0.0
    %3332 = vmatprep.subr.mxu0 0.0
    %3333 = vmatpush1.msra.mxu0 0.0
    %3334 = vmatprep.subr.mxu0 %v3295
    %3335 = vmatpush1.msra.mxu0 %v3294
    %3336 = vmatprep.subr.mxu0 0.0
    %3337 = vmatpush2.msra.mxu0 0.0
    %3338 = vmatprep.subr.mxu0 0.0
    %3339 = vmatpush2.msra.mxu0 0.0
    %3340 = vmatprep.subr.mxu0 0.0
    %3341 = vmatpush2.msra.mxu0 0.0
    %3342 = vmatprep.subr.mxu0 0.0
    %3343 = vmatpush2.msra.mxu0 0.0
    %3344 = vmatprep.subr.mxu0 0.0
    %3345 = vmatpush2.msra.mxu0 0.0
    %3346 = vmatprep.subr.mxu0 0.0
    %3347 = vmatpush2.msra.mxu0 0.0
    %3348 = vmatprep.subr.mxu0 0.0
    %3349 = vmatpush2.msra.mxu0 0.0
    %3350 = vmatprep.subr.mxu0 0.0
    %3351 = vmatpush2.msra.mxu0 0.0
    %3352 = vmatprep.subr.mxu0 0.0
    %3353 = vmatpush2.msra.mxu0 0.0
    %3354 = vmatprep.subr.mxu0 0.0
    %3355 = vmatpush2.msra.mxu0 0.0
    %3356 = vmatprep.subr.mxu0 0.0
    %3357 = vmatpush2.msra.mxu0 0.0
    %3358 = vmatprep.subr.mxu0 0.0
    %3359 = vmatpush2.msra.mxu0 0.0
    %3360 = vmatprep.subr.mxu0 0.0
    %3361 = vmatpush2.msra.mxu0 0.0
    %3362 = vmatprep.subr.mxu0 0.0
    %3363 = vmatpush2.msra.mxu0 0.0
    %3364 = vmatprep.subr.mxu0 0.0
    %3365 = vmatpush2.msra.mxu0 0.0
    %3366 = vmatprep.subr.mxu0 0.0
    %3367 = vmatpush2.msra.mxu0 0.0
    %3368 = vmatprep.mubr.f32.mxu0 0.0
    %3369 = vmatmul.mubr.f32.gmra.mxu0 %v2987
    %v3370 = vpop.f32.mrf.mxu0
    %v3371 = vadd.f32 0.0, %v3370
    %v3372 = vpop.f32.mrf.mxu0
    %v3373 = vadd.f32 0.0, %v3372
    %3374 = vmatprep.mubr.f32.mxu0 0.0
    %3375 = vmatmul.mubr.f32.gmra.mxu0 %v2990
    %v3376 = vpop.f32.mrf.mxu0
    %v3377 = vadd.f32 0.0, %v3376
    %v3378 = vpop.f32.mrf.mxu0
    %v3379 = vadd.f32 0.0, %v3378
    %3380 = vmatprep.mubr.f32.mxu0 0.0
    %3381 = vmatmul.mubr.f32.gmra.mxu0 %v2993
    %v3382 = vpop.f32.mrf.mxu0
    %v3383 = vadd.f32 0.0, %v3382
    %v3384 = vpop.f32.mrf.mxu0
    %v3385 = vadd.f32 0.0, %v3384
    %3386 = vmatprep.mubr.f32.mxu0 0.0
    %3387 = vmatmul.mubr.f32.gmra.mxu0 %v2996
    %v3388 = vpop.f32.mrf.mxu0
    %v3389 = vadd.f32 0.0, %v3388
    %v3390 = vpop.f32.mrf.mxu0
    %v3391 = vadd.f32 0.0, %v3390
    %3392 = vdwg.mxu0
    %v3393 = vadd.f32 %v3296, %v3371
    %v3394 = vadd.f32 %v3297, %v3373
    %v3395 = vadd.f32 %v3298, %v3377
    %v3396 = vadd.f32 %v3299, %v3379
    %v3397 = vadd.f32 %v3300, %v3383
    %v3398 = vadd.f32 %v3301, %v3385
    %v3399 = vadd.f32 %v3302, %v3389
    %v3400 = vadd.f32 %v3303, %v3391
    %v3401 = vxor.u32 %v3393, 2147483648
    %v3402 = vxor.u32 %v3394, 2147483648
    %v3403 = vxor.u32 %v3395, 2147483648
    %v3404 = vxor.u32 %v3396, 2147483648
    %v3405 = vmul.f32 %v3401, 1.442695
    %v3406 = vpow.pop %v3405
    %v3407 = vmul.f32 %v3402, 1.442695
    %v3408 = vpow.pop %v3407
    %v3409 = vmul.f32 %v3403, 1.442695
    %v3410 = vpow.pop %v3409
    %v3411 = vmul.f32 %v3404, 1.442695
    %v3412 = vpow.pop %v3411
    %v3413 = vadd.f32 %v3406, 1.0
    %v3414 = vadd.f32 %v3408, 1.0
    %v3415 = vadd.f32 %v3410, 1.0
    %v3416 = vadd.f32 %v3412, 1.0
    %v3417 = vrcp.pop %v3413
    %v3418 = vmul.f32 1.0, %v3417
    %v3419 = vrcp.pop %v3414
    %v3420 = vmul.f32 1.0, %v3419
    %v3421 = vrcp.pop %v3415
    %v3422 = vmul.f32 1.0, %v3421
    %v3423 = vrcp.pop %v3416
    %v3424 = vmul.f32 1.0, %v3423
    %v3425 = vtanh.pop %v3397
    %v3426 = vtanh.pop %v3398
    %v3427 = vxor.u32 %v3399, 2147483648
    %v3428 = vxor.u32 %v3400, 2147483648
    %v3429 = vmul.f32 %v3427, 1.442695
    %v3430 = vpow.pop %v3429
    %v3431 = vmul.f32 %v3428, 1.442695
    %v3432 = vpow.pop %v3431
    %v3433 = vadd.f32 %v3430, 1.0
    %v3434 = vadd.f32 %v3432, 1.0
    %v3435 = vrcp.pop %v3433
    %v3436 = vmul.f32 1.0, %v3435
    %v3437 = vrcp.pop %v3434
    %v3438 = vmul.f32 1.0, %v3437
    %v3439 = vmul.f32 %v3422, %v3290
    %v3440 = vmul.f32 %v3424, %v3291
    %v3441 = vmul.f32 %v3418, %v3425
    %v3442 = vmul.f32 %v3420, %v3426
    %v3443 = vadd.f32 %v3439, %v3441
    %v3444 = vadd.f32 %v3440, %v3442
    %v3445 = vtanh.pop %v3443
    %v3446 = vtanh.pop %v3444
    %v3447 = vmul.f32 %v3436, %v3445
    %v3448 = vmul.f32 %v3438, %v3446
    %v3449 = vld [vmem:[%s2366] sm:$0xff]
    %v3450 = vld [vmem:[%s2366 + $0x8] sm:$0xff]
    %v3451 = vld [vmem:[%s2366 + $0x10] sm:$0xff]
    %v3452 = vld [vmem:[%s2366 + $0x18] sm:$0xff]
    %v3453 = vld [vmem:[%s2366 + $0x20] sm:$0xff]
    %v3454 = vld [vmem:[%s2366 + $0x28] sm:$0xff]
    %v3455 = vld [vmem:[%s2366 + $0x30] sm:$0xff]
    %v3456 = vld [vmem:[%s2366 + $0x38] sm:$0xff]
    %3457 = vmatprep.subr.mxu0 0.0
    %3458 = vmatpush1.msra.mxu0 0.0
    %3459 = vmatprep.subr.mxu0 0.0
    %3460 = vmatpush1.msra.mxu0 0.0
    %3461 = vmatprep.subr.mxu0 0.0
    %3462 = vmatpush1.msra.mxu0 0.0
    %3463 = vmatprep.subr.mxu0 0.0
    %3464 = vmatpush1.msra.mxu0 0.0
    %3465 = vmatprep.subr.mxu0 0.0
    %3466 = vmatpush1.msra.mxu0 0.0
    %3467 = vmatprep.subr.mxu0 0.0
    %3468 = vmatpush1.msra.mxu0 0.0
    %3469 = vmatprep.subr.mxu0 0.0
    %3470 = vmatpush1.msra.mxu0 0.0
    %3471 = vmatprep.subr.mxu0 0.0
    %3472 = vmatpush1.msra.mxu0 0.0
    %3473 = vmatprep.subr.mxu0 0.0
    %3474 = vmatpush1.msra.mxu0 0.0
    %3475 = vmatprep.subr.mxu0 0.0
    %3476 = vmatpush1.msra.mxu0 0.0
    %3477 = vmatprep.subr.mxu0 0.0
    %3478 = vmatpush1.msra.mxu0 0.0
    %3479 = vmatprep.subr.mxu0 0.0
    %3480 = vmatpush1.msra.mxu0 0.0
    %3481 = vmatprep.subr.mxu0 0.0
    %3482 = vmatpush1.msra.mxu0 0.0
    %3483 = vmatprep.subr.mxu0 0.0
    %3484 = vmatpush1.msra.mxu0 0.0
    %3485 = vmatprep.subr.mxu0 0.0
    %3486 = vmatpush1.msra.mxu0 0.0
    %3487 = vmatprep.subr.mxu0 %v3448
    %3488 = vmatpush1.msra.mxu0 %v3447
    %3489 = vmatprep.subr.mxu0 0.0
    %3490 = vmatpush2.msra.mxu0 0.0
    %3491 = vmatprep.subr.mxu0 0.0
    %3492 = vmatpush2.msra.mxu0 0.0
    %3493 = vmatprep.subr.mxu0 0.0
    %3494 = vmatpush2.msra.mxu0 0.0
    %3495 = vmatprep.subr.mxu0 0.0
    %3496 = vmatpush2.msra.mxu0 0.0
    %3497 = vmatprep.subr.mxu0 0.0
    %3498 = vmatpush2.msra.mxu0 0.0
    %3499 = vmatprep.subr.mxu0 0.0
    %3500 = vmatpush2.msra.mxu0 0.0
    %3501 = vmatprep.subr.mxu0 0.0
    %3502 = vmatpush2.msra.mxu0 0.0
    %3503 = vmatprep.subr.mxu0 0.0
    %3504 = vmatpush2.msra.mxu0 0.0
    %3505 = vmatprep.subr.mxu0 0.0
    %3506 = vmatpush2.msra.mxu0 0.0
    %3507 = vmatprep.subr.mxu0 0.0
    %3508 = vmatpush2.msra.mxu0 0.0
    %3509 = vmatprep.subr.mxu0 0.0
    %3510 = vmatpush2.msra.mxu0 0.0
    %3511 = vmatprep.subr.mxu0 0.0
    %3512 = vmatpush2.msra.mxu0 0.0
    %3513 = vmatprep.subr.mxu0 0.0
    %3514 = vmatpush2.msra.mxu0 0.0
    %3515 = vmatprep.subr.mxu0 0.0
    %3516 = vmatpush2.msra.mxu0 0.0
    %3517 = vmatprep.subr.mxu0 0.0
    %3518 = vmatpush2.msra.mxu0 0.0
    %3519 = vmatprep.subr.mxu0 0.0
    %3520 = vmatpush2.msra.mxu0 0.0
    %3521 = vmatprep.mubr.f32.mxu0 0.0
    %3522 = vmatmul.mubr.f32.gmra.mxu0 %v2987
    %v3523 = vpop.f32.mrf.mxu0
    %v3524 = vadd.f32 0.0, %v3523
    %v3525 = vpop.f32.mrf.mxu0
    %v3526 = vadd.f32 0.0, %v3525
    %3527 = vmatprep.mubr.f32.mxu0 0.0
    %3528 = vmatmul.mubr.f32.gmra.mxu0 %v2990
    %v3529 = vpop.f32.mrf.mxu0
    %v3530 = vadd.f32 0.0, %v3529
    %v3531 = vpop.f32.mrf.mxu0
    %v3532 = vadd.f32 0.0, %v3531
    %3533 = vmatprep.mubr.f32.mxu0 0.0
    %3534 = vmatmul.mubr.f32.gmra.mxu0 %v2993
    %v3535 = vpop.f32.mrf.mxu0
    %v3536 = vadd.f32 0.0, %v3535
    %v3537 = vpop.f32.mrf.mxu0
    %v3538 = vadd.f32 0.0, %v3537
    %3539 = vmatprep.mubr.f32.mxu0 0.0
    %3540 = vmatmul.mubr.f32.gmra.mxu0 %v2996
    %v3541 = vpop.f32.mrf.mxu0
    %v3542 = vadd.f32 0.0, %v3541
    %v3543 = vpop.f32.mrf.mxu0
    %v3544 = vadd.f32 0.0, %v3543
    %3545 = vdwg.mxu0
    %v3546 = vadd.f32 %v3449, %v3524
    %v3547 = vadd.f32 %v3450, %v3526
    %v3548 = vadd.f32 %v3451, %v3530
    %v3549 = vadd.f32 %v3452, %v3532
    %v3550 = vadd.f32 %v3453, %v3536
    %v3551 = vadd.f32 %v3454, %v3538
    %v3552 = vadd.f32 %v3455, %v3542
    %v3553 = vadd.f32 %v3456, %v3544
    %v3554 = vxor.u32 %v3546, 2147483648
    %v3555 = vxor.u32 %v3547, 2147483648
    %v3556 = vxor.u32 %v3548, 2147483648
    %v3557 = vxor.u32 %v3549, 2147483648
    %v3558 = vmul.f32 %v3554, 1.442695
    %v3559 = vpow.pop %v3558
    %v3560 = vmul.f32 %v3555, 1.442695
    %v3561 = vpow.pop %v3560
    %v3562 = vmul.f32 %v3556, 1.442695
    %v3563 = vpow.pop %v3562
    %v3564 = vmul.f32 %v3557, 1.442695
    %v3565 = vpow.pop %v3564
    %v3566 = vadd.f32 %v3559, 1.0
    %v3567 = vadd.f32 %v3561, 1.0
    %v3568 = vadd.f32 %v3563, 1.0
    %v3569 = vadd.f32 %v3565, 1.0
    %v3570 = vrcp.pop %v3566
    %v3571 = vmul.f32 1.0, %v3570
    %v3572 = vrcp.pop %v3567
    %v3573 = vmul.f32 1.0, %v3572
    %v3574 = vrcp.pop %v3568
    %v3575 = vmul.f32 1.0, %v3574
    %v3576 = vrcp.pop %v3569
    %v3577 = vmul.f32 1.0, %v3576
    %v3578 = vtanh.pop %v3550
    %v3579 = vtanh.pop %v3551
    %v3580 = vxor.u32 %v3552, 2147483648
    %v3581 = vxor.u32 %v3553, 2147483648
    %v3582 = vmul.f32 %v3580, 1.442695
    %v3583 = vpow.pop %v3582
    %v3584 = vmul.f32 %v3581, 1.442695
    %v3585 = vpow.pop %v3584
    %v3586 = vadd.f32 %v3583, 1.0
    %v3587 = vadd.f32 %v3585, 1.0
    %v3588 = vrcp.pop %v3586
    %v3589 = vmul.f32 1.0, %v3588
    %v3590 = vrcp.pop %v3587
    %v3591 = vmul.f32 1.0, %v3590
    %v3592 = vmul.f32 %v3575, %v3443
    %v3593 = vmul.f32 %v3577, %v3444
    %v3594 = vmul.f32 %v3571, %v3578
    %v3595 = vmul.f32 %v3573, %v3579
    %v3596 = vadd.f32 %v3592, %v3594
    %v3597 = vadd.f32 %v3593, %v3595
    %v3598 = vtanh.pop %v3596
    %v3599 = vtanh.pop %v3597
    %v3600 = vmul.f32 %v3589, %v3598
    %v3601 = vmul.f32 %v3591, %v3599
    %v3602 = vld [vmem:[%s2553] sm:$0xff]
    %v3603 = vld [vmem:[%s2553 + $0x8] sm:$0xff]
    %v3604 = vld [vmem:[%s2553 + $0x10] sm:$0xff]
    %v3605 = vld [vmem:[%s2553 + $0x18] sm:$0xff]
    %v3606 = vld [vmem:[%s2553 + $0x20] sm:$0xff]
    %v3607 = vld [vmem:[%s2553 + $0x28] sm:$0xff]
    %v3608 = vld [vmem:[%s2553 + $0x30] sm:$0xff]
    %v3609 = vld [vmem:[%s2553 + $0x38] sm:$0xff]
    %3610 = vmatprep.subr.mxu0 0.0
    %3611 = vmatpush1.msra.mxu0 0.0
    %3612 = vmatprep.subr.mxu0 0.0
    %3613 = vmatpush1.msra.mxu0 0.0
    %3614 = vmatprep.subr.mxu0 0.0
    %3615 = vmatpush1.msra.mxu0 0.0
    %3616 = vmatprep.subr.mxu0 0.0
    %3617 = vmatpush1.msra.mxu0 0.0
    %3618 = vmatprep.subr.mxu0 0.0
    %3619 = vmatpush1.msra.mxu0 0.0
    %3620 = vmatprep.subr.mxu0 0.0
    %3621 = vmatpush1.msra.mxu0 0.0
    %3622 = vmatprep.subr.mxu0 0.0
    %3623 = vmatpush1.msra.mxu0 0.0
    %3624 = vmatprep.subr.mxu0 0.0
    %3625 = vmatpush1.msra.mxu0 0.0
    %3626 = vmatprep.subr.mxu0 0.0
    %3627 = vmatpush1.msra.mxu0 0.0
    %3628 = vmatprep.subr.mxu0 0.0
    %3629 = vmatpush1.msra.mxu0 0.0
    %3630 = vmatprep.subr.mxu0 0.0
    %3631 = vmatpush1.msra.mxu0 0.0
    %3632 = vmatprep.subr.mxu0 0.0
    %3633 = vmatpush1.msra.mxu0 0.0
    %3634 = vmatprep.subr.mxu0 0.0
    %3635 = vmatpush1.msra.mxu0 0.0
    %3636 = vmatprep.subr.mxu0 0.0
    %3637 = vmatpush1.msra.mxu0 0.0
    %3638 = vmatprep.subr.mxu0 0.0
    %3639 = vmatpush1.msra.mxu0 0.0
    %3640 = vmatprep.subr.mxu0 %v3601
    %3641 = vmatpush1.msra.mxu0 %v3600
    %3642 = vmatprep.subr.mxu0 0.0
    %3643 = vmatpush2.msra.mxu0 0.0
    %3644 = vmatprep.subr.mxu0 0.0
    %3645 = vmatpush2.msra.mxu0 0.0
    %3646 = vmatprep.subr.mxu0 0.0
    %3647 = vmatpush2.msra.mxu0 0.0
    %3648 = vmatprep.subr.mxu0 0.0
    %3649 = vmatpush2.msra.mxu0 0.0
    %3650 = vmatprep.subr.mxu0 0.0
    %3651 = vmatpush2.msra.mxu0 0.0
    %3652 = vmatprep.subr.mxu0 0.0
    %3653 = vmatpush2.msra.mxu0 0.0
    %3654 = vmatprep.subr.mxu0 0.0
    %3655 = vmatpush2.msra.mxu0 0.0
    %3656 = vmatprep.subr.mxu0 0.0
    %3657 = vmatpush2.msra.mxu0 0.0
    %3658 = vmatprep.subr.mxu0 0.0
    %3659 = vmatpush2.msra.mxu0 0.0
    %3660 = vmatprep.subr.mxu0 0.0
    %3661 = vmatpush2.msra.mxu0 0.0
    %3662 = vmatprep.subr.mxu0 0.0
    %3663 = vmatpush2.msra.mxu0 0.0
    %3664 = vmatprep.subr.mxu0 0.0
    %3665 = vmatpush2.msra.mxu0 0.0
    %3666 = vmatprep.subr.mxu0 0.0
    %3667 = vmatpush2.msra.mxu0 0.0
    %3668 = vmatprep.subr.mxu0 0.0
    %3669 = vmatpush2.msra.mxu0 0.0
    %3670 = vmatprep.subr.mxu0 0.0
    %3671 = vmatpush2.msra.mxu0 0.0
    %3672 = vmatprep.subr.mxu0 0.0
    %3673 = vmatpush2.msra.mxu0 0.0
    %3674 = vmatprep.mubr.f32.mxu0 0.0
    %3675 = vmatmul.mubr.f32.gmra.mxu0 %v2987
    %v3676 = vpop.f32.mrf.mxu0
    %v3677 = vadd.f32 0.0, %v3676
    %v3678 = vpop.f32.mrf.mxu0
    %v3679 = vadd.f32 0.0, %v3678
    %3680 = vmatprep.mubr.f32.mxu0 0.0
    %3681 = vmatmul.mubr.f32.gmra.mxu0 %v2990
    %v3682 = vpop.f32.mrf.mxu0
    %v3683 = vadd.f32 0.0, %v3682
    %v3684 = vpop.f32.mrf.mxu0
    %v3685 = vadd.f32 0.0, %v3684
    %3686 = vmatprep.mubr.f32.mxu0 0.0
    %3687 = vmatmul.mubr.f32.gmra.mxu0 %v2993
    %v3688 = vpop.f32.mrf.mxu0
    %v3689 = vadd.f32 0.0, %v3688
    %v3690 = vpop.f32.mrf.mxu0
    %v3691 = vadd.f32 0.0, %v3690
    %3692 = vmatprep.mubr.f32.mxu0 0.0
    %3693 = vmatmul.mubr.f32.gmra.mxu0 %v2996
    %v3694 = vpop.f32.mrf.mxu0
    %v3695 = vadd.f32 0.0, %v3694
    %v3696 = vpop.f32.mrf.mxu0
    %v3697 = vadd.f32 0.0, %v3696
    %3698 = vdwg.mxu0
    %v3699 = vadd.f32 %v3602, %v3677
    %v3700 = vadd.f32 %v3603, %v3679
    %v3701 = vadd.f32 %v3604, %v3683
    %v3702 = vadd.f32 %v3605, %v3685
    %v3703 = vadd.f32 %v3606, %v3689
    %v3704 = vadd.f32 %v3607, %v3691
    %v3705 = vadd.f32 %v3608, %v3695
    %v3706 = vadd.f32 %v3609, %v3697
    %v3707 = vxor.u32 %v3699, 2147483648
    %v3708 = vxor.u32 %v3700, 2147483648
    %v3709 = vxor.u32 %v3701, 2147483648
    %v3710 = vxor.u32 %v3702, 2147483648
    %v3711 = vmul.f32 %v3707, 1.442695
    %v3712 = vpow.pop %v3711
    %v3713 = vmul.f32 %v3708, 1.442695
    %v3714 = vpow.pop %v3713
    %v3715 = vmul.f32 %v3709, 1.442695
    %v3716 = vpow.pop %v3715
    %v3717 = vmul.f32 %v3710, 1.442695
    %v3718 = vpow.pop %v3717
    %v3719 = vadd.f32 %v3712, 1.0
    %v3720 = vadd.f32 %v3714, 1.0
    %v3721 = vadd.f32 %v3716, 1.0
    %v3722 = vadd.f32 %v3718, 1.0
    %v3723 = vrcp.pop %v3719
    %v3724 = vmul.f32 1.0, %v3723
    %v3725 = vrcp.pop %v3720
    %v3726 = vmul.f32 1.0, %v3725
    %v3727 = vrcp.pop %v3721
    %v3728 = vmul.f32 1.0, %v3727
    %v3729 = vrcp.pop %v3722
    %v3730 = vmul.f32 1.0, %v3729
    %v3731 = vtanh.pop %v3703
    %v3732 = vtanh.pop %v3704
    %v3733 = vxor.u32 %v3705, 2147483648
    %v3734 = vxor.u32 %v3706, 2147483648
    %v3735 = vmul.f32 %v3733, 1.442695
    %v3736 = vpow.pop %v3735
    %v3737 = vmul.f32 %v3734, 1.442695
    %v3738 = vpow.pop %v3737
    %v3739 = vadd.f32 %v3736, 1.0
    %v3740 = vadd.f32 %v3738, 1.0
    %v3741 = vrcp.pop %v3739
    %v3742 = vmul.f32 1.0, %v3741
    %v3743 = vrcp.pop %v3740
    %v3744 = vmul.f32 1.0, %v3743
    %v3745 = vmul.f32 %v3728, %v3596
    %v3746 = vmul.f32 %v3730, %v3597
    %v3747 = vmul.f32 %v3724, %v3731
    %v3748 = vmul.f32 %v3726, %v3732
    %v3749 = vadd.f32 %v3745, %v3747
    %v3750 = vadd.f32 %v3746, %v3748
    %v3751 = vtanh.pop %v3749
    %v3752 = vtanh.pop %v3750
    %v3753 = vmul.f32 %v3742, %v3751
    %v3754 = vmul.f32 %v3744, %v3752
    %v3755 = vld [vmem:[%s2740] sm:$0xff]
    %v3756 = vld [vmem:[%s2740 + $0x8] sm:$0xff]
    %v3757 = vld [vmem:[%s2740 + $0x10] sm:$0xff]
    %v3758 = vld [vmem:[%s2740 + $0x18] sm:$0xff]
    %v3759 = vld [vmem:[%s2740 + $0x20] sm:$0xff]
    %v3760 = vld [vmem:[%s2740 + $0x28] sm:$0xff]
    %v3761 = vld [vmem:[%s2740 + $0x30] sm:$0xff]
    %v3762 = vld [vmem:[%s2740 + $0x38] sm:$0xff]
    %3763 = vmatprep.subr.mxu0 0.0
    %3764 = vmatpush1.msra.mxu0 0.0
    %3765 = vmatprep.subr.mxu0 0.0
    %3766 = vmatpush1.msra.mxu0 0.0
    %3767 = vmatprep.subr.mxu0 0.0
    %3768 = vmatpush1.msra.mxu0 0.0
    %3769 = vmatprep.subr.mxu0 0.0
    %3770 = vmatpush1.msra.mxu0 0.0
    %3771 = vmatprep.subr.mxu0 0.0
    %3772 = vmatpush1.msra.mxu0 0.0
    %3773 = vmatprep.subr.mxu0 0.0
    %3774 = vmatpush1.msra.mxu0 0.0
    %3775 = vmatprep.subr.mxu0 0.0
    %3776 = vmatpush1.msra.mxu0 0.0
    %3777 = vmatprep.subr.mxu0 0.0
    %3778 = vmatpush1.msra.mxu0 0.0
    %3779 = vmatprep.subr.mxu0 0.0
    %3780 = vmatpush1.msra.mxu0 0.0
    %3781 = vmatprep.subr.mxu0 0.0
    %3782 = vmatpush1.msra.mxu0 0.0
    %3783 = vmatprep.subr.mxu0 0.0
    %3784 = vmatpush1.msra.mxu0 0.0
    %3785 = vmatprep.subr.mxu0 0.0
    %3786 = vmatpush1.msra.mxu0 0.0
    %3787 = vmatprep.subr.mxu0 0.0
    %3788 = vmatpush1.msra.mxu0 0.0
    %3789 = vmatprep.subr.mxu0 0.0
    %3790 = vmatpush1.msra.mxu0 0.0
    %3791 = vmatprep.subr.mxu0 0.0
    %3792 = vmatpush1.msra.mxu0 0.0
    %3793 = vmatprep.subr.mxu0 %v3754
    %3794 = vmatpush1.msra.mxu0 %v3753
    %3795 = vmatprep.subr.mxu0 0.0
    %3796 = vmatpush2.msra.mxu0 0.0
    %3797 = vmatprep.subr.mxu0 0.0
    %3798 = vmatpush2.msra.mxu0 0.0
    %3799 = vmatprep.subr.mxu0 0.0
    %3800 = vmatpush2.msra.mxu0 0.0
    %3801 = vmatprep.subr.mxu0 0.0
    %3802 = vmatpush2.msra.mxu0 0.0
    %3803 = vmatprep.subr.mxu0 0.0
    %3804 = vmatpush2.msra.mxu0 0.0
    %3805 = vmatprep.subr.mxu0 0.0
    %3806 = vmatpush2.msra.mxu0 0.0
    %3807 = vmatprep.subr.mxu0 0.0
    %3808 = vmatpush2.msra.mxu0 0.0
    %3809 = vmatprep.subr.mxu0 0.0
    %3810 = vmatpush2.msra.mxu0 0.0
    %3811 = vmatprep.subr.mxu0 0.0
    %3812 = vmatpush2.msra.mxu0 0.0
    %3813 = vmatprep.subr.mxu0 0.0
    %3814 = vmatpush2.msra.mxu0 0.0
    %3815 = vmatprep.subr.mxu0 0.0
    %3816 = vmatpush2.msra.mxu0 0.0
    %3817 = vmatprep.subr.mxu0 0.0
    %3818 = vmatpush2.msra.mxu0 0.0
    %3819 = vmatprep.subr.mxu0 0.0
    %3820 = vmatpush2.msra.mxu0 0.0
    %3821 = vmatprep.subr.mxu0 0.0
    %3822 = vmatpush2.msra.mxu0 0.0
    %3823 = vmatprep.subr.mxu0 0.0
    %3824 = vmatpush2.msra.mxu0 0.0
    %3825 = vmatprep.subr.mxu0 0.0
    %3826 = vmatpush2.msra.mxu0 0.0
    %3827 = vmatprep.mubr.f32.mxu0 0.0
    %3828 = vmatmul.mubr.f32.gmra.mxu0 %v2987
    %v3829 = vpop.f32.mrf.mxu0
    %v3830 = vadd.f32 0.0, %v3829
    %v3831 = vpop.f32.mrf.mxu0
    %v3832 = vadd.f32 0.0, %v3831
    %3833 = vmatprep.mubr.f32.mxu0 0.0
    %3834 = vmatmul.mubr.f32.gmra.mxu0 %v2990
    %v3835 = vpop.f32.mrf.mxu0
    %v3836 = vadd.f32 0.0, %v3835
    %v3837 = vpop.f32.mrf.mxu0
    %v3838 = vadd.f32 0.0, %v3837
    %3839 = vmatprep.mubr.f32.mxu0 0.0
    %3840 = vmatmul.mubr.f32.gmra.mxu0 %v2993
    %v3841 = vpop.f32.mrf.mxu0
    %v3842 = vadd.f32 0.0, %v3841
    %v3843 = vpop.f32.mrf.mxu0
    %v3844 = vadd.f32 0.0, %v3843
    %3845 = vmatprep.mubr.f32.mxu0 0.0
    %3846 = vmatmul.mubr.f32.gmra.mxu0 %v2996
    %v3847 = vpop.f32.mrf.mxu0
    %v3848 = vadd.f32 0.0, %v3847
    %v3849 = vpop.f32.mrf.mxu0
    %v3850 = vadd.f32 0.0, %v3849
    %3851 = vdwg.mxu0
    %v3852 = vadd.f32 %v3755, %v3830
    %v3853 = vadd.f32 %v3756, %v3832
    %v3854 = vadd.f32 %v3757, %v3836
    %v3855 = vadd.f32 %v3758, %v3838
    %v3856 = vadd.f32 %v3759, %v3842
    %v3857 = vadd.f32 %v3760, %v3844
    %v3858 = vadd.f32 %v3761, %v3848
    %v3859 = vadd.f32 %v3762, %v3850
    %v3860 = vxor.u32 %v3852, 2147483648
    %v3861 = vxor.u32 %v3853, 2147483648
    %v3862 = vxor.u32 %v3854, 2147483648
    %v3863 = vxor.u32 %v3855, 2147483648
    %v3864 = vmul.f32 %v3860, 1.442695
    %v3865 = vpow.pop %v3864
    %v3866 = vmul.f32 %v3861, 1.442695
    %v3867 = vpow.pop %v3866
    %v3868 = vmul.f32 %v3862, 1.442695
    %v3869 = vpow.pop %v3868
    %v3870 = vmul.f32 %v3863, 1.442695
    %v3871 = vpow.pop %v3870
    %v3872 = vadd.f32 %v3865, 1.0
    %v3873 = vadd.f32 %v3867, 1.0
    %v3874 = vadd.f32 %v3869, 1.0
    %v3875 = vadd.f32 %v3871, 1.0
    %v3876 = vrcp.pop %v3872
    %v3877 = vmul.f32 1.0, %v3876
    %v3878 = vrcp.pop %v3873
    %v3879 = vmul.f32 1.0, %v3878
    %v3880 = vrcp.pop %v3874
    %v3881 = vmul.f32 1.0, %v3880
    %v3882 = vrcp.pop %v3875
    %v3883 = vmul.f32 1.0, %v3882
    %v3884 = vtanh.pop %v3856
    %v3885 = vtanh.pop %v3857
    %v3886 = vxor.u32 %v3858, 2147483648
    %v3887 = vxor.u32 %v3859, 2147483648
    %v3888 = vmul.f32 %v3886, 1.442695
    %v3889 = vpow.pop %v3888
    %v3890 = vmul.f32 %v3887, 1.442695
    %v3891 = vpow.pop %v3890
    %v3892 = vadd.f32 %v3889, 1.0
    %v3893 = vadd.f32 %v3891, 1.0
    %v3894 = vrcp.pop %v3892
    %v3895 = vmul.f32 1.0, %v3894
    %v3896 = vrcp.pop %v3893
    %v3897 = vmul.f32 1.0, %v3896
    %v3898 = vmul.f32 %v3881, %v3749
    %v3899 = vmul.f32 %v3883, %v3750
    %v3900 = vmul.f32 %v3877, %v3884
    %v3901 = vmul.f32 %v3879, %v3885
    %v3902 = vadd.f32 %v3898, %v3900
    %v3903 = vadd.f32 %v3899, %v3901
    %v3904 = vtanh.pop %v3902
    %v3905 = vtanh.pop %v3903
    %v3906 = vmul.f32 %v3895, %v3904
    %v3907 = vmul.f32 %v3897, %v3905
    %v3908 = vld [vmem:[%s2927] sm:$0xff]
    %v3909 = vld [vmem:[%s2927 + $0x8] sm:$0xff]
    %v3910 = vld [vmem:[%s2927 + $0x10] sm:$0xff]
    %v3911 = vld [vmem:[%s2927 + $0x18] sm:$0xff]
    %v3912 = vld [vmem:[%s2927 + $0x20] sm:$0xff]
    %v3913 = vld [vmem:[%s2927 + $0x28] sm:$0xff]
    %v3914 = vld [vmem:[%s2927 + $0x30] sm:$0xff]
    %v3915 = vld [vmem:[%s2927 + $0x38] sm:$0xff]
    %3916 = vmatprep.subr.mxu0 0.0
    %3917 = vmatpush1.msra.mxu0 0.0
    %3918 = vmatprep.subr.mxu0 0.0
    %3919 = vmatpush1.msra.mxu0 0.0
    %3920 = vmatprep.subr.mxu0 0.0
    %3921 = vmatpush1.msra.mxu0 0.0
    %3922 = vmatprep.subr.mxu0 0.0
    %3923 = vmatpush1.msra.mxu0 0.0
    %3924 = vmatprep.subr.mxu0 0.0
    %3925 = vmatpush1.msra.mxu0 0.0
    %3926 = vmatprep.subr.mxu0 0.0
    %3927 = vmatpush1.msra.mxu0 0.0
    %3928 = vmatprep.subr.mxu0 0.0
    %3929 = vmatpush1.msra.mxu0 0.0
    %3930 = vmatprep.subr.mxu0 0.0
    %3931 = vmatpush1.msra.mxu0 0.0
    %3932 = vmatprep.subr.mxu0 0.0
    %3933 = vmatpush1.msra.mxu0 0.0
    %3934 = vmatprep.subr.mxu0 0.0
    %3935 = vmatpush1.msra.mxu0 0.0
    %3936 = vmatprep.subr.mxu0 0.0
    %3937 = vmatpush1.msra.mxu0 0.0
    %3938 = vmatprep.subr.mxu0 0.0
    %3939 = vmatpush1.msra.mxu0 0.0
    %3940 = vmatprep.subr.mxu0 0.0
    %3941 = vmatpush1.msra.mxu0 0.0
    %3942 = vmatprep.subr.mxu0 0.0
    %3943 = vmatpush1.msra.mxu0 0.0
    %3944 = vmatprep.subr.mxu0 0.0
    %3945 = vmatpush1.msra.mxu0 0.0
    %3946 = vmatprep.subr.mxu0 %v3907
    %3947 = vmatpush1.msra.mxu0 %v3906
    %3948 = vmatprep.subr.mxu0 0.0
    %3949 = vmatpush2.msra.mxu0 0.0
    %3950 = vmatprep.subr.mxu0 0.0
    %3951 = vmatpush2.msra.mxu0 0.0
    %3952 = vmatprep.subr.mxu0 0.0
    %3953 = vmatpush2.msra.mxu0 0.0
    %3954 = vmatprep.subr.mxu0 0.0
    %3955 = vmatpush2.msra.mxu0 0.0
    %3956 = vmatprep.subr.mxu0 0.0
    %3957 = vmatpush2.msra.mxu0 0.0
    %3958 = vmatprep.subr.mxu0 0.0
    %3959 = vmatpush2.msra.mxu0 0.0
    %3960 = vmatprep.subr.mxu0 0.0
    %3961 = vmatpush2.msra.mxu0 0.0
    %3962 = vmatprep.subr.mxu0 0.0
    %3963 = vmatpush2.msra.mxu0 0.0
    %3964 = vmatprep.subr.mxu0 0.0
    %3965 = vmatpush2.msra.mxu0 0.0
    %3966 = vmatprep.subr.mxu0 0.0
    %3967 = vmatpush2.msra.mxu0 0.0
    %3968 = vmatprep.subr.mxu0 0.0
    %3969 = vmatpush2.msra.mxu0 0.0
    %3970 = vmatprep.subr.mxu0 0.0
    %3971 = vmatpush2.msra.mxu0 0.0
    %3972 = vmatprep.subr.mxu0 0.0
    %3973 = vmatpush2.msra.mxu0 0.0
    %3974 = vmatprep.subr.mxu0 0.0
    %3975 = vmatpush2.msra.mxu0 0.0
    %3976 = vmatprep.subr.mxu0 0.0
    %3977 = vmatpush2.msra.mxu0 0.0
    %3978 = vmatprep.subr.mxu0 0.0
    %3979 = vmatpush2.msra.mxu0 0.0
    %3980 = vmatprep.mubr.f32.mxu0 0.0
    %3981 = vmatmul.mubr.f32.gmra.mxu0 %v2987
    %v3982 = vpop.f32.mrf.mxu0
    %v3983 = vadd.f32 0.0, %v3982
    %v3984 = vpop.f32.mrf.mxu0
    %v3985 = vadd.f32 0.0, %v3984
    %3986 = vmatprep.mubr.f32.mxu0 0.0
    %3987 = vmatmul.mubr.f32.gmra.mxu0 %v2990
    %v3988 = vpop.f32.mrf.mxu0
    %v3989 = vadd.f32 0.0, %v3988
    %v3990 = vpop.f32.mrf.mxu0
    %v3991 = vadd.f32 0.0, %v3990
    %3992 = vmatprep.mubr.f32.mxu0 0.0
    %3993 = vmatmul.mubr.f32.gmra.mxu0 %v2993
    %v3994 = vpop.f32.mrf.mxu0
    %v3995 = vadd.f32 0.0, %v3994
    %v3996 = vpop.f32.mrf.mxu0
    %v3997 = vadd.f32 0.0, %v3996
    %3998 = vmatprep.mubr.f32.mxu0 0.0
    %3999 = vmatmul.mubr.f32.gmra.mxu0 %v2996
    %v4000 = vpop.f32.mrf.mxu0
    %v4001 = vadd.f32 0.0, %v4000
    %v4002 = vpop.f32.mrf.mxu0
    %v4003 = vadd.f32 0.0, %v4002
    %4004 = vdwg.mxu0
    %v4005 = vadd.f32 %v3908, %v3983
    %v4006 = vadd.f32 %v3909, %v3985
    %v4007 = vadd.f32 %v3910, %v3989
    %v4008 = vadd.f32 %v3911, %v3991
    %v4009 = vadd.f32 %v3912, %v3995
    %v4010 = vadd.f32 %v3913, %v3997
    %v4011 = vadd.f32 %v3914, %v4001
    %v4012 = vadd.f32 %v3915, %v4003
    %v4013 = vxor.u32 %v4005, 2147483648
    %v4014 = vxor.u32 %v4006, 2147483648
    %v4015 = vxor.u32 %v4007, 2147483648
    %v4016 = vxor.u32 %v4008, 2147483648
    %v4017 = vmul.f32 %v4013, 1.442695
    %v4018 = vpow.pop %v4017
    %v4019 = vmul.f32 %v4014, 1.442695
    %v4020 = vpow.pop %v4019
    %v4021 = vmul.f32 %v4015, 1.442695
    %v4022 = vpow.pop %v4021
    %v4023 = vmul.f32 %v4016, 1.442695
    %v4024 = vpow.pop %v4023
    %v4025 = vadd.f32 %v4018, 1.0
    %v4026 = vadd.f32 %v4020, 1.0
    %v4027 = vadd.f32 %v4022, 1.0
    %v4028 = vadd.f32 %v4024, 1.0
    %v4029 = vrcp.pop %v4025
    %v4030 = vmul.f32 1.0, %v4029
    %v4031 = vrcp.pop %v4026
    %v4032 = vmul.f32 1.0, %v4031
    %v4033 = vrcp.pop %v4027
    %v4034 = vmul.f32 1.0, %v4033
    %v4035 = vrcp.pop %v4028
    %v4036 = vmul.f32 1.0, %v4035
    %v4037 = vtanh.pop %v4009
    %v4038 = vtanh.pop %v4010
    %v4039 = vxor.u32 %v4011, 2147483648
    %v4040 = vxor.u32 %v4012, 2147483648
    %v4041 = vmul.f32 %v4039, 1.442695
    %v4042 = vpow.pop %v4041
    %v4043 = vmul.f32 %v4040, 1.442695
    %v4044 = vpow.pop %v4043
    %v4045 = vadd.f32 %v4042, 1.0
    %v4046 = vadd.f32 %v4044, 1.0
    %v4047 = vrcp.pop %v4045
    %v4048 = vmul.f32 1.0, %v4047
    %v4049 = vrcp.pop %v4046
    %v4050 = vmul.f32 1.0, %v4049
    %v4051 = vmul.f32 %v4034, %v3902
    %v4052 = vmul.f32 %v4036, %v3903
    %v4053 = vmul.f32 %v4030, %v4037
    %v4054 = vmul.f32 %v4032, %v4038
    %v4055 = vadd.f32 %v4051, %v4053
    %v4056 = vadd.f32 %v4052, %v4054
    %v4057 = vtanh.pop %v4055
    %v4058 = vtanh.pop %v4056
    %v4059 = vmul.f32 %v4048, %v4057
    %v4060 = vmul.f32 %v4050, %v4058
    %v4061 = vld [vmem:[%s8] sm:$0xff]
    %v4062 = vld [vmem:[%s8 + $0x8] sm:$0xff]
    %v4063 = vld [vmem:[%s9] sm:$0x3]
    %v4065 = vlaneseq
    %v4066 = vshrl.u32 %v4065, 7
    %v4067 = vsub.s32 0, %v4066
    %v4068 = vrot.slane %v4063, %v4067
    %v4069 = vlaneseq
    %v4070 = vshrl.u32 %v4069, 7
    %v4071 = vsub.s32 1, %v4070
    %v4072 = vrot.slane %v4063, %v4071
    %4075 = vxpose.xlu0.b32.start [1/16] %v4059, 128
    %4076 = vxpose.xlu0.b32.cont [2/16] 0.0, 128
    %4077 = vxpose.xlu0.b32.cont [3/16] 0.0, 128
    %4078 = vxpose.xlu0.b32.cont [4/16] 0.0, 128
    %4079 = vxpose.xlu0.b32.cont [5/16] 0.0, 128
    %4080 = vxpose.xlu0.b32.cont [6/16] 0.0, 128
    %4081 = vxpose.xlu0.b32.cont [7/16] 0.0, 128
    %4082 = vxpose.xlu0.b32.cont [8/16] 0.0, 128
    %4083 = vxpose.xlu0.b32.cont [9/16] 0.0, 128
    %4084 = vxpose.xlu0.b32.cont [10/16] 0.0, 128
    %4085 = vxpose.xlu0.b32.cont [11/16] 0.0, 128
    %4086 = vxpose.xlu0.b32.cont [12/16] 0.0, 128
    %4087 = vxpose.xlu0.b32.cont [13/16] 0.0, 128
    %4088 = vxpose.xlu0.b32.cont [14/16] 0.0, 128
    %4089 = vxpose.xlu0.b32.cont [15/16] 0.0, 128
    %4090 = vxpose.xlu0.b32.end [16/16] 0.0, 128
    %v4091 = vpop.trf.xlu0
    %v4092 = vpop.trf.xlu0
    %v4093 = vpop.trf.xlu0
    %v4094 = vpop.trf.xlu0
    %v4095 = vpop.trf.xlu0
    %v4096 = vpop.trf.xlu0
    %v4097 = vpop.trf.xlu0
    %v4098 = vpop.trf.xlu0
    %v4099 = vpop.trf.xlu0
    %v4100 = vpop.trf.xlu0
    %v4101 = vpop.trf.xlu0
    %v4102 = vpop.trf.xlu0
    %v4103 = vpop.trf.xlu0
    %v4104 = vpop.trf.xlu0
    %v4105 = vpop.trf.xlu0
    %v4106 = vpop.trf.xlu0
    %4107 = vxpose.xlu0.b32.start [1/16] %v4060, 128
    %4108 = vxpose.xlu0.b32.cont [2/16] 0.0, 128
    %4109 = vxpose.xlu0.b32.cont [3/16] 0.0, 128
    %4110 = vxpose.xlu0.b32.cont [4/16] 0.0, 128
    %4111 = vxpose.xlu0.b32.cont [5/16] 0.0, 128
    %4112 = vxpose.xlu0.b32.cont [6/16] 0.0, 128
    %4113 = vxpose.xlu0.b32.cont [7/16] 0.0, 128
    %4114 = vxpose.xlu0.b32.cont [8/16] 0.0, 128
    %4115 = vxpose.xlu0.b32.cont [9/16] 0.0, 128
    %4116 = vxpose.xlu0.b32.cont [10/16] 0.0, 128
    %4117 = vxpose.xlu0.b32.cont [11/16] 0.0, 128
    %4118 = vxpose.xlu0.b32.cont [12/16] 0.0, 128
    %4119 = vxpose.xlu0.b32.cont [13/16] 0.0, 128
    %4120 = vxpose.xlu0.b32.cont [14/16] 0.0, 128
    %4121 = vxpose.xlu0.b32.cont [15/16] 0.0, 128
    %4122 = vxpose.xlu0.b32.end [16/16] 0.0, 128
    %v4123 = vpop.trf.xlu0
    %v4124 = vpop.trf.xlu0
    %v4125 = vpop.trf.xlu0
    %v4126 = vpop.trf.xlu0
    %v4127 = vpop.trf.xlu0
    %v4128 = vpop.trf.xlu0
    %v4129 = vpop.trf.xlu0
    %v4130 = vpop.trf.xlu0
    %v4131 = vpop.trf.xlu0
    %v4132 = vpop.trf.xlu0
    %v4133 = vpop.trf.xlu0
    %v4134 = vpop.trf.xlu0
    %v4135 = vpop.trf.xlu0
    %v4136 = vpop.trf.xlu0
    %v4137 = vpop.trf.xlu0
    %v4138 = vpop.trf.xlu0
    %v4140 = vsel %vm286, %v4091, 0
    %v4143 = vsel %vm286, %v4092, 0
    %v4146 = vsel %vm286, %v4093, 0
    %v4149 = vsel %vm286, %v4094, 0
    %v4152 = vsel %vm286, %v4095, 0
    %v4155 = vsel %vm286, %v4096, 0
    %v4158 = vsel %vm286, %v4097, 0
    %v4161 = vsel %vm286, %v4098, 0
    %v4164 = vsel %vm286, %v4099, 0
    %v4167 = vsel %vm286, %v4100, 0
    %v4170 = vsel %vm286, %v4101, 0
    %v4173 = vsel %vm286, %v4102, 0
    %v4176 = vsel %vm286, %v4103, 0
    %v4179 = vsel %vm286, %v4104, 0
    %v4182 = vsel %vm286, %v4105, 0
    %v4185 = vsel %vm286, %v4106, 0
    %v4188 = vsel %vm286, %v4123, 0
    %v4191 = vsel %vm286, %v4124, 0
    %v4194 = vsel %vm286, %v4125, 0
    %v4197 = vsel %vm286, %v4126, 0
    %4199 = vmatprep.subr.mxu0 0.0
    %4200 = vmatpush1.msra.mxu0 0.0
    %4201 = vmatprep.subr.mxu0 0.0
    %4202 = vmatpush1.msra.mxu0 0.0
    %4203 = vmatprep.subr.mxu0 0.0
    %4204 = vmatpush1.msra.mxu0 0.0
    %4205 = vmatprep.subr.mxu0 0.0
    %4206 = vmatpush1.msra.mxu0 0.0
    %4207 = vmatprep.subr.mxu0 0.0
    %4208 = vmatpush1.msra.mxu0 0.0
    %4209 = vmatprep.subr.mxu0 0.0
    %4210 = vmatpush1.msra.mxu0 0.0
    %4211 = vmatprep.subr.mxu0 0.0
    %4212 = vmatpush1.msra.mxu0 0.0
    %4213 = vmatprep.subr.mxu0 0.0
    %4214 = vmatpush1.msra.mxu0 0.0
    %4215 = vmatprep.subr.mxu0 0.0
    %4216 = vmatpush1.msra.mxu0 0.0
    %4217 = vmatprep.subr.mxu0 0.0
    %4218 = vmatpush1.msra.mxu0 0.0
    %4219 = vmatprep.subr.mxu0 0.0
    %4220 = vmatpush1.msra.mxu0 0.0
    %4221 = vmatprep.subr.mxu0 0.0
    %4222 = vmatpush1.msra.mxu0 0.0
    %4223 = vmatprep.subr.mxu0 0.0
    %4224 = vmatpush1.msra.mxu0 0.0
    %4225 = vmatprep.subr.mxu0 0.0
    %4226 = vmatpush1.msra.mxu0 0.0
    %4227 = vmatprep.subr.mxu0 0.0
    %4228 = vmatpush1.msra.mxu0 0.0
    %4229 = vmatprep.subr.mxu0 %v4062
    %4230 = vmatpush1.msra.mxu0 %v4061
    %4231 = vmatprep.subr.mxu0 0.0
    %4232 = vmatpush2.msra.mxu0 0.0
    %4233 = vmatprep.subr.mxu0 0.0
    %4234 = vmatpush2.msra.mxu0 0.0
    %4235 = vmatprep.subr.mxu0 0.0
    %4236 = vmatpush2.msra.mxu0 0.0
    %4237 = vmatprep.subr.mxu0 0.0
    %4238 = vmatpush2.msra.mxu0 0.0
    %4239 = vmatprep.subr.mxu0 0.0
    %4240 = vmatpush2.msra.mxu0 0.0
    %4241 = vmatprep.subr.mxu0 0.0
    %4242 = vmatpush2.msra.mxu0 0.0
    %4243 = vmatprep.subr.mxu0 0.0
    %4244 = vmatpush2.msra.mxu0 0.0
    %4245 = vmatprep.subr.mxu0 0.0
    %4246 = vmatpush2.msra.mxu0 0.0
    %4247 = vmatprep.subr.mxu0 0.0
    %4248 = vmatpush2.msra.mxu0 0.0
    %4249 = vmatprep.subr.mxu0 0.0
    %4250 = vmatpush2.msra.mxu0 0.0
    %4251 = vmatprep.subr.mxu0 0.0
    %4252 = vmatpush2.msra.mxu0 0.0
    %4253 = vmatprep.subr.mxu0 0.0
    %4254 = vmatpush2.msra.mxu0 0.0
    %4255 = vmatprep.subr.mxu0 0.0
    %4256 = vmatpush2.msra.mxu0 0.0
    %4257 = vmatprep.subr.mxu0 0.0
    %4258 = vmatpush2.msra.mxu0 0.0
    %4259 = vmatprep.subr.mxu0 0.0
    %4260 = vmatpush2.msra.mxu0 0.0
    %4261 = vmatprep.subr.mxu0 0.0
    %4262 = vmatpush2.msra.mxu0 0.0
    %4263 = vmatprep.mubr.f32.mxu0 0.0
    %4264 = vmatmul.mubr.f32.gmra.mxu0 %v4140
    %v4265 = vpop.f32.mrf.mxu0
    %v4266 = vadd.f32 %v4068, %v4265
    %v4267 = vpop.f32.mrf.mxu0
    %v4268 = vadd.f32 %v4072, %v4267
    %4269 = vmatprep.mubr.f32.mxu0 0.0
    %4270 = vmatmul.mubr.f32.gmra.mxu0 %v4143
    %v4271 = vpop.f32.mrf.mxu0
    %v4272 = vadd.f32 %v4068, %v4271
    %v4273 = vpop.f32.mrf.mxu0
    %v4274 = vadd.f32 %v4072, %v4273
    %4275 = vmatprep.mubr.f32.mxu0 0.0
    %4276 = vmatmul.mubr.f32.gmra.mxu0 %v4146
    %v4277 = vpop.f32.mrf.mxu0
    %v4278 = vadd.f32 %v4068, %v4277
    %v4279 = vpop.f32.mrf.mxu0
    %v4280 = vadd.f32 %v4072, %v4279
    %4281 = vmatprep.mubr.f32.mxu0 0.0
    %4282 = vmatmul.mubr.f32.gmra.mxu0 %v4149
    %v4283 = vpop.f32.mrf.mxu0
    %v4284 = vadd.f32 %v4068, %v4283
    %v4285 = vpop.f32.mrf.mxu0
    %v4286 = vadd.f32 %v4072, %v4285
    %4287 = vmatprep.mubr.f32.mxu0 0.0
    %4288 = vmatmul.mubr.f32.gmra.mxu0 %v4152
    %v4289 = vpop.f32.mrf.mxu0
    %v4290 = vadd.f32 %v4068, %v4289
    %v4291 = vpop.f32.mrf.mxu0
    %v4292 = vadd.f32 %v4072, %v4291
    %4293 = vmatprep.mubr.f32.mxu0 0.0
    %4294 = vmatmul.mubr.f32.gmra.mxu0 %v4155
    %v4295 = vpop.f32.mrf.mxu0
    %v4296 = vadd.f32 %v4068, %v4295
    %v4297 = vpop.f32.mrf.mxu0
    %v4298 = vadd.f32 %v4072, %v4297
    %4299 = vmatprep.mubr.f32.mxu0 0.0
    %4300 = vmatmul.mubr.f32.gmra.mxu0 %v4158
    %v4301 = vpop.f32.mrf.mxu0
    %v4302 = vadd.f32 %v4068, %v4301
    %v4303 = vpop.f32.mrf.mxu0
    %v4304 = vadd.f32 %v4072, %v4303
    %4305 = vmatprep.mubr.f32.mxu0 0.0
    %4306 = vmatmul.mubr.f32.gmra.mxu0 %v4161
    %v4307 = vpop.f32.mrf.mxu0
    %v4308 = vadd.f32 %v4068, %v4307
    %v4309 = vpop.f32.mrf.mxu0
    %v4310 = vadd.f32 %v4072, %v4309
    %4311 = vmatprep.mubr.f32.mxu0 0.0
    %4312 = vmatmul.mubr.f32.gmra.mxu0 %v4164
    %v4313 = vpop.f32.mrf.mxu0
    %v4314 = vadd.f32 %v4068, %v4313
    %v4315 = vpop.f32.mrf.mxu0
    %v4316 = vadd.f32 %v4072, %v4315
    %4317 = vmatprep.mubr.f32.mxu0 0.0
    %4318 = vmatmul.mubr.f32.gmra.mxu0 %v4167
    %v4319 = vpop.f32.mrf.mxu0
    %v4320 = vadd.f32 %v4068, %v4319
    %v4321 = vpop.f32.mrf.mxu0
    %v4322 = vadd.f32 %v4072, %v4321
    %4323 = vmatprep.mubr.f32.mxu0 0.0
    %4324 = vmatmul.mubr.f32.gmra.mxu0 %v4170
    %v4325 = vpop.f32.mrf.mxu0
    %v4326 = vadd.f32 %v4068, %v4325
    %v4327 = vpop.f32.mrf.mxu0
    %v4328 = vadd.f32 %v4072, %v4327
    %4329 = vmatprep.mubr.f32.mxu0 0.0
    %4330 = vmatmul.mubr.f32.gmra.mxu0 %v4173
    %v4331 = vpop.f32.mrf.mxu0
    %v4332 = vadd.f32 %v4068, %v4331
    %v4333 = vpop.f32.mrf.mxu0
    %v4334 = vadd.f32 %v4072, %v4333
    %4335 = vmatprep.mubr.f32.mxu0 0.0
    %4336 = vmatmul.mubr.f32.gmra.mxu0 %v4176
    %v4337 = vpop.f32.mrf.mxu0
    %v4338 = vadd.f32 %v4068, %v4337
    %v4339 = vpop.f32.mrf.mxu0
    %v4340 = vadd.f32 %v4072, %v4339
    %4341 = vmatprep.mubr.f32.mxu0 0.0
    %4342 = vmatmul.mubr.f32.gmra.mxu0 %v4179
    %v4343 = vpop.f32.mrf.mxu0
    %v4344 = vadd.f32 %v4068, %v4343
    %v4345 = vpop.f32.mrf.mxu0
    %v4346 = vadd.f32 %v4072, %v4345
    %4347 = vmatprep.mubr.f32.mxu0 0.0
    %4348 = vmatmul.mubr.f32.gmra.mxu0 %v4182
    %v4349 = vpop.f32.mrf.mxu0
    %v4350 = vadd.f32 %v4068, %v4349
    %v4351 = vpop.f32.mrf.mxu0
    %v4352 = vadd.f32 %v4072, %v4351
    %4353 = vmatprep.mubr.f32.mxu0 0.0
    %4354 = vmatmul.mubr.f32.gmra.mxu0 %v4185
    %v4355 = vpop.f32.mrf.mxu0
    %v4356 = vadd.f32 %v4068, %v4355
    %v4357 = vpop.f32.mrf.mxu0
    %v4358 = vadd.f32 %v4072, %v4357
    %4359 = vmatprep.mubr.f32.mxu0 0.0
    %4360 = vmatmul.mubr.f32.gmra.mxu0 %v4188
    %v4361 = vpop.f32.mrf.mxu0
    %v4362 = vadd.f32 %v4068, %v4361
    %v4363 = vpop.f32.mrf.mxu0
    %v4364 = vadd.f32 %v4072, %v4363
    %4365 = vmatprep.mubr.f32.mxu0 0.0
    %4366 = vmatmul.mubr.f32.gmra.mxu0 %v4191
    %v4367 = vpop.f32.mrf.mxu0
    %v4368 = vadd.f32 %v4068, %v4367
    %v4369 = vpop.f32.mrf.mxu0
    %v4370 = vadd.f32 %v4072, %v4369
    %4371 = vmatprep.mubr.f32.mxu0 0.0
    %4372 = vmatmul.mubr.f32.gmra.mxu0 %v4194
    %v4373 = vpop.f32.mrf.mxu0
    %v4374 = vadd.f32 %v4068, %v4373
    %v4375 = vpop.f32.mrf.mxu0
    %v4376 = vadd.f32 %v4072, %v4375
    %4377 = vmatprep.mubr.f32.mxu0 0.0
    %4378 = vmatmul.mubr.f32.gmra.mxu0 %v4197
    %v4379 = vpop.f32.mrf.mxu0
    %v4380 = vadd.f32 %v4068, %v4379
    %v4381 = vpop.f32.mrf.mxu0
    %v4382 = vadd.f32 %v4072, %v4381
    %4383 = vdwg.mxu0
    %4384 = vst [vmem:[#allocation3] sm:$0xff] %v4266
    %4385 = vst.msk [vmem:[#allocation3 + $0x8] sm:$0xff] %vm1166, %v4268
    %4386 = vst [vmem:[#allocation3 + $0x10] sm:$0xff] %v4272
    %4387 = vst.msk [vmem:[#allocation3 + $0x18] sm:$0xff] %vm1166, %v4274
    %4388 = vst [vmem:[#allocation3 + $0x20] sm:$0xff] %v4278
    %4389 = vst.msk [vmem:[#allocation3 + $0x28] sm:$0xff] %vm1166, %v4280
    %4390 = vst [vmem:[#allocation3 + $0x30] sm:$0xff] %v4284
    %4391 = vst.msk [vmem:[#allocation3 + $0x38] sm:$0xff] %vm1166, %v4286
    %4392 = vst [vmem:[#allocation3 + $0x40] sm:$0xff] %v4290
    %4393 = vst.msk [vmem:[#allocation3 + $0x48] sm:$0xff] %vm1166, %v4292
    %4394 = vst [vmem:[#allocation3 + $0x50] sm:$0xff] %v4296
    %4395 = vst.msk [vmem:[#allocation3 + $0x58] sm:$0xff] %vm1166, %v4298
    %4396 = vst [vmem:[#allocation3 + $0x60] sm:$0xff] %v4302
    %4397 = vst.msk [vmem:[#allocation3 + $0x68] sm:$0xff] %vm1166, %v4304
    %4398 = vst [vmem:[#allocation3 + $0x70] sm:$0xff] %v4308
    %4399 = vst.msk [vmem:[#allocation3 + $0x78] sm:$0xff] %vm1166, %v4310
    %4400 = vst [vmem:[#allocation3 + $0x80] sm:$0xff] %v4314
    %4401 = vst.msk [vmem:[#allocation3 + $0x88] sm:$0xff] %vm1166, %v4316
    %4402 = vst [vmem:[#allocation3 + $0x90] sm:$0xff] %v4320
    %4403 = vst.msk [vmem:[#allocation3 + $0x98] sm:$0xff] %vm1166, %v4322
    %4404 = vst [vmem:[#allocation3 + $0xa0] sm:$0xff] %v4326
    %4405 = vst.msk [vmem:[#allocation3 + $0xa8] sm:$0xff] %vm1166, %v4328
    %4406 = vst [vmem:[#allocation3 + $0xb0] sm:$0xff] %v4332
    %4407 = vst.msk [vmem:[#allocation3 + $0xb8] sm:$0xff] %vm1166, %v4334
    %4408 = vst [vmem:[#allocation3 + $0xc0] sm:$0xff] %v4338
    %4409 = vst.msk [vmem:[#allocation3 + $0xc8] sm:$0xff] %vm1166, %v4340
    %4410 = vst [vmem:[#allocation3 + $0xd0] sm:$0xff] %v4344
    %4411 = vst.msk [vmem:[#allocation3 + $0xd8] sm:$0xff] %vm1166, %v4346
    %4412 = vst [vmem:[#allocation3 + $0xe0] sm:$0xff] %v4350
    %4413 = vst.msk [vmem:[#allocation3 + $0xe8] sm:$0xff] %vm1166, %v4352
    %4414 = vst [vmem:[#allocation3 + $0xf0] sm:$0xff] %v4356
    %4415 = vst.msk [vmem:[#allocation3 + $0xf8] sm:$0xff] %vm1166, %v4358
    %4416 = vst [vmem:[#allocation3 + $0x100] sm:$0xff] %v4362
    %4417 = vst.msk [vmem:[#allocation3 + $0x108] sm:$0xff] %vm1166, %v4364
    %4418 = vst [vmem:[#allocation3 + $0x110] sm:$0xff] %v4368
    %4419 = vst.msk [vmem:[#allocation3 + $0x118] sm:$0xff] %vm1166, %v4370
    %4420 = vst [vmem:[#allocation3 + $0x120] sm:$0xff] %v4374
    %4421 = vst.msk [vmem:[#allocation3 + $0x128] sm:$0xff] %vm1166, %v4376
    %4422 = vst [vmem:[#allocation3 + $0x130] sm:$0xf] %v4380
    %4423 = vst.msk [vmem:[#allocation3 + $0x138] sm:$0xf] %vm1245, %v4382
    // Predicated region
    $region42: #{gat_lstm_forward.1} parent=1 // pred_check
      _
    $region43: #{gat_lstm_forward.1} parent=1 // pred_check_branch
      %4425 = sbr.rel (0) target = $region45
    $region44: #{gat_lstm_forward.1} parent=1 // pred_region
      %s4427 = ssub.s32 5120, 5120
      %4428 = vsyncadd [#allocation4], %s4427
      %s4429 = sshll.u32 [#allocation3], 4
      %s4430 = int_to_ptr.vmem [resolvable:$true] %s4429
      %4435 = dma.vmem_to_hbm [thread:$0]  %s4430, 5120, %s10, [#allocation4], 256, 256, 16
    $region45: #{gat_lstm_forward.1} parent=1 // pred_fallthru
      _
    // Predicated region
    $region46: #{gat_lstm_forward.1} parent=1 // pred_check
      _
    $region47: #{gat_lstm_forward.1} parent=1 // pred_check_branch
      %4437 = sbr.rel (0) target = $region49
    $region48: #{gat_lstm_forward.1} parent=1 // pred_region
      %4438 = dma.done [#allocation4], 5120
    $region49: #{gat_lstm_forward.1} parent=1 // pred_fallthru
      _
    %4439 = vsyncpa [#allocation4], 1

</llo_original>
